<compile_context>
chip_gen: v6e
topology: v6e:2x2x1
jax: 0.10.0
libtpu: 0.0.40
codegen_flags: <defaults>
</compile_context>

<pallas_src>
import functools
import math

import jax
import jax.numpy as jnp
from jax.experimental import pallas as pl
from jax.experimental.pallas import tpu as pltpu

_LN_EPS = 1e-5  # PyTorch nn.LayerNorm default


def _layernorm(x, gamma, beta, eps=_LN_EPS):
    mean = jnp.mean(x, axis=-1, keepdims=True)
    var = jnp.mean((x - mean) ** 2, axis=-1, keepdims=True)
    return (x - mean) * jax.lax.rsqrt(var + eps) * gamma + beta


def _transpose_heads(t):
    # (rows, H, dh) <-> (H, rows, dh).  Minor (lane) dim unchanged; prefer the
    # layout-aware pltpu.einshape when available, fall back to jnp.transpose.
    if hasattr(pltpu, "einshape"):
        return pltpu.einshape("rhd->hrd", t)
    return jnp.transpose(t, (1, 0, 2))


def encoder_block_kernel(xq_ref, xkv_ref,
                         wq_ref, bq_ref, wk_ref, bk_ref, wv_ref, bv_ref,
                         wo_ref,
                         g1_ref, beta1_ref,
                         w1_ref, bf1_ref, w2_ref, bf2_ref,
                         g2_ref, beta2_ref,
                         o_ref,
                         k_cache, v_cache,
                         *, head_num, kv_tile):
    # ---- K/V projection: once per batch row, cached across query tiles -----
    # Requires the s axis to be sequential ("arbitrary") so the scratch carry
    # is valid; megacore sharding happens on the batch axis only.
    @pl.when(pl.program_id(1) == 0)
    def _():
        xkv = xkv_ref[0]                                   # (S, D) bf16, no f32 copy
        S, D = xkv.shape
        dh = D // head_num
        k = jnp.dot(xkv, wk_ref[...],
                    preferred_element_type=jnp.float32) + bk_ref[...]
        v = jnp.dot(xkv, wv_ref[...],
                    preferred_element_type=jnp.float32) + bv_ref[...]
        # Head-major (H, S, dh) bf16 cache: the head relayout is paid once per
        # batch row instead of once per query tile.
        k_cache[...] = _transpose_heads(
            k.reshape(S, head_num, dh)).astype(jnp.bfloat16)
        v_cache[...] = _transpose_heads(
            v.reshape(S, head_num, dh)).astype(jnp.bfloat16)

    # ---- Per query tile -----------------------------------------------------
    xq = xq_ref[0].astype(jnp.float32)                     # (TS, D) f32 (residual)
    TS, D = xq.shape
    dh = D // head_num
    scale = 1.0 / math.sqrt(dh)

    q = jnp.dot(xq.astype(jnp.bfloat16), wq_ref[...],
                preferred_element_type=jnp.float32) + bq_ref[...]
    q = q * scale                                          # fold 1/sqrt(dh) into Q once
    q3 = _transpose_heads(q.reshape(TS, head_num, dh)).astype(jnp.bfloat16)  # (H,TS,dh)

    num_kv = k_cache.shape[1] // kv_tile                   # static

    def attn_step(kt, vt, carry):
        # Online-softmax update for one KV tile (attention dropout is identity).
        m, l, acc = carry
        s = jnp.einsum("hqd,hkd->hqk", q3, kt,
                       preferred_element_type=jnp.float32)      # (H, TS, TK)
        m_new = jnp.maximum(m, jnp.max(s, axis=-1, keepdims=True))
        alpha = jnp.exp(m - m_new)
        p = jnp.exp(s - m_new)
        l_new = alpha * l + jnp.sum(p, axis=-1, keepdims=True)
        acc_new = alpha * acc + jnp.einsum(
            "hqk,hkd->hqd", p.astype(jnp.bfloat16), vt,
            preferred_element_type=jnp.float32)                 # (H, TS, dh)
        return m_new, l_new, acc_new

    carry0 = (jnp.full((head_num, TS, 1), -jnp.inf, jnp.float32),
              jnp.zeros((head_num, TS, 1), jnp.float32),
              jnp.zeros((head_num, TS, dh), jnp.float32))

    if num_kv == 1:
        m, l, acc = attn_step(k_cache[...], v_cache[...], carry0)
    else:
        def body(t, carry):
            start = pl.multiple_of(t * kv_tile, kv_tile)
            kt = k_cache[:, pl.ds(start, kv_tile), :]
            vt = v_cache[:, pl.ds(start, kv_tile), :]
            return attn_step(kt, vt, carry)
        m, l, acc = jax.lax.fori_loop(0, num_kv, body, carry0,
                                      unroll=bool(num_kv <= 8))

    # Normalize AFTER P@V (TS*dh muls instead of TS*S); divide runs on the EUP.
    # NOTE: approx reciprocal (~1e-3 rel err) — fine for eval/inference parity.
    o3 = acc * pl.reciprocal(l, approx=True)                    # (H, TS, dh)

    # concat_head == inverse head transpose + merge of the head columns.
    attn = _transpose_heads(o3).reshape(TS, D)
    attn = jnp.dot(attn.astype(jnp.bfloat16), wo_ref[...],
                   preferred_element_type=jnp.float32)          # out proj (bias=False in spec)

    # dropout_1 identity (eval); residual; LayerNorm 1 (f32)
    h1 = _layernorm(attn + xq, g1_ref[...], beta1_ref[...])

    # FeedForward: Linear -> ReLU -> (dropout identity) -> Linear
    ff = jnp.dot(h1.astype(jnp.bfloat16), w1_ref[...],
                 preferred_element_type=jnp.float32) + bf1_ref[...]
    ff = jnp.maximum(ff, 0.0)
    ff = jnp.dot(ff.astype(jnp.bfloat16), w2_ref[...],
                 preferred_element_type=jnp.float32) + bf2_ref[...]

    # dropout_2 identity (eval); residual; LayerNorm 2 (f32)
    out = _layernorm(ff + h1, g2_ref[...], beta2_ref[...])
    o_ref[0] = out.astype(o_ref.dtype)
    # TODO(synk): training-mode (RNG) dropout is not implemented; all dropout
    # layers follow eval-mode identity semantics.


def _vmem_capacity_bytes():
    try:
        return int(pltpu.get_tpu_info().vmem_capacity_bytes)
    except Exception:
        return 64 << 20          # conservative (v7x-sized) default


def _pick_q_tile(S, vmem_cap):
    # Largest 8-aligned query tile dividing S.  512-class tiles on 128 MiB
    # chips (v6e; v5e's 128-wide MXU is already full at 128-256 rows — kept
    # moderate), 256-class on 64 MiB (v7x).
    max_tile = 512 if vmem_cap >= (96 << 20) else 256
    for cand in (512, 256, 128, 64, 32, 16, 8):
        if cand <= max_tile and S >= cand and S % cand == 0:
            return cand
    return S


def _pick_kv_tile(S):
    for cand in (512, 256, 128, 64, 32, 16, 8):
        if S >= cand and S % cand == 0:
            return cand
    return S


def _round_up(a, b):
    return (a + b - 1) // b * b


def encoder_block(x, params, head_num):
    B, S, D = x.shape
    assert D % head_num == 0
    dh = D // head_num
    d_ff = params["w1"].shape[1]

    vmem_cap = _vmem_capacity_bytes()
    TS = _pick_q_tile(S, vmem_cap)
    TK = _pick_kv_tile(S)

    # Pre-cast matmul weights to bf16 (native MXU path); biases / LN params f32.
    p = dict(params)
    for name in ("wq", "wk", "wv", "wo", "w1", "w2"):
        p[name] = params[name].astype(jnp.bfloat16)

    param_order = ["wq", "bq", "wk", "bk", "wv", "bv", "wo",
                   "g1", "beta1", "w1", "bf1", "w2", "bf2", "g2", "beta2"]

    # bf16 copy of x feeds the once-per-batch-row K/V projection (halves the
    # DMA + VMEM of the (S, D) block); the f32 query tile keeps the residual exact.
    x_kv = x.astype(jnp.bfloat16)

    kernel = functools.partial(encoder_block_kernel, head_num=head_num, kv_tile=TK)

    # ---- VMEM budget (scoped limit), sized per generation -------------------
    weight_bytes = sum(int(p[name].nbytes) for name in param_order)
    kv_cache_bytes = 2 * head_num * _round_up(S, 8) * _round_up(dh, 128) * 2
    io_bytes = 2 * (TS * D * 4) + 2 * (TS * D * 4) + 2 * (S * D * 2)
    act_bytes = 4 * (head_num * TS * (3 * TK + 2 * dh)
                     + TS * (4 * D + d_ff) + 2 * S * D)

    def _vmem_limit(weight_buffers):
        needed = (weight_buffers * weight_bytes + kv_cache_bytes + io_bytes
                  + act_bytes + (8 << 20))
        cap = int(0.85 * vmem_cap)       # headroom for compiler-internal scratch
        return int(min(max(needed, 32 << 20), cap))

    # Advisory cost estimate for XLA's scheduler (K/V proj counted once per row).
    flops = 2 * B * S * (4 * D * D + 2 * S * D + 2 * D * d_ff)
    transcendentals = B * head_num * S * S
    bytes_accessed = int(B * S * D * (4 + 2 + 4) + weight_bytes)
    cost = pl.CostEstimate(flops=int(flops), transcendentals=int(transcendentals),
                           bytes_accessed=bytes_accessed)

    def _build(single_buffer_weights):
        def _const_spec(shape):
            index_map = (lambda b, s, _n=len(shape): (0,) * _n)
            if single_buffer_weights:
                # Constant index map -> weights stay resident; single buffering
                # halves their VMEM footprint (critical on v7x's 64 MiB).
                return pl.BlockSpec(shape, index_map, pipeline_mode=pl.Buffered(1))
            return pl.BlockSpec(shape, index_map)

        in_specs = [
            pl.BlockSpec((1, TS, D), lambda b, s: (b, s, 0)),   # f32 query tile
            pl.BlockSpec((1, S, D), lambda b, s: (b, 0, 0)),    # bf16 full seq (per batch row)
        ]
        in_specs += [_const_spec(tuple(p[name].shape)) for name in param_order]

        return pl.pallas_call(
            kernel,
            out_shape=jax.ShapeDtypeStruct((B, S, D), x.dtype),
            grid_spec=pltpu.PrefetchScalarGridSpec(
                num_scalar_prefetch=0,
                grid=(B, S // TS),
                in_specs=in_specs,
                out_specs=pl.BlockSpec((1, TS, D), lambda b, s: (b, s, 0)),
                scratch_shapes=[
                    pltpu.VMEM((head_num, S, dh), jnp.bfloat16),   # K cache
                    pltpu.VMEM((head_num, S, dh), jnp.bfloat16),   # V cache
                ],
            ),
            compiler_params=pltpu.CompilerParams(
                # batch axis parallel (megacore on v7x); sequence-tile axis must
                # be sequential because the K/V scratch cache is carried across it.
                dimension_semantics=("parallel", "arbitrary"),
                vmem_limit_bytes=_vmem_limit(1 if single_buffer_weights else 2)),
            cost_estimate=cost,
        )

    args = (x, x_kv) + tuple(p[name] for name in param_order)
    try:
        return _build(single_buffer_weights=True)(*args)
    except Exception:
        # pipeline_mode=pl.Buffered(1) unsupported on this jax/libtpu build:
        # fall back to default double-buffered weight blocks.
        return _build(single_buffer_weights=False)(*args)


def _reference(x, params, head_num):
    # plain-JAX (f32) mirror of the PyTorch forward (eval mode)
    B, S, D = x.shape
    dh = D // head_num
    q = x @ params["wq"] + params["bq"]
    k = x @ params["wk"] + params["bk"]
    v = x @ params["wv"] + params["bv"]

    def split(t):  # (B,S,D) -> (B,H,S,dh)
        return jnp.stack(jnp.split(t, head_num, axis=2), axis=1)

    qh, kh, vh = split(q), split(k), split(v)
    s = jnp.einsum("bhqd,bhkd->bhqk", qh, kh) / (dh ** 0.5)
    p = jax.nn.softmax(s, axis=3)
    o = jnp.einsum("bhqk,bhkd->bhqd", p, vh)
    o = jnp.concatenate(jnp.split(o, head_num, axis=1), axis=3)[:, 0]
    o = o @ params["wo"]
    h1 = _layernorm(o + x, params["g1"], params["beta1"])
    ff = jnp.maximum(h1 @ params["w1"] + params["bf1"], 0.0)
    ff = ff @ params["w2"] + params["bf2"]
    return _layernorm(ff + h1, params["g2"], params["beta2"])


if __name__ == "__main__":
    B, S, dim, head_num, d_ff = 2, 8, 32, 4, 64

    key = jax.random.PRNGKey(0)
    keys = jax.random.split(key, 12)
    scale = 0.1
    params = {
        # weights stored pre-transposed: y = x @ W + b
        "wq": scale * jax.random.normal(keys[0], (dim, dim), jnp.float32),
        "bq": scale * jax.random.normal(keys[1], (1, dim), jnp.float32),
        "wk": scale * jax.random.normal(keys[2], (dim, dim), jnp.float32),
        "bk": scale * jax.random.normal(keys[3], (1, dim), jnp.float32),
        "wv": scale * jax.random.normal(keys[4], (dim, dim), jnp.float32),
        "bv": scale * jax.random.normal(keys[5], (1, dim), jnp.float32),
        "wo": scale * jax.random.normal(keys[6], (dim, dim), jnp.float32),
        "g1": jnp.ones((1, dim), jnp.float32),
        "beta1": jnp.zeros((1, dim), jnp.float32),
        "w1": scale * jax.random.normal(keys[7], (dim, d_ff), jnp.float32),
        "bf1": scale * jax.random.normal(keys[8], (1, d_ff), jnp.float32),
        "w2": scale * jax.random.normal(keys[9], (d_ff, dim), jnp.float32),
        "bf2": scale * jax.random.normal(keys[10], (1, dim), jnp.float32),
        "g2": jnp.ones((1, dim), jnp.float32),
        "beta2": jnp.zeros((1, dim), jnp.float32),
    }

    x = jax.random.normal(keys[11], (B, S, dim), jnp.float32)

    out = jax.block_until_ready(encoder_block(x, params, head_num))

    with jax.default_matmul_precision("float32"):
        ref = _reference(x, params, head_num)
    assert out.shape == (B, S, dim)
    err = float(jnp.max(jnp.abs(out - ref)))
    # bf16 MXU operands + approx reciprocal => looser tolerance than pure f32.
    assert err < 5e-2, f"mismatch vs JAX reference: {err}"

    print("KERNEL_OK")
</pallas_src>

<mosaic_0001>
module attributes {stable_mosaic.version = 11 : i64} {
  func.func @encoder_block_kernel(%arg0: i32, %arg1: i32, %arg2: memref<1x8x32xf32, #tpu.memory_space<vmem>>, %arg3: memref<1x8x32xbf16, #tpu.memory_space<vmem>>, %arg4: memref<32x32xbf16, #tpu.memory_space<vmem>>, %arg5: memref<1x32xf32, #tpu.memory_space<vmem>>, %arg6: memref<32x32xbf16, #tpu.memory_space<vmem>>, %arg7: memref<1x32xf32, #tpu.memory_space<vmem>>, %arg8: memref<32x32xbf16, #tpu.memory_space<vmem>>, %arg9: memref<1x32xf32, #tpu.memory_space<vmem>>, %arg10: memref<32x32xbf16, #tpu.memory_space<vmem>>, %arg11: memref<1x32xf32, #tpu.memory_space<vmem>>, %arg12: memref<1x32xf32, #tpu.memory_space<vmem>>, %arg13: memref<32x64xbf16, #tpu.memory_space<vmem>>, %arg14: memref<1x64xf32, #tpu.memory_space<vmem>>, %arg15: memref<64x32xbf16, #tpu.memory_space<vmem>>, %arg16: memref<1x32xf32, #tpu.memory_space<vmem>>, %arg17: memref<1x32xf32, #tpu.memory_space<vmem>>, %arg18: memref<1x32xf32, #tpu.memory_space<vmem>>, %arg19: memref<1x8x32xf32, #tpu.memory_space<vmem>>, %arg20: memref<4x8x8xbf16, #tpu.memory_space<vmem>>, %arg21: memref<4x8x8xbf16, #tpu.memory_space<vmem>>) attributes {dimension_semantics = [#tpu.dimension_semantics<parallel>, #tpu.dimension_semantics<arbitrary>], iteration_bounds = array<i64: 2, 1>, scalar_prefetch = 0 : i64, scratch_operands = 2 : i64, tpu.core_type = #tpu.core_type<tc>, window_params = [{transform_indices = @transform_0, window_bounds = array<i64: 1, 8, 32>}, {transform_indices = @transform_1, window_bounds = array<i64: 1, 8, 32>}, {pipeline_mode = #tpu.pipeline_mode<synchronous>, transform_indices = @transform_2, window_bounds = array<i64: 32, 32>}, {pipeline_mode = #tpu.pipeline_mode<synchronous>, transform_indices = @transform_3, window_bounds = array<i64: 1, 32>}, {pipeline_mode = #tpu.pipeline_mode<synchronous>, transform_indices = @transform_4, window_bounds = array<i64: 32, 32>}, {pipeline_mode = #tpu.pipeline_mode<synchronous>, transform_indices = @transform_5, window_bounds = array<i64: 1, 32>}, {pipeline_mode = #tpu.pipeline_mode<synchronous>, transform_indices = @transform_6, window_bounds = array<i64: 32, 32>}, {pipeline_mode = #tpu.pipeline_mode<synchronous>, transform_indices = @transform_7, window_bounds = array<i64: 1, 32>}, {pipeline_mode = #tpu.pipeline_mode<synchronous>, transform_indices = @transform_8, window_bounds = array<i64: 32, 32>}, {pipeline_mode = #tpu.pipeline_mode<synchronous>, transform_indices = @transform_9, window_bounds = array<i64: 1, 32>}, {pipeline_mode = #tpu.pipeline_mode<synchronous>, transform_indices = @transform_10, window_bounds = array<i64: 1, 32>}, {pipeline_mode = #tpu.pipeline_mode<synchronous>, transform_indices = @transform_11, window_bounds = array<i64: 32, 64>}, {pipeline_mode = #tpu.pipeline_mode<synchronous>, transform_indices = @transform_12, window_bounds = array<i64: 1, 64>}, {pipeline_mode = #tpu.pipeline_mode<synchronous>, transform_indices = @transform_13, window_bounds = array<i64: 64, 32>}, {pipeline_mode = #tpu.pipeline_mode<synchronous>, transform_indices = @transform_14, window_bounds = array<i64: 1, 32>}, {pipeline_mode = #tpu.pipeline_mode<synchronous>, transform_indices = @transform_15, window_bounds = array<i64: 1, 32>}, {pipeline_mode = #tpu.pipeline_mode<synchronous>, transform_indices = @transform_16, window_bounds = array<i64: 1, 32>}, {transform_indices = @transform_17, window_bounds = array<i64: 1, 8, 32>}]} {
    %c0_i32 = arith.constant 0 : i32
    %0 = arith.cmpi eq, %arg1, %c0_i32 : i32
    %1 = arith.extui %0 : i1 to i32
    %c0_i32_0 = arith.constant 0 : i32
    %2 = arith.cmpi ne, %1, %c0_i32_0 : i32
    scf.if %2 {
      %c0_56 = arith.constant 0 : index
      %c0_57 = arith.constant 0 : index
      %c0_58 = arith.constant 0 : index
      %114 = vector.load %arg3[%c0_56, %c0_57, %c0_58] : memref<1x8x32xbf16, #tpu.memory_space<vmem>>, vector<1x8x32xbf16>
      %115 = vector.shape_cast %114 : vector<1x8x32xbf16> to vector<8x32xbf16>
      %c0_59 = arith.constant 0 : index
      %c0_60 = arith.constant 0 : index
      %116 = vector.load %arg6[%c0_59, %c0_60] : memref<32x32xbf16, #tpu.memory_space<vmem>>, vector<32x32xbf16>
      %cst_61 = arith.constant dense<0.000000e+00> : vector<8x32xf32>
      %117 = tpu.matmul %115, %116, %cst_61 {dimension_numbers = #tpu.dot_dimension_numbers<[1], [0], [0], [1], [0, 0, 1, 1], [], []>} : vector<8x32xbf16>, vector<32x32xbf16>, vector<8x32xf32> -> vector<8x32xf32>
      %c0_62 = arith.constant 0 : index
      %c0_63 = arith.constant 0 : index
      %118 = vector.load %arg7[%c0_62, %c0_63] : memref<1x32xf32, #tpu.memory_space<vmem>>, vector<1x32xf32>
      %119 = vector.broadcast %118 : vector<1x32xf32> to vector<8x32xf32>
      %120 = arith.addf %117, %119 : vector<8x32xf32>
      %c0_64 = arith.constant 0 : index
      %c0_65 = arith.constant 0 : index
      %121 = vector.load %arg8[%c0_64, %c0_65] : memref<32x32xbf16, #tpu.memory_space<vmem>>, vector<32x32xbf16>
      %cst_66 = arith.constant dense<0.000000e+00> : vector<8x32xf32>
      %122 = tpu.matmul %115, %121, %cst_66 {dimension_numbers = #tpu.dot_dimension_numbers<[1], [0], [0], [1], [0, 0, 1, 1], [], []>} : vector<8x32xbf16>, vector<32x32xbf16>, vector<8x32xf32> -> vector<8x32xf32>
      %c0_67 = arith.constant 0 : index
      %c0_68 = arith.constant 0 : index
      %123 = vector.load %arg9[%c0_67, %c0_68] : memref<1x32xf32, #tpu.memory_space<vmem>>, vector<1x32xf32>
      %124 = vector.broadcast %123 : vector<1x32xf32> to vector<8x32xf32>
      %125 = arith.addf %122, %124 : vector<8x32xf32>
      %126 = vector.shape_cast %120 : vector<8x32xf32> to vector<8x4x8xf32>
      %127 = tpu.transpose %126, [1, 0, 2] : vector<8x4x8xf32> -> vector<4x8x8xf32>
      %128 = arith.truncf %127 : vector<4x8x8xf32> to vector<4x8x8xbf16>
      %c0_69 = arith.constant 0 : index
      %c0_70 = arith.constant 0 : index
      %c0_71 = arith.constant 0 : index
      %129 = vector.load %arg20[%c0_69, %c0_70, %c0_71] : memref<4x8x8xbf16, #tpu.memory_space<vmem>>, vector<4x8x8xbf16>
      tpu.vector_store %arg20[%c0_69, %c0_70, %c0_71], %128 {strides = array<i32>} : memref<4x8x8xbf16, #tpu.memory_space<vmem>>, vector<4x8x8xbf16>,
      %130 = vector.shape_cast %125 : vector<8x32xf32> to vector<8x4x8xf32>
      %131 = tpu.transpose %130, [1, 0, 2] : vector<8x4x8xf32> -> vector<4x8x8xf32>
      %132 = arith.truncf %131 : vector<4x8x8xf32> to vector<4x8x8xbf16>
      %c0_72 = arith.constant 0 : index
      %c0_73 = arith.constant 0 : index
      %c0_74 = arith.constant 0 : index
      %133 = vector.load %arg21[%c0_72, %c0_73, %c0_74] : memref<4x8x8xbf16, #tpu.memory_space<vmem>>, vector<4x8x8xbf16>
      tpu.vector_store %arg21[%c0_72, %c0_73, %c0_74], %132 {strides = array<i32>} : memref<4x8x8xbf16, #tpu.memory_space<vmem>>, vector<4x8x8xbf16>,
    } else {
    }
    %c0 = arith.constant 0 : index
    %c0_1 = arith.constant 0 : index
    %c0_2 = arith.constant 0 : index
    %3 = vector.load %arg2[%c0, %c0_1, %c0_2] : memref<1x8x32xf32, #tpu.memory_space<vmem>>, vector<1x8x32xf32>
    %4 = vector.shape_cast %3 : vector<1x8x32xf32> to vector<8x32xf32>
    %5 = arith.truncf %4 : vector<8x32xf32> to vector<8x32xbf16>
    %c0_3 = arith.constant 0 : index
    %c0_4 = arith.constant 0 : index
    %6 = vector.load %arg4[%c0_3, %c0_4] : memref<32x32xbf16, #tpu.memory_space<vmem>>, vector<32x32xbf16>
    %cst = arith.constant dense<0.000000e+00> : vector<8x32xf32>
    %7 = tpu.matmul %5, %6, %cst {dimension_numbers = #tpu.dot_dimension_numbers<[1], [0], [0], [1], [0, 0, 1, 1], [], []>} : vector<8x32xbf16>, vector<32x32xbf16>, vector<8x32xf32> -> vector<8x32xf32>
    %c0_5 = arith.constant 0 : index
    %c0_6 = arith.constant 0 : index
    %8 = vector.load %arg5[%c0_5, %c0_6] : memref<1x32xf32, #tpu.memory_space<vmem>>, vector<1x32xf32>
    %9 = vector.broadcast %8 : vector<1x32xf32> to vector<8x32xf32>
    %10 = arith.addf %7, %9 : vector<8x32xf32>
    %cst_7 = arith.constant 0.353553385 : f32
    %11 = vector.broadcast %cst_7 : f32 to vector<8x32xf32>
    %12 = arith.mulf %10, %11 : vector<8x32xf32>
    %13 = vector.shape_cast %12 : vector<8x32xf32> to vector<8x4x8xf32>
    %14 = tpu.transpose %13, [1, 0, 2] : vector<8x4x8xf32> -> vector<4x8x8xf32>
    %15 = arith.truncf %14 : vector<4x8x8xf32> to vector<4x8x8xbf16>
    %cst_8 = arith.constant 0xFF800000 : f32
    %16 = vector.broadcast %cst_8 : f32 to vector<4x8x1xf32>
    %cst_9 = arith.constant 0.000000e+00 : f32
    %17 = vector.broadcast %cst_9 : f32 to vector<4x8x1xf32>
    %cst_10 = arith.constant 0.000000e+00 : f32
    %18 = vector.broadcast %cst_10 : f32 to vector<4x8x8xf32>
    %c0_11 = arith.constant 0 : index
    %c0_12 = arith.constant 0 : index
    %c0_13 = arith.constant 0 : index
    %19 = vector.load %arg20[%c0_11, %c0_12, %c0_13] : memref<4x8x8xbf16, #tpu.memory_space<vmem>>, vector<4x8x8xbf16>
    %c0_14 = arith.constant 0 : index
    %c0_15 = arith.constant 0 : index
    %c0_16 = arith.constant 0 : index
    %20 = vector.load %arg21[%c0_14, %c0_15, %c0_16] : memref<4x8x8xbf16, #tpu.memory_space<vmem>>, vector<4x8x8xbf16>
    "tpu.trace_start"() <{level = 10 : i32, message = "hqd,hkd->hqk"}> : () -> ()
    %cst_17 = arith.constant dense<0.000000e+00> : vector<4x8x8xf32>
    %21 = tpu.matmul %15, %19, %cst_17 {dimension_numbers = #tpu.dot_dimension_numbers<[2], [2], [1], [1], [0, 0, 0, 1, 1, 1], [0], [0]>} : vector<4x8x8xbf16>, vector<4x8x8xbf16>, vector<4x8x8xf32> -> vector<4x8x8xf32>
    "tpu.trace_stop"() : () -> ()
    %cst_18 = arith.constant dense<0xFF800000> : vector<4x8xf32>
    %22 = vector.multi_reduction <maximumf>, %21, %cst_18 [2] : vector<4x8x8xf32> to vector<4x8xf32>
    %23 = vector.shape_cast %22 : vector<4x8xf32> to vector<4x8x1xf32>
    %24 = arith.maximumf %16, %23 : vector<4x8x1xf32>
    %25 = arith.subf %16, %24 : vector<4x8x1xf32>
    %26 = math.exp %25 : vector<4x8x1xf32>
    %27 = vector.broadcast %24 : vector<4x8x1xf32> to vector<4x8x8xf32>
    %28 = arith.subf %21, %27 : vector<4x8x8xf32>
    %29 = math.exp %28 : vector<4x8x8xf32>
    %30 = arith.mulf %26, %17 : vector<4x8x1xf32>
    %cst_19 = arith.constant dense<0.000000e+00> : vector<4x8xf32>
    %31 = vector.multi_reduction <add>, %29, %cst_19 [2] : vector<4x8x8xf32> to vector<4x8xf32>
    %32 = vector.shape_cast %31 : vector<4x8xf32> to vector<4x8x1xf32>
    %33 = arith.addf %30, %32 : vector<4x8x1xf32>
    %34 = vector.broadcast %26 : vector<4x8x1xf32> to vector<4x8x8xf32>
    %35 = arith.mulf %34, %18 : vector<4x8x8xf32>
    %36 = arith.truncf %29 : vector<4x8x8xf32> to vector<4x8x8xbf16>
    "tpu.trace_start"() <{level = 10 : i32, message = "hqk,hkd->hqd"}> : () -> ()
    %cst_20 = arith.constant dense<0.000000e+00> : vector<4x8x8xf32>
    %37 = tpu.matmul %36, %20, %cst_20 {dimension_numbers = #tpu.dot_dimension_numbers<[2], [1], [1], [2], [0, 0, 0, 1, 1, 2], [0], [0]>} : vector<4x8x8xbf16>, vector<4x8x8xbf16>, vector<4x8x8xf32> -> vector<4x8x8xf32>
    "tpu.trace_stop"() : () -> ()
    %38 = arith.addf %35, %37 : vector<4x8x8xf32>
    %39 = tpu.reciprocal %33 {approx = true} : vector<4x8x1xf32> -> vector<4x8x1xf32>
    %40 = vector.broadcast %39 : vector<4x8x1xf32> to vector<4x8x8xf32>
    %41 = arith.mulf %38, %40 : vector<4x8x8xf32>
    %42 = tpu.transpose %41, [1, 0, 2] : vector<4x8x8xf32> -> vector<8x4x8xf32>
    %43 = vector.shape_cast %42 : vector<8x4x8xf32> to vector<8x32xf32>
    %44 = arith.truncf %43 : vector<8x32xf32> to vector<8x32xbf16>
    %c0_21 = arith.constant 0 : index
    %c0_22 = arith.constant 0 : index
    %45 = vector.load %arg10[%c0_21, %c0_22] : memref<32x32xbf16, #tpu.memory_space<vmem>>, vector<32x32xbf16>
    %cst_23 = arith.constant dense<0.000000e+00> : vector<8x32xf32>
    %46 = tpu.matmul %44, %45, %cst_23 {dimension_numbers = #tpu.dot_dimension_numbers<[1], [0], [0], [1], [0, 0, 1, 1], [], []>} : vector<8x32xbf16>, vector<32x32xbf16>, vector<8x32xf32> -> vector<8x32xf32>
    %47 = arith.addf %46, %4 : vector<8x32xf32>
    %c0_24 = arith.constant 0 : index
    %c0_25 = arith.constant 0 : index
    %48 = vector.load %arg11[%c0_24, %c0_25] : memref<1x32xf32, #tpu.memory_space<vmem>>, vector<1x32xf32>
    %c0_26 = arith.constant 0 : index
    %c0_27 = arith.constant 0 : index
    %49 = vector.load %arg12[%c0_26, %c0_27] : memref<1x32xf32, #tpu.memory_space<vmem>>, vector<1x32xf32>
    %cst_28 = arith.constant dense<0.000000e+00> : vector<8xf32>
    %50 = vector.multi_reduction <add>, %47, %cst_28 [1] : vector<8x32xf32> to vector<8xf32>
    %51 = vector.shape_cast %50 : vector<8xf32> to vector<8x1xf32>
    %cst_29 = arith.constant 3.200000e+01 : f32
    %52 = vector.broadcast %cst_29 : f32 to vector<8x1xf32>
    %53 = arith.divf %51, %52 : vector<8x1xf32>
    %54 = vector.broadcast %53 : vector<8x1xf32> to vector<8x32xf32>
    %55 = arith.subf %47, %54 : vector<8x32xf32>
    %56 = arith.mulf %55, %55 : vector<8x32xf32>
    %cst_30 = arith.constant dense<0.000000e+00> : vector<8xf32>
    %57 = vector.multi_reduction <add>, %56, %cst_30 [1] : vector<8x32xf32> to vector<8xf32>
    %58 = vector.shape_cast %57 : vector<8xf32> to vector<8x1xf32>
    %cst_31 = arith.constant 3.200000e+01 : f32
    %59 = vector.broadcast %cst_31 : f32 to vector<8x1xf32>
    %60 = arith.divf %58, %59 : vector<8x1xf32>
    %61 = vector.broadcast %53 : vector<8x1xf32> to vector<8x32xf32>
    %62 = arith.subf %47, %61 : vector<8x32xf32>
    %cst_32 = arith.constant 9.99999974E-6 : f32
    %63 = vector.broadcast %cst_32 : f32 to vector<8x1xf32>
    %64 = arith.addf %60, %63 : vector<8x1xf32>
    %65 = math.rsqrt %64 : vector<8x1xf32>
    %66 = vector.broadcast %65 : vector<8x1xf32> to vector<8x32xf32>
    %67 = arith.mulf %62, %66 : vector<8x32xf32>
    %68 = vector.broadcast %48 : vector<1x32xf32> to vector<8x32xf32>
    %69 = arith.mulf %67, %68 : vector<8x32xf32>
    %70 = vector.broadcast %49 : vector<1x32xf32> to vector<8x32xf32>
    %71 = arith.addf %69, %70 : vector<8x32xf32>
    %72 = arith.truncf %71 : vector<8x32xf32> to vector<8x32xbf16>
    %c0_33 = arith.constant 0 : index
    %c0_34 = arith.constant 0 : index
    %73 = vector.load %arg13[%c0_33, %c0_34] : memref<32x64xbf16, #tpu.memory_space<vmem>>, vector<32x64xbf16>
    %cst_35 = arith.constant dense<0.000000e+00> : vector<8x64xf32>
    %74 = tpu.matmul %72, %73, %cst_35 {dimension_numbers = #tpu.dot_dimension_numbers<[1], [0], [0], [1], [0, 0, 1, 1], [], []>} : vector<8x32xbf16>, vector<32x64xbf16>, vector<8x64xf32> -> vector<8x64xf32>
    %c0_36 = arith.constant 0 : index
    %c0_37 = arith.constant 0 : index
    %75 = vector.load %arg14[%c0_36, %c0_37] : memref<1x64xf32, #tpu.memory_space<vmem>>, vector<1x64xf32>
    %76 = vector.broadcast %75 : vector<1x64xf32> to vector<8x64xf32>
    %77 = arith.addf %74, %76 : vector<8x64xf32>
    %cst_38 = arith.constant 0.000000e+00 : f32
    %78 = vector.broadcast %cst_38 : f32 to vector<8x64xf32>
    %79 = arith.maximumf %77, %78 : vector<8x64xf32>
    %80 = arith.truncf %79 : vector<8x64xf32> to vector<8x64xbf16>
    %c0_39 = arith.constant 0 : index
    %c0_40 = arith.constant 0 : index
    %81 = vector.load %arg15[%c0_39, %c0_40] : memref<64x32xbf16, #tpu.memory_space<vmem>>, vector<64x32xbf16>
    %cst_41 = arith.constant dense<0.000000e+00> : vector<8x32xf32>
    %82 = tpu.matmul %80, %81, %cst_41 {dimension_numbers = #tpu.dot_dimension_numbers<[1], [0], [0], [1], [0, 0, 1, 1], [], []>} : vector<8x64xbf16>, vector<64x32xbf16>, vector<8x32xf32> -> vector<8x32xf32>
    %c0_42 = arith.constant 0 : index
    %c0_43 = arith.constant 0 : index
    %83 = vector.load %arg16[%c0_42, %c0_43] : memref<1x32xf32, #tpu.memory_space<vmem>>, vector<1x32xf32>
    %84 = vector.broadcast %83 : vector<1x32xf32> to vector<8x32xf32>
    %85 = arith.addf %82, %84 : vector<8x32xf32>
    %86 = arith.addf %85, %71 : vector<8x32xf32>
    %c0_44 = arith.constant 0 : index
    %c0_45 = arith.constant 0 : index
    %87 = vector.load %arg17[%c0_44, %c0_45] : memref<1x32xf32, #tpu.memory_space<vmem>>, vector<1x32xf32>
    %c0_46 = arith.constant 0 : index
    %c0_47 = arith.constant 0 : index
    %88 = vector.load %arg18[%c0_46, %c0_47] : memref<1x32xf32, #tpu.memory_space<vmem>>, vector<1x32xf32>
    %cst_48 = arith.constant dense<0.000000e+00> : vector<8xf32>
    %89 = vector.multi_reduction <add>, %86, %cst_48 [1] : vector<8x32xf32> to vector<8xf32>
    %90 = vector.shape_cast %89 : vector<8xf32> to vector<8x1xf32>
    %cst_49 = arith.constant 3.200000e+01 : f32
    %91 = vector.broadcast %cst_49 : f32 to vector<8x1xf32>
    %92 = arith.divf %90, %91 : vector<8x1xf32>
    %93 = vector.broadcast %92 : vector<8x1xf32> to vector<8x32xf32>
    %94 = arith.subf %86, %93 : vector<8x32xf32>
    %95 = arith.mulf %94, %94 : vector<8x32xf32>
    %cst_50 = arith.constant dense<0.000000e+00> : vector<8xf32>
    %96 = vector.multi_reduction <add>, %95, %cst_50 [1] : vector<8x32xf32> to vector<8xf32>
    %97 = vector.shape_cast %96 : vector<8xf32> to vector<8x1xf32>
    %cst_51 = arith.constant 3.200000e+01 : f32
    %98 = vector.broadcast %cst_51 : f32 to vector<8x1xf32>
    %99 = arith.divf %97, %98 : vector<8x1xf32>
    %100 = vector.broadcast %92 : vector<8x1xf32> to vector<8x32xf32>
    %101 = arith.subf %86, %100 : vector<8x32xf32>
    %cst_52 = arith.constant 9.99999974E-6 : f32
    %102 = vector.broadcast %cst_52 : f32 to vector<8x1xf32>
    %103 = arith.addf %99, %102 : vector<8x1xf32>
    %104 = math.rsqrt %103 : vector<8x1xf32>
    %105 = vector.broadcast %104 : vector<8x1xf32> to vector<8x32xf32>
    %106 = arith.mulf %101, %105 : vector<8x32xf32>
    %107 = vector.broadcast %87 : vector<1x32xf32> to vector<8x32xf32>
    %108 = arith.mulf %106, %107 : vector<8x32xf32>
    %109 = vector.broadcast %88 : vector<1x32xf32> to vector<8x32xf32>
    %110 = arith.addf %108, %109 : vector<8x32xf32>
    %c0_53 = arith.constant 0 : index
    %c0_54 = arith.constant 0 : index
    %c0_55 = arith.constant 0 : index
    %111 = vector.load %arg19[%c0_53, %c0_54, %c0_55] : memref<1x8x32xf32, #tpu.memory_space<vmem>>, vector<1x8x32xf32>
    %112 = vector.shape_cast %111 : vector<1x8x32xf32> to vector<8x32xf32>
    %113 = vector.shape_cast %110 : vector<8x32xf32> to vector<1x8x32xf32>
    tpu.vector_store %arg19[%c0_53, %c0_54, %c0_55], %113 {strides = array<i32>} : memref<1x8x32xf32, #tpu.memory_space<vmem>>, vector<1x8x32xf32>,
    return
  }
  func.func @transform_0(%arg0: i32, %arg1: i32) -> (i32, i32, i32) {
    %c0_i32 = arith.constant 0 : i32
    %c0_i32_0 = arith.constant 0 : i32
    return %arg0, %arg1, %c0_i32 : i32, i32, i32
  }
  func.func @transform_1(%arg0: i32, %arg1: i32) -> (i32, i32, i32) {
    %c0_i32 = arith.constant 0 : i32
    %c0_i32_0 = arith.constant 0 : i32
    %c0_i32_1 = arith.constant 0 : i32
    return %arg0, %c0_i32, %c0_i32_0 : i32, i32, i32
  }
  func.func @transform_2(%arg0: i32, %arg1: i32) -> (i32, i32) {
    %c0_i32 = arith.constant 0 : i32
    %c0_i32_0 = arith.constant 0 : i32
    %c0_i32_1 = arith.constant 0 : i32
    return %c0_i32, %c0_i32_0 : i32, i32
  }
  func.func @transform_3(%arg0: i32, %arg1: i32) -> (i32, i32) {
    %c0_i32 = arith.constant 0 : i32
    %c0_i32_0 = arith.constant 0 : i32
    %c0_i32_1 = arith.constant 0 : i32
    return %c0_i32, %c0_i32_0 : i32, i32
  }
  func.func @transform_4(%arg0: i32, %arg1: i32) -> (i32, i32) {
    %c0_i32 = arith.constant 0 : i32
    %c0_i32_0 = arith.constant 0 : i32
    %c0_i32_1 = arith.constant 0 : i32
    return %c0_i32, %c0_i32_0 : i32, i32
  }
  func.func @transform_5(%arg0: i32, %arg1: i32) -> (i32, i32) {
    %c0_i32 = arith.constant 0 : i32
    %c0_i32_0 = arith.constant 0 : i32
    %c0_i32_1 = arith.constant 0 : i32
    return %c0_i32, %c0_i32_0 : i32, i32
  }
  func.func @transform_6(%arg0: i32, %arg1: i32) -> (i32, i32) {
    %c0_i32 = arith.constant 0 : i32
    %c0_i32_0 = arith.constant 0 : i32
    %c0_i32_1 = arith.constant 0 : i32
    return %c0_i32, %c0_i32_0 : i32, i32
  }
  func.func @transform_7(%arg0: i32, %arg1: i32) -> (i32, i32) {
    %c0_i32 = arith.constant 0 : i32
    %c0_i32_0 = arith.constant 0 : i32
    %c0_i32_1 = arith.constant 0 : i32
    return %c0_i32, %c0_i32_0 : i32, i32
  }
  func.func @transform_8(%arg0: i32, %arg1: i32) -> (i32, i32) {
    %c0_i32 = arith.constant 0 : i32
    %c0_i32_0 = arith.constant 0 : i32
    %c0_i32_1 = arith.constant 0 : i32
    return %c0_i32, %c0_i32_0 : i32, i32
  }
  func.func @transform_9(%arg0: i32, %arg1: i32) -> (i32, i32) {
    %c0_i32 = arith.constant 0 : i32
    %c0_i32_0 = arith.constant 0 : i32
    %c0_i32_1 = arith.constant 0 : i32
    return %c0_i32, %c0_i32_0 : i32, i32
  }
  func.func @transform_10(%arg0: i32, %arg1: i32) -> (i32, i32) {
    %c0_i32 = arith.constant 0 : i32
    %c0_i32_0 = arith.constant 0 : i32
    %c0_i32_1 = arith.constant 0 : i32
    return %c0_i32, %c0_i32_0 : i32, i32
  }
  func.func @transform_11(%arg0: i32, %arg1: i32) -> (i32, i32) {
    %c0_i32 = arith.constant 0 : i32
    %c0_i32_0 = arith.constant 0 : i32
    %c0_i32_1 = arith.constant 0 : i32
    return %c0_i32, %c0_i32_0 : i32, i32
  }
  func.func @transform_12(%arg0: i32, %arg1: i32) -> (i32, i32) {
    %c0_i32 = arith.constant 0 : i32
    %c0_i32_0 = arith.constant 0 : i32
    %c0_i32_1 = arith.constant 0 : i32
    return %c0_i32, %c0_i32_0 : i32, i32
  }
  func.func @transform_13(%arg0: i32, %arg1: i32) -> (i32, i32) {
    %c0_i32 = arith.constant 0 : i32
    %c0_i32_0 = arith.constant 0 : i32
    %c0_i32_1 = arith.constant 0 : i32
    return %c0_i32, %c0_i32_0 : i32, i32
  }
  func.func @transform_14(%arg0: i32, %arg1: i32) -> (i32, i32) {
    %c0_i32 = arith.constant 0 : i32
    %c0_i32_0 = arith.constant 0 : i32
    %c0_i32_1 = arith.constant 0 : i32
    return %c0_i32, %c0_i32_0 : i32, i32
  }
  func.func @transform_15(%arg0: i32, %arg1: i32) -> (i32, i32) {
    %c0_i32 = arith.constant 0 : i32
    %c0_i32_0 = arith.constant 0 : i32
    %c0_i32_1 = arith.constant 0 : i32
    return %c0_i32, %c0_i32_0 : i32, i32
  }
  func.func @transform_16(%arg0: i32, %arg1: i32) -> (i32, i32) {
    %c0_i32 = arith.constant 0 : i32
    %c0_i32_0 = arith.constant 0 : i32
    %c0_i32_1 = arith.constant 0 : i32
    return %c0_i32, %c0_i32_0 : i32, i32
  }
  func.func @transform_17(%arg0: i32, %arg1: i32) -> (i32, i32, i32) {
    %c0_i32 = arith.constant 0 : i32
    %c0_i32_0 = arith.constant 0 : i32
    return %arg0, %arg1, %c0_i32 : i32, i32, i32
  }
}

module attributes {stable_mosaic.version = 11 : i64} {
  func.func @encoder_block_kernel(%arg0: i32, %arg1: i32, %arg2: memref<1x8x32xf32, #tpu.memory_space<vmem>>, %arg3: memref<1x8x32xbf16, #tpu.memory_space<vmem>>, %arg4: memref<32x32xbf16, #tpu.memory_space<vmem>>, %arg5: memref<1x32xf32, #tpu.memory_space<vmem>>, %arg6: memref<32x32xbf16, #tpu.memory_space<vmem>>, %arg7: memref<1x32xf32, #tpu.memory_space<vmem>>, %arg8: memref<32x32xbf16, #tpu.memory_space<vmem>>, %arg9: memref<1x32xf32, #tpu.memory_space<vmem>>, %arg10: memref<32x32xbf16, #tpu.memory_space<vmem>>, %arg11: memref<1x32xf32, #tpu.memory_space<vmem>>, %arg12: memref<1x32xf32, #tpu.memory_space<vmem>>, %arg13: memref<32x64xbf16, #tpu.memory_space<vmem>>, %arg14: memref<1x64xf32, #tpu.memory_space<vmem>>, %arg15: memref<64x32xbf16, #tpu.memory_space<vmem>>, %arg16: memref<1x32xf32, #tpu.memory_space<vmem>>, %arg17: memref<1x32xf32, #tpu.memory_space<vmem>>, %arg18: memref<1x32xf32, #tpu.memory_space<vmem>>, %arg19: memref<1x8x32xf32, #tpu.memory_space<vmem>>, %arg20: memref<4x8x8xbf16, #tpu.memory_space<vmem>>, %arg21: memref<4x8x8xbf16, #tpu.memory_space<vmem>>) attributes {dimension_semantics = [#tpu.dimension_semantics<parallel>, #tpu.dimension_semantics<arbitrary>], iteration_bounds = array<i64: 2, 1>, scalar_prefetch = 0 : i64, scratch_operands = 2 : i64, tpu.core_type = #tpu.core_type<tc>, window_params = [{transform_indices = @transform_0, window_bounds = array<i64: 1, 8, 32>}, {transform_indices = @transform_1, window_bounds = array<i64: 1, 8, 32>}, {pipeline_mode = #tpu.pipeline_mode<synchronous>, transform_indices = @transform_2, window_bounds = array<i64: 32, 32>}, {pipeline_mode = #tpu.pipeline_mode<synchronous>, transform_indices = @transform_3, window_bounds = array<i64: 1, 32>}, {pipeline_mode = #tpu.pipeline_mode<synchronous>, transform_indices = @transform_4, window_bounds = array<i64: 32, 32>}, {pipeline_mode = #tpu.pipeline_mode<synchronous>, transform_indices = @transform_5, window_bounds = array<i64: 1, 32>}, {pipeline_mode = #tpu.pipeline_mode<synchronous>, transform_indices = @transform_6, window_bounds = array<i64: 32, 32>}, {pipeline_mode = #tpu.pipeline_mode<synchronous>, transform_indices = @transform_7, window_bounds = array<i64: 1, 32>}, {pipeline_mode = #tpu.pipeline_mode<synchronous>, transform_indices = @transform_8, window_bounds = array<i64: 32, 32>}, {pipeline_mode = #tpu.pipeline_mode<synchronous>, transform_indices = @transform_9, window_bounds = array<i64: 1, 32>}, {pipeline_mode = #tpu.pipeline_mode<synchronous>, transform_indices = @transform_10, window_bounds = array<i64: 1, 32>}, {pipeline_mode = #tpu.pipeline_mode<synchronous>, transform_indices = @transform_11, window_bounds = array<i64: 32, 64>}, {pipeline_mode = #tpu.pipeline_mode<synchronous>, transform_indices = @transform_12, window_bounds = array<i64: 1, 64>}, {pipeline_mode = #tpu.pipeline_mode<synchronous>, transform_indices = @transform_13, window_bounds = array<i64: 64, 32>}, {pipeline_mode = #tpu.pipeline_mode<synchronous>, transform_indices = @transform_14, window_bounds = array<i64: 1, 32>}, {pipeline_mode = #tpu.pipeline_mode<synchronous>, transform_indices = @transform_15, window_bounds = array<i64: 1, 32>}, {pipeline_mode = #tpu.pipeline_mode<synchronous>, transform_indices = @transform_16, window_bounds = array<i64: 1, 32>}, {transform_indices = @transform_17, window_bounds = array<i64: 1, 8, 32>}]} {
    %c0_i32 = arith.constant 0 : i32
    %0 = arith.cmpi eq, %arg1, %c0_i32 : i32
    %1 = arith.extui %0 : i1 to i32
    %c0_i32_0 = arith.constant 0 : i32
    %2 = arith.cmpi ne, %1, %c0_i32_0 : i32
    scf.if %2 {
      %c0_56 = arith.constant 0 : index
      %c0_57 = arith.constant 0 : index
      %c0_58 = arith.constant 0 : index
      %114 = vector.load %arg3[%c0_56, %c0_57, %c0_58] : memref<1x8x32xbf16, #tpu.memory_space<vmem>>, vector<1x8x32xbf16>
      %115 = vector.shape_cast %114 : vector<1x8x32xbf16> to vector<8x32xbf16>
      %c0_59 = arith.constant 0 : index
      %c0_60 = arith.constant 0 : index
      %116 = vector.load %arg6[%c0_59, %c0_60] : memref<32x32xbf16, #tpu.memory_space<vmem>>, vector<32x32xbf16>
      %cst_61 = arith.constant dense<0.000000e+00> : vector<8x32xf32>
      %117 = tpu.matmul %115, %116, %cst_61 {dimension_numbers = #tpu.dot_dimension_numbers<[1], [0], [0], [1], [0, 0, 1, 1], [], []>} : vector<8x32xbf16>, vector<32x32xbf16>, vector<8x32xf32> -> vector<8x32xf32>
      %c0_62 = arith.constant 0 : index
      %c0_63 = arith.constant 0 : index
      %118 = vector.load %arg7[%c0_62, %c0_63] : memref<1x32xf32, #tpu.memory_space<vmem>>, vector<1x32xf32>
      %119 = vector.broadcast %118 : vector<1x32xf32> to vector<8x32xf32>
      %120 = arith.addf %117, %119 : vector<8x32xf32>
      %c0_64 = arith.constant 0 : index
      %c0_65 = arith.constant 0 : index
      %121 = vector.load %arg8[%c0_64, %c0_65] : memref<32x32xbf16, #tpu.memory_space<vmem>>, vector<32x32xbf16>
      %cst_66 = arith.constant dense<0.000000e+00> : vector<8x32xf32>
      %122 = tpu.matmul %115, %121, %cst_66 {dimension_numbers = #tpu.dot_dimension_numbers<[1], [0], [0], [1], [0, 0, 1, 1], [], []>} : vector<8x32xbf16>, vector<32x32xbf16>, vector<8x32xf32> -> vector<8x32xf32>
      %c0_67 = arith.constant 0 : index
      %c0_68 = arith.constant 0 : index
      %123 = vector.load %arg9[%c0_67, %c0_68] : memref<1x32xf32, #tpu.memory_space<vmem>>, vector<1x32xf32>
      %124 = vector.broadcast %123 : vector<1x32xf32> to vector<8x32xf32>
      %125 = arith.addf %122, %124 : vector<8x32xf32>
      %126 = vector.shape_cast %120 : vector<8x32xf32> to vector<8x4x8xf32>
      %127 = tpu.transpose %126, [1, 0, 2] : vector<8x4x8xf32> -> vector<4x8x8xf32>
      %128 = arith.truncf %127 : vector<4x8x8xf32> to vector<4x8x8xbf16>
      %c0_69 = arith.constant 0 : index
      %c0_70 = arith.constant 0 : index
      %c0_71 = arith.constant 0 : index
      %129 = vector.load %arg20[%c0_69, %c0_70, %c0_71] : memref<4x8x8xbf16, #tpu.memory_space<vmem>>, vector<4x8x8xbf16>
      tpu.vector_store %arg20[%c0_69, %c0_70, %c0_71], %128 {strides = array<i32>} : memref<4x8x8xbf16, #tpu.memory_space<vmem>>, vector<4x8x8xbf16>,
      %130 = vector.shape_cast %125 : vector<8x32xf32> to vector<8x4x8xf32>
      %131 = tpu.transpose %130, [1, 0, 2] : vector<8x4x8xf32> -> vector<4x8x8xf32>
      %132 = arith.truncf %131 : vector<4x8x8xf32> to vector<4x8x8xbf16>
      %c0_72 = arith.constant 0 : index
      %c0_73 = arith.constant 0 : index
      %c0_74 = arith.constant 0 : index
      %133 = vector.load %arg21[%c0_72, %c0_73, %c0_74] : memref<4x8x8xbf16, #tpu.memory_space<vmem>>, vector<4x8x8xbf16>
      tpu.vector_store %arg21[%c0_72, %c0_73, %c0_74], %132 {strides = array<i32>} : memref<4x8x8xbf16, #tpu.memory_space<vmem>>, vector<4x8x8xbf16>,
    } else {
    }
    %c0 = arith.constant 0 : index
    %c0_1 = arith.constant 0 : index
    %c0_2 = arith.constant 0 : index
    %3 = vector.load %arg2[%c0, %c0_1, %c0_2] : memref<1x8x32xf32, #tpu.memory_space<vmem>>, vector<1x8x32xf32>
    %4 = vector.shape_cast %3 : vector<1x8x32xf32> to vector<8x32xf32>
    %5 = arith.truncf %4 : vector<8x32xf32> to vector<8x32xbf16>
    %c0_3 = arith.constant 0 : index
    %c0_4 = arith.constant 0 : index
    %6 = vector.load %arg4[%c0_3, %c0_4] : memref<32x32xbf16, #tpu.memory_space<vmem>>, vector<32x32xbf16>
    %cst = arith.constant dense<0.000000e+00> : vector<8x32xf32>
    %7 = tpu.matmul %5, %6, %cst {dimension_numbers = #tpu.dot_dimension_numbers<[1], [0], [0], [1], [0, 0, 1, 1], [], []>} : vector<8x32xbf16>, vector<32x32xbf16>, vector<8x32xf32> -> vector<8x32xf32>
    %c0_5 = arith.constant 0 : index
    %c0_6 = arith.constant 0 : index
    %8 = vector.load %arg5[%c0_5, %c0_6] : memref<1x32xf32, #tpu.memory_space<vmem>>, vector<1x32xf32>
    %9 = vector.broadcast %8 : vector<1x32xf32> to vector<8x32xf32>
    %10 = arith.addf %7, %9 : vector<8x32xf32>
    %cst_7 = arith.constant 0.353553385 : f32
    %11 = vector.broadcast %cst_7 : f32 to vector<8x32xf32>
    %12 = arith.mulf %10, %11 : vector<8x32xf32>
    %13 = vector.shape_cast %12 : vector<8x32xf32> to vector<8x4x8xf32>
    %14 = tpu.transpose %13, [1, 0, 2] : vector<8x4x8xf32> -> vector<4x8x8xf32>
    %15 = arith.truncf %14 : vector<4x8x8xf32> to vector<4x8x8xbf16>
    %cst_8 = arith.constant 0xFF800000 : f32
    %16 = vector.broadcast %cst_8 : f32 to vector<4x8x1xf32>
    %cst_9 = arith.constant 0.000000e+00 : f32
    %17 = vector.broadcast %cst_9 : f32 to vector<4x8x1xf32>
    %cst_10 = arith.constant 0.000000e+00 : f32
    %18 = vector.broadcast %cst_10 : f32 to vector<4x8x8xf32>
    %c0_11 = arith.constant 0 : index
    %c0_12 = arith.constant 0 : index
    %c0_13 = arith.constant 0 : index
    %19 = vector.load %arg20[%c0_11, %c0_12, %c0_13] : memref<4x8x8xbf16, #tpu.memory_space<vmem>>, vector<4x8x8xbf16>
    %c0_14 = arith.constant 0 : index
    %c0_15 = arith.constant 0 : index
    %c0_16 = arith.constant 0 : index
    %20 = vector.load %arg21[%c0_14, %c0_15, %c0_16] : memref<4x8x8xbf16, #tpu.memory_space<vmem>>, vector<4x8x8xbf16>
    "tpu.trace_start"() <{level = 10 : i32, message = "hqd,hkd->hqk"}> : () -> ()
    %cst_17 = arith.constant dense<0.000000e+00> : vector<4x8x8xf32>
    %21 = tpu.matmul %15, %19, %cst_17 {dimension_numbers = #tpu.dot_dimension_numbers<[2], [2], [1], [1], [0, 0, 0, 1, 1, 1], [0], [0]>} : vector<4x8x8xbf16>, vector<4x8x8xbf16>, vector<4x8x8xf32> -> vector<4x8x8xf32>
    "tpu.trace_stop"() : () -> ()
    %cst_18 = arith.constant dense<0xFF800000> : vector<4x8xf32>
    %22 = vector.multi_reduction <maximumf>, %21, %cst_18 [2] : vector<4x8x8xf32> to vector<4x8xf32>
    %23 = vector.shape_cast %22 : vector<4x8xf32> to vector<4x8x1xf32>
    %24 = arith.maximumf %16, %23 : vector<4x8x1xf32>
    %25 = arith.subf %16, %24 : vector<4x8x1xf32>
    %26 = math.exp %25 : vector<4x8x1xf32>
    %27 = vector.broadcast %24 : vector<4x8x1xf32> to vector<4x8x8xf32>
    %28 = arith.subf %21, %27 : vector<4x8x8xf32>
    %29 = math.exp %28 : vector<4x8x8xf32>
    %30 = arith.mulf %26, %17 : vector<4x8x1xf32>
    %cst_19 = arith.constant dense<0.000000e+00> : vector<4x8xf32>
    %31 = vector.multi_reduction <add>, %29, %cst_19 [2] : vector<4x8x8xf32> to vector<4x8xf32>
    %32 = vector.shape_cast %31 : vector<4x8xf32> to vector<4x8x1xf32>
    %33 = arith.addf %30, %32 : vector<4x8x1xf32>
    %34 = vector.broadcast %26 : vector<4x8x1xf32> to vector<4x8x8xf32>
    %35 = arith.mulf %34, %18 : vector<4x8x8xf32>
    %36 = arith.truncf %29 : vector<4x8x8xf32> to vector<4x8x8xbf16>
    "tpu.trace_start"() <{level = 10 : i32, message = "hqk,hkd->hqd"}> : () -> ()
    %cst_20 = arith.constant dense<0.000000e+00> : vector<4x8x8xf32>
    %37 = tpu.matmul %36, %20, %cst_20 {dimension_numbers = #tpu.dot_dimension_numbers<[2], [1], [1], [2], [0, 0, 0, 1, 1, 2], [0], [0]>} : vector<4x8x8xbf16>, vector<4x8x8xbf16>, vector<4x8x8xf32> -> vector<4x8x8xf32>
    "tpu.trace_stop"() : () -> ()
    %38 = arith.addf %35, %37 : vector<4x8x8xf32>
    %39 = tpu.reciprocal %33 {approx = true} : vector<4x8x1xf32> -> vector<4x8x1xf32>
    %40 = vector.broadcast %39 : vector<4x8x1xf32> to vector<4x8x8xf32>
    %41 = arith.mulf %38, %40 : vector<4x8x8xf32>
    %42 = tpu.transpose %41, [1, 0, 2] : vector<4x8x8xf32> -> vector<8x4x8xf32>
    %43 = vector.shape_cast %42 : vector<8x4x8xf32> to vector<8x32xf32>
    %44 = arith.truncf %43 : vector<8x32xf32> to vector<8x32xbf16>
    %c0_21 = arith.constant 0 : index
    %c0_22 = arith.constant 0 : index
    %45 = vector.load %arg10[%c0_21, %c0_22] : memref<32x32xbf16, #tpu.memory_space<vmem>>, vector<32x32xbf16>
    %cst_23 = arith.constant dense<0.000000e+00> : vector<8x32xf32>
    %46 = tpu.matmul %44, %45, %cst_23 {dimension_numbers = #tpu.dot_dimension_numbers<[1], [0], [0], [1], [0, 0, 1, 1], [], []>} : vector<8x32xbf16>, vector<32x32xbf16>, vector<8x32xf32> -> vector<8x32xf32>
    %47 = arith.addf %46, %4 : vector<8x32xf32>
    %c0_24 = arith.constant 0 : index
    %c0_25 = arith.constant 0 : index
    %48 = vector.load %arg11[%c0_24, %c0_25] : memref<1x32xf32, #tpu.memory_space<vmem>>, vector<1x32xf32>
    %c0_26 = arith.constant 0 : index
    %c0_27 = arith.constant 0 : index
    %49 = vector.load %arg12[%c0_26, %c0_27] : memref<1x32xf32, #tpu.memory_space<vmem>>, vector<1x32xf32>
    %cst_28 = arith.constant dense<0.000000e+00> : vector<8xf32>
    %50 = vector.multi_reduction <add>, %47, %cst_28 [1] : vector<8x32xf32> to vector<8xf32>
    %51 = vector.shape_cast %50 : vector<8xf32> to vector<8x1xf32>
    %cst_29 = arith.constant 3.200000e+01 : f32
    %52 = vector.broadcast %cst_29 : f32 to vector<8x1xf32>
    %53 = arith.divf %51, %52 : vector<8x1xf32>
    %54 = vector.broadcast %53 : vector<8x1xf32> to vector<8x32xf32>
    %55 = arith.subf %47, %54 : vector<8x32xf32>
    %56 = arith.mulf %55, %55 : vector<8x32xf32>
    %cst_30 = arith.constant dense<0.000000e+00> : vector<8xf32>
    %57 = vector.multi_reduction <add>, %56, %cst_30 [1] : vector<8x32xf32> to vector<8xf32>
    %58 = vector.shape_cast %57 : vector<8xf32> to vector<8x1xf32>
    %cst_31 = arith.constant 3.200000e+01 : f32
    %59 = vector.broadcast %cst_31 : f32 to vector<8x1xf32>
    %60 = arith.divf %58, %59 : vector<8x1xf32>
    %61 = vector.broadcast %53 : vector<8x1xf32> to vector<8x32xf32>
    %62 = arith.subf %47, %61 : vector<8x32xf32>
    %cst_32 = arith.constant 9.99999974E-6 : f32
    %63 = vector.broadcast %cst_32 : f32 to vector<8x1xf32>
    %64 = arith.addf %60, %63 : vector<8x1xf32>
    %65 = math.rsqrt %64 : vector<8x1xf32>
    %66 = vector.broadcast %65 : vector<8x1xf32> to vector<8x32xf32>
    %67 = arith.mulf %62, %66 : vector<8x32xf32>
    %68 = vector.broadcast %48 : vector<1x32xf32> to vector<8x32xf32>
    %69 = arith.mulf %67, %68 : vector<8x32xf32>
    %70 = vector.broadcast %49 : vector<1x32xf32> to vector<8x32xf32>
    %71 = arith.addf %69, %70 : vector<8x32xf32>
    %72 = arith.truncf %71 : vector<8x32xf32> to vector<8x32xbf16>
    %c0_33 = arith.constant 0 : index
    %c0_34 = arith.constant 0 : index
    %73 = vector.load %arg13[%c0_33, %c0_34] : memref<32x64xbf16, #tpu.memory_space<vmem>>, vector<32x64xbf16>
    %cst_35 = arith.constant dense<0.000000e+00> : vector<8x64xf32>
    %74 = tpu.matmul %72, %73, %cst_35 {dimension_numbers = #tpu.dot_dimension_numbers<[1], [0], [0], [1], [0, 0, 1, 1], [], []>} : vector<8x32xbf16>, vector<32x64xbf16>, vector<8x64xf32> -> vector<8x64xf32>
    %c0_36 = arith.constant 0 : index
    %c0_37 = arith.constant 0 : index
    %75 = vector.load %arg14[%c0_36, %c0_37] : memref<1x64xf32, #tpu.memory_space<vmem>>, vector<1x64xf32>
    %76 = vector.broadcast %75 : vector<1x64xf32> to vector<8x64xf32>
    %77 = arith.addf %74, %76 : vector<8x64xf32>
    %cst_38 = arith.constant 0.000000e+00 : f32
    %78 = vector.broadcast %cst_38 : f32 to vector<8x64xf32>
    %79 = arith.maximumf %77, %78 : vector<8x64xf32>
    %80 = arith.truncf %79 : vector<8x64xf32> to vector<8x64xbf16>
    %c0_39 = arith.constant 0 : index
    %c0_40 = arith.constant 0 : index
    %81 = vector.load %arg15[%c0_39, %c0_40] : memref<64x32xbf16, #tpu.memory_space<vmem>>, vector<64x32xbf16>
    %cst_41 = arith.constant dense<0.000000e+00> : vector<8x32xf32>
    %82 = tpu.matmul %80, %81, %cst_41 {dimension_numbers = #tpu.dot_dimension_numbers<[1], [0], [0], [1], [0, 0, 1, 1], [], []>} : vector<8x64xbf16>, vector<64x32xbf16>, vector<8x32xf32> -> vector<8x32xf32>
    %c0_42 = arith.constant 0 : index
    %c0_43 = arith.constant 0 : index
    %83 = vector.load %arg16[%c0_42, %c0_43] : memref<1x32xf32, #tpu.memory_space<vmem>>, vector<1x32xf32>
    %84 = vector.broadcast %83 : vector<1x32xf32> to vector<8x32xf32>
    %85 = arith.addf %82, %84 : vector<8x32xf32>
    %86 = arith.addf %85, %71 : vector<8x32xf32>
    %c0_44 = arith.constant 0 : index
    %c0_45 = arith.constant 0 : index
    %87 = vector.load %arg17[%c0_44, %c0_45] : memref<1x32xf32, #tpu.memory_space<vmem>>, vector<1x32xf32>
    %c0_46 = arith.constant 0 : index
    %c0_47 = arith.constant 0 : index
    %88 = vector.load %arg18[%c0_46, %c0_47] : memref<1x32xf32, #tpu.memory_space<vmem>>, vector<1x32xf32>
    %cst_48 = arith.constant dense<0.000000e+00> : vector<8xf32>
    %89 = vector.multi_reduction <add>, %86, %cst_48 [1] : vector<8x32xf32> to vector<8xf32>
    %90 = vector.shape_cast %89 : vector<8xf32> to vector<8x1xf32>
    %cst_49 = arith.constant 3.200000e+01 : f32
    %91 = vector.broadcast %cst_49 : f32 to vector<8x1xf32>
    %92 = arith.divf %90, %91 : vector<8x1xf32>
    %93 = vector.broadcast %92 : vector<8x1xf32> to vector<8x32xf32>
    %94 = arith.subf %86, %93 : vector<8x32xf32>
    %95 = arith.mulf %94, %94 : vector<8x32xf32>
    %cst_50 = arith.constant dense<0.000000e+00> : vector<8xf32>
    %96 = vector.multi_reduction <add>, %95, %cst_50 [1] : vector<8x32xf32> to vector<8xf32>
    %97 = vector.shape_cast %96 : vector<8xf32> to vector<8x1xf32>
    %cst_51 = arith.constant 3.200000e+01 : f32
    %98 = vector.broadcast %cst_51 : f32 to vector<8x1xf32>
    %99 = arith.divf %97, %98 : vector<8x1xf32>
    %100 = vector.broadcast %92 : vector<8x1xf32> to vector<8x32xf32>
    %101 = arith.subf %86, %100 : vector<8x32xf32>
    %cst_52 = arith.constant 9.99999974E-6 : f32
    %102 = vector.broadcast %cst_52 : f32 to vector<8x1xf32>
    %103 = arith.addf %99, %102 : vector<8x1xf32>
    %104 = math.rsqrt %103 : vector<8x1xf32>
    %105 = vector.broadcast %104 : vector<8x1xf32> to vector<8x32xf32>
    %106 = arith.mulf %101, %105 : vector<8x32xf32>
    %107 = vector.broadcast %87 : vector<1x32xf32> to vector<8x32xf32>
    %108 = arith.mulf %106, %107 : vector<8x32xf32>
    %109 = vector.broadcast %88 : vector<1x32xf32> to vector<8x32xf32>
    %110 = arith.addf %108, %109 : vector<8x32xf32>
    %c0_53 = arith.constant 0 : index
    %c0_54 = arith.constant 0 : index
    %c0_55 = arith.constant 0 : index
    %111 = vector.load %arg19[%c0_53, %c0_54, %c0_55] : memref<1x8x32xf32, #tpu.memory_space<vmem>>, vector<1x8x32xf32>
    %112 = vector.shape_cast %111 : vector<1x8x32xf32> to vector<8x32xf32>
    %113 = vector.shape_cast %110 : vector<8x32xf32> to vector<1x8x32xf32>
    tpu.vector_store %arg19[%c0_53, %c0_54, %c0_55], %113 {strides = array<i32>} : memref<1x8x32xf32, #tpu.memory_space<vmem>>, vector<1x8x32xf32>,
    return
  }
  func.func @transform_0(%arg0: i32, %arg1: i32) -> (i32, i32, i32) {
    %c0_i32 = arith.constant 0 : i32
    %c0_i32_0 = arith.constant 0 : i32
    return %arg0, %arg1, %c0_i32 : i32, i32, i32
  }
  func.func @transform_1(%arg0: i32, %arg1: i32) -> (i32, i32, i32) {
    %c0_i32 = arith.constant 0 : i32
    %c0_i32_0 = arith.constant 0 : i32
    %c0_i32_1 = arith.constant 0 : i32
    return %arg0, %c0_i32, %c0_i32_0 : i32, i32, i32
  }
  func.func @transform_2(%arg0: i32, %arg1: i32) -> (i32, i32) {
    %c0_i32 = arith.constant 0 : i32
    %c0_i32_0 = arith.constant 0 : i32
    %c0_i32_1 = arith.constant 0 : i32
    return %c0_i32, %c0_i32_0 : i32, i32
  }
  func.func @transform_3(%arg0: i32, %arg1: i32) -> (i32, i32) {
    %c0_i32 = arith.constant 0 : i32
    %c0_i32_0 = arith.constant 0 : i32
    %c0_i32_1 = arith.constant 0 : i32
    return %c0_i32, %c0_i32_0 : i32, i32
  }
  func.func @transform_4(%arg0: i32, %arg1: i32) -> (i32, i32) {
    %c0_i32 = arith.constant 0 : i32
    %c0_i32_0 = arith.constant 0 : i32
    %c0_i32_1 = arith.constant 0 : i32
    return %c0_i32, %c0_i32_0 : i32, i32
  }
  func.func @transform_5(%arg0: i32, %arg1: i32) -> (i32, i32) {
    %c0_i32 = arith.constant 0 : i32
    %c0_i32_0 = arith.constant 0 : i32
    %c0_i32_1 = arith.constant 0 : i32
    return %c0_i32, %c0_i32_0 : i32, i32
  }
  func.func @transform_6(%arg0: i32, %arg1: i32) -> (i32, i32) {
    %c0_i32 = arith.constant 0 : i32
    %c0_i32_0 = arith.constant 0 : i32
    %c0_i32_1 = arith.constant 0 : i32
    return %c0_i32, %c0_i32_0 : i32, i32
  }
  func.func @transform_7(%arg0: i32, %arg1: i32) -> (i32, i32) {
    %c0_i32 = arith.constant 0 : i32
    %c0_i32_0 = arith.constant 0 : i32
    %c0_i32_1 = arith.constant 0 : i32
    return %c0_i32, %c0_i32_0 : i32, i32
  }
  func.func @transform_8(%arg0: i32, %arg1: i32) -> (i32, i32) {
    %c0_i32 = arith.constant 0 : i32
    %c0_i32_0 = arith.constant 0 : i32
    %c0_i32_1 = arith.constant 0 : i32
    return %c0_i32, %c0_i32_0 : i32, i32
  }
  func.func @transform_9(%arg0: i32, %arg1: i32) -> (i32, i32) {
    %c0_i32 = arith.constant 0 : i32
    %c0_i32_0 = arith.constant 0 : i32
    %c0_i32_1 = arith.constant 0 : i32
    return %c0_i32, %c0_i32_0 : i32, i32
  }
  func.func @transform_10(%arg0: i32, %arg1: i32) -> (i32, i32) {
    %c0_i32 = arith.constant 0 : i32
    %c0_i32_0 = arith.constant 0 : i32
    %c0_i32_1 = arith.constant 0 : i32
    return %c0_i32, %c0_i32_0 : i32, i32
  }
  func.func @transform_11(%arg0: i32, %arg1: i32) -> (i32, i32) {
    %c0_i32 = arith.constant 0 : i32
    %c0_i32_0 = arith.constant 0 : i32
    %c0_i32_1 = arith.constant 0 : i32
    return %c0_i32, %c0_i32_0 : i32, i32
  }
  func.func @transform_12(%arg0: i32, %arg1: i32) -> (i32, i32) {
    %c0_i32 = arith.constant 0 : i32
    %c0_i32_0 = arith.constant 0 : i32
    %c0_i32_1 = arith.constant 0 : i32
    return %c0_i32, %c0_i32_0 : i32, i32
  }
  func.func @transform_13(%arg0: i32, %arg1: i32) -> (i32, i32) {
    %c0_i32 = arith.constant 0 : i32
    %c0_i32_0 = arith.constant 0 : i32
    %c0_i32_1 = arith.constant 0 : i32
    return %c0_i32, %c0_i32_0 : i32, i32
  }
  func.func @transform_14(%arg0: i32, %arg1: i32) -> (i32, i32) {
    %c0_i32 = arith.constant 0 : i32
    %c0_i32_0 = arith.constant 0 : i32
    %c0_i32_1 = arith.constant 0 : i32
    return %c0_i32, %c0_i32_0 : i32, i32
  }
  func.func @transform_15(%arg0: i32, %arg1: i32) -> (i32, i32) {
    %c0_i32 = arith.constant 0 : i32
    %c0_i32_0 = arith.constant 0 : i32
    %c0_i32_1 = arith.constant 0 : i32
    return %c0_i32, %c0_i32_0 : i32, i32
  }
  func.func @transform_16(%arg0: i32, %arg1: i32) -> (i32, i32) {
    %c0_i32 = arith.constant 0 : i32
    %c0_i32_0 = arith.constant 0 : i32
    %c0_i32_1 = arith.constant 0 : i32
    return %c0_i32, %c0_i32_0 : i32, i32
  }
  func.func @transform_17(%arg0: i32, %arg1: i32) -> (i32, i32, i32) {
    %c0_i32 = arith.constant 0 : i32
    %c0_i32_0 = arith.constant 0 : i32
    return %arg0, %arg1, %c0_i32 : i32, i32, i32
  }
}

</mosaic_0001>

<llo_original>
// kernel: tpu_custom_call.1
$region0: #{tpu_custom_call.1}
  #allocation0 [shape = 'u32[]', space=smem, size = 0x4, offset = 0x4, fixed_abs, tag = 'smem constant byte address 0x4 - core index']
  #allocation1 [shape = 'u32[144,128]{1,0:T(1,128)}', space=vmem, size = 0x12000, scoped, tag = 'internal scratch']
  #allocation2 [shape = 'bf16[4,8,8]{2,1,0:T(8,128)(2,1)}', space=vmem, size = 0x2000, scoped, tag = 'scratch operand']
  #allocation3 [shape = 'bf16[4,8,8]{2,1,0:T(8,128)(2,1)}', space=vmem, size = 0x2000, scoped, tag = 'scratch operand']
  %s0 = inlined_call_operand.vmem [shape: f32[2,8,32], index: 0, kind: input, shape index: {}]
  %s1 = inlined_call_operand.hbm [shape: bf16[2,8,32], index: 1, kind: input, shape index: {}]
  %s2 = inlined_call_operand.vmem [shape: bf16[32,32], index: 2, kind: input, shape index: {}]
  %s3 = inlined_call_operand.hbm [shape: f32[1,32], index: 3, kind: input, shape index: {}]
  %s4 = inlined_call_operand.vmem [shape: bf16[32,32], index: 4, kind: input, shape index: {}]
  %s5 = inlined_call_operand.hbm [shape: f32[1,32], index: 5, kind: input, shape index: {}]
  %s6 = inlined_call_operand.hbm [shape: bf16[32,32], index: 6, kind: input, shape index: {}]
  %s7 = inlined_call_operand.hbm [shape: f32[1,32], index: 7, kind: input, shape index: {}]
  %s8 = inlined_call_operand.hbm [shape: bf16[32,32], index: 8, kind: input, shape index: {}]
  %s9 = inlined_call_operand.hbm [shape: f32[1,32], index: 9, kind: input, shape index: {}]
  %s10 = inlined_call_operand.vmem [shape: f32[1,32], index: 10, kind: input, shape index: {}]
  %s11 = inlined_call_operand.vmem [shape: bf16[32,64], index: 11, kind: input, shape index: {}]
  %s12 = inlined_call_operand.vmem [shape: f32[1,64], index: 12, kind: input, shape index: {}]
  %s13 = inlined_call_operand.vmem [shape: bf16[64,32], index: 13, kind: input, shape index: {}]
  %s14 = inlined_call_operand.vmem [shape: f32[1,32], index: 14, kind: input, shape index: {}]
  %s15 = inlined_call_operand.vmem [shape: f32[1,32], index: 15, kind: input, shape index: {}]
  %s16 = inlined_call_operand.vmem [shape: f32[1,32], index: 16, kind: input, shape index: {}]
  %s17 = inlined_call_operand.hbm [shape: f32[2,8,32], index: 17, kind: output, shape index: {}]
  %s18 = sld [smem:[#allocation0]]
  $region133: #{tpu_custom_call.1} parent=0
    _
  %s20 = ssub.s32 1, %s18
  %s21 = scalar_select 0, %s20, %s18
  $region1: #{tpu_custom_call.1} parent=0
    #allocation4 [shape = 'u8[4096]{0}', space=vmem, size = 0x1000, scoped, tag = 'input window, operand 1']
    #allocation5 [shape = 's32[2]{0}', space=sflag, size = 0x8, scoped, tag = 'scoped memory for tpu_custom_call.1']
    #allocation6 [shape = 's32[2]{0}', space=sflag, size = 0x8, scoped, tag = 'scoped memory for tpu_custom_call.1']
    #allocation7 [shape = 'u8[512]{0}', space=vmem, size = 0x400, scoped, tag = 'input window, operand 3, single buffered']
    #allocation8 [shape = 's32[1]{0}', space=sflag, size = 0x4, scoped, tag = 'scoped memory for tpu_custom_call.1']
    #allocation9 [shape = 'u8[512]{0}', space=vmem, size = 0x400, scoped, tag = 'input window, operand 5, single buffered']
    #allocation10 [shape = 'u8[8192]{0}', space=vmem, size = 0x2000, scoped, tag = 'input window, operand 6, single buffered']
    #allocation11 [shape = 's32[1]{0}', space=sflag, size = 0x4, scoped, tag = 'scoped memory for tpu_custom_call.1']
    #allocation12 [shape = 'u8[512]{0}', space=vmem, size = 0x400, scoped, tag = 'input window, operand 7, single buffered']
    #allocation13 [shape = 'u8[8192]{0}', space=vmem, size = 0x2000, scoped, tag = 'input window, operand 8, single buffered']
    #allocation14 [shape = 's32[1]{0}', space=sflag, size = 0x4, scoped, tag = 'scoped memory for tpu_custom_call.1']
    #allocation15 [shape = 'u8[512]{0}', space=vmem, size = 0x400, scoped, tag = 'input window, operand 9, single buffered']
    #allocation16 [shape = 'u8[8192]{0}', space=vmem, size = 0x2000, scoped, tag = 'output window, operand 0']
    %22 = vsyncpa [#allocation5], 0
    %s23 = scalar_lea.sflag [#allocation5], 1
    %24 = vsyncpa %s23, 0
    %25 = vsyncpa [#allocation8], 0
    %26 = vsyncpa [#allocation11], 0
    %27 = vsyncpa [#allocation14], 0
    %28 = vsyncpa [#allocation6], 0
    %s29 = scalar_lea.sflag [#allocation6], 1
    %30 = vsyncpa %s29, 0
    loop: start=0, step=1, limit=4
    $region2: #{tpu_custom_call.1} parent=1 // loop_pre_header
      _
    $region3: #{tpu_custom_call.1} parent=1 // loop_header
      %s32 = sphi 0, %s36
      %p33 = scmp.ge.s32.totalorder %s32, 4
      %s39 = sphi 0, %s51
      %s40 = sphi 0, %s47
      %s41 = sphi 0, %s39
      %s42 = sphi 0, %s40
      %s43 = sphi 0, %s41
      %s44 = sphi 0, %s42
      %s56 = sphi 0, %s58
      %s59 = sphi 0, %s56
      %s60 = sphi 0, %s59
      %s76 = sphi 0, %s60
      %s82 = sphi 0, %s84
      %s85 = sphi 0, %s82
      %s86 = sphi 0, %s85
      %s102 = sphi 0, %s86
      %s106 = sphi 0, %s106
      %s108 = sphi 0, %s106
      %s109 = sphi 0, %s108
      %s123 = sphi 0, %s109
      %s127 = sphi 0, %s127
      %s129 = sphi 0, %s127
      %s130 = sphi 0, %s129
      %s144 = sphi 0, %s130
      %s148 = sphi 0, %s148
      %s150 = sphi 0, %s148
      %s151 = sphi 0, %s150
      %s165 = sphi 0, %s151
      %s169 = sphi 0, %s169
      %s171 = sphi 0, %s169
      %s172 = sphi 0, %s171
      %s186 = sphi 0, %s172
      %s190 = sphi 0, %s190
      %s192 = sphi 0, %s190
      %s193 = sphi 0, %s192
      %s207 = sphi 0, %s193
      %s211 = sphi 0, %s211
      %s213 = sphi 0, %s211
      %s214 = sphi 0, %s213
      %s228 = sphi 0, %s214
      %s232 = sphi 0, %s232
      %s234 = sphi 0, %s232
      %s235 = sphi 0, %s234
      %s249 = sphi 0, %s235
      %s253 = sphi 0, %s253
      %s255 = sphi 0, %s253
      %s256 = sphi 0, %s255
      %s270 = sphi 0, %s256
      %s274 = sphi 0, %s274
      %s276 = sphi 0, %s274
      %s277 = sphi 0, %s276
      %s291 = sphi 0, %s277
      %s295 = sphi 0, %s295
      %s297 = sphi 0, %s295
      %s298 = sphi 0, %s297
      %s312 = sphi 0, %s298
      %s316 = sphi 0, %s316
      %s318 = sphi 0, %s316
      %s319 = sphi 0, %s318
      %s333 = sphi 0, %s319
      %s337 = sphi 0, %s337
      %s339 = sphi 0, %s337
      %s340 = sphi 0, %s339
      %s354 = sphi 0, %s340
      %s358 = sphi 0, %s358
      %s360 = sphi 0, %s358
      %s361 = sphi 0, %s360
      %s375 = sphi 0, %s361
      %s379 = sphi 0, %s379
      %s381 = sphi 0, %s379
      %s382 = sphi 0, %s381
      %s396 = sphi 0, %s382
      %s400 = sphi 0, %s400
      %s402 = sphi 0, %s400
      %s403 = sphi 0, %s402
      %s417 = sphi 0, %s403
      %s425 = sphi 0, %s427
      %s428 = sphi 0, %s425
      %s429 = sphi 0, %s428
      %s445 = sphi 0, %s429
    $region4: #{tpu_custom_call.1} parent=1 // loop_header_branch
      %35 = sbr.rel (%p33) target = $region8
    $region5: #{tpu_custom_call.1} parent=1 // loop_body
      %s37 = ssub.s32 %s32, 1
      %s38 = ssub.s32 %s32, 2
      %s45 = sadd.s32 1, %s40
      %p46 = scmp.ge.s32.totalorder %s45, 1
      %s47 = scalar_select %p46, 0, %s45
      %s48 = sadd.s32 1, %s39
      %s49 = scalar_select %p46, %s48, %s39
      %p50 = scmp.ge.s32.totalorder %s49, 2
      %s51 = scalar_select %p50, 0, %s49
      %s52 = ssub.s32 %s39, %s51
      %s53 = ssub.s32 %s40, %s47
      %s54 = sor.u32 %s52, %s53
      %p55 = scmp.eq.s32.totalorder %s54, 0
      %s57 = sadd.s32 %s56, 1
      %s58 = scalar_select %p55, %s56, %s57
      %p61 = pneg %p55
      %p62 = scmp.eq.s32.totalorder %s32, 1
      %p63 = por %p61, %p62
      %p64 = scmp.ne.s32.totalorder %s56, %s59
      %p65 = scmp.eq.s32.totalorder %s32, 0
      %p66 = por %p64, %p65
      %p67 = scmp.ne.s32.totalorder %s56, %s59
      %p68 = scmp.eq.s32.totalorder %s37, 1
      %p69 = por %p67, %p68
      %p70 = scmp.ne.s32.totalorder %s59, %s60
      %p71 = scmp.eq.s32.totalorder %s37, 0
      %p72 = por %p70, %p71
      %p73 = scmp.ne.s32.totalorder %s59, %s60
      %p74 = scmp.eq.s32.totalorder %s38, 1
      %p75 = por %p73, %p74
      %p77 = scmp.ne.s32.totalorder %s60, %s76
      %p78 = scmp.eq.s32.totalorder %s38, 0
      %p79 = por %p77, %p78
      %s80 = ssub.s32 %s39, %s51
      %p81 = scmp.eq.s32.totalorder %s80, 0
      %s83 = sadd.s32 %s82, 1
      %s84 = scalar_select %p81, %s82, %s83
      %p87 = pneg %p81
      %p88 = scmp.eq.s32.totalorder %s32, 1
      %p89 = por %p87, %p88
      %p90 = scmp.ne.s32.totalorder %s82, %s85
      %p91 = scmp.eq.s32.totalorder %s32, 0
      %p92 = por %p90, %p91
      %p93 = scmp.ne.s32.totalorder %s82, %s85
      %p94 = scmp.eq.s32.totalorder %s37, 1
      %p95 = por %p93, %p94
      %p96 = scmp.ne.s32.totalorder %s85, %s86
      %p97 = scmp.eq.s32.totalorder %s37, 0
      %p98 = por %p96, %p97
      %p99 = scmp.ne.s32.totalorder %s85, %s86
      %p100 = scmp.eq.s32.totalorder %s38, 1
      %p101 = por %p99, %p100
      %p103 = scmp.ne.s32.totalorder %s86, %s102
      %p104 = scmp.eq.s32.totalorder %s38, 0
      %p105 = por %p103, %p104
      %s107 = sadd.s32 %s106, 1
      %p110 = scmp.eq.s32.totalorder %s32, 1
      %p111 = scmp.ne.s32.totalorder %s106, %s108
      %p112 = scmp.eq.s32.totalorder %s32, 0
      %p113 = por %p111, %p112
      %p114 = scmp.ne.s32.totalorder %s106, %s108
      %p115 = scmp.eq.s32.totalorder %s37, 1
      %p116 = por %p114, %p115
      %p117 = scmp.ne.s32.totalorder %s108, %s109
      %p118 = scmp.eq.s32.totalorder %s37, 0
      %p119 = por %p117, %p118
      %p120 = scmp.ne.s32.totalorder %s108, %s109
      %p121 = scmp.eq.s32.totalorder %s38, 1
      %p122 = por %p120, %p121
      %p124 = scmp.ne.s32.totalorder %s109, %s123
      %p125 = scmp.eq.s32.totalorder %s38, 0
      %p126 = por %p124, %p125
      %s128 = sadd.s32 %s127, 1
      %p131 = scmp.eq.s32.totalorder %s32, 1
      %p132 = scmp.ne.s32.totalorder %s127, %s129
      %p133 = scmp.eq.s32.totalorder %s32, 0
      %p134 = por %p132, %p133
      %p135 = scmp.ne.s32.totalorder %s127, %s129
      %p136 = scmp.eq.s32.totalorder %s37, 1
      %p137 = por %p135, %p136
      %p138 = scmp.ne.s32.totalorder %s129, %s130
      %p139 = scmp.eq.s32.totalorder %s37, 0
      %p140 = por %p138, %p139
      %p141 = scmp.ne.s32.totalorder %s129, %s130
      %p142 = scmp.eq.s32.totalorder %s38, 1
      %p143 = por %p141, %p142
      %p145 = scmp.ne.s32.totalorder %s130, %s144
      %p146 = scmp.eq.s32.totalorder %s38, 0
      %p147 = por %p145, %p146
      %s149 = sadd.s32 %s148, 1
      %p152 = scmp.eq.s32.totalorder %s32, 1
      %p153 = scmp.ne.s32.totalorder %s148, %s150
      %p154 = scmp.eq.s32.totalorder %s32, 0
      %p155 = por %p153, %p154
      %p156 = scmp.ne.s32.totalorder %s148, %s150
      %p157 = scmp.eq.s32.totalorder %s37, 1
      %p158 = por %p156, %p157
      %p159 = scmp.ne.s32.totalorder %s150, %s151
      %p160 = scmp.eq.s32.totalorder %s37, 0
      %p161 = por %p159, %p160
      %p162 = scmp.ne.s32.totalorder %s150, %s151
      %p163 = scmp.eq.s32.totalorder %s38, 1
      %p164 = por %p162, %p163
      %p166 = scmp.ne.s32.totalorder %s151, %s165
      %p167 = scmp.eq.s32.totalorder %s38, 0
      %p168 = por %p166, %p167
      %s170 = sadd.s32 %s169, 1
      %p173 = scmp.eq.s32.totalorder %s32, 1
      %p174 = scmp.ne.s32.totalorder %s169, %s171
      %p175 = scmp.eq.s32.totalorder %s32, 0
      %p176 = por %p174, %p175
      %p177 = scmp.ne.s32.totalorder %s169, %s171
      %p178 = scmp.eq.s32.totalorder %s37, 1
      %p179 = por %p177, %p178
      %p180 = scmp.ne.s32.totalorder %s171, %s172
      %p181 = scmp.eq.s32.totalorder %s37, 0
      %p182 = por %p180, %p181
      %p183 = scmp.ne.s32.totalorder %s171, %s172
      %p184 = scmp.eq.s32.totalorder %s38, 1
      %p185 = por %p183, %p184
      %p187 = scmp.ne.s32.totalorder %s172, %s186
      %p188 = scmp.eq.s32.totalorder %s38, 0
      %p189 = por %p187, %p188
      %s191 = sadd.s32 %s190, 1
      %p194 = scmp.eq.s32.totalorder %s32, 1
      %p195 = scmp.ne.s32.totalorder %s190, %s192
      %p196 = scmp.eq.s32.totalorder %s32, 0
      %p197 = por %p195, %p196
      %p198 = scmp.ne.s32.totalorder %s190, %s192
      %p199 = scmp.eq.s32.totalorder %s37, 1
      %p200 = por %p198, %p199
      %p201 = scmp.ne.s32.totalorder %s192, %s193
      %p202 = scmp.eq.s32.totalorder %s37, 0
      %p203 = por %p201, %p202
      %p204 = scmp.ne.s32.totalorder %s192, %s193
      %p205 = scmp.eq.s32.totalorder %s38, 1
      %p206 = por %p204, %p205
      %p208 = scmp.ne.s32.totalorder %s193, %s207
      %p209 = scmp.eq.s32.totalorder %s38, 0
      %p210 = por %p208, %p209
      %s212 = sadd.s32 %s211, 1
      %p215 = scmp.eq.s32.totalorder %s32, 1
      %p216 = scmp.ne.s32.totalorder %s211, %s213
      %p217 = scmp.eq.s32.totalorder %s32, 0
      %p218 = por %p216, %p217
      %p219 = scmp.ne.s32.totalorder %s211, %s213
      %p220 = scmp.eq.s32.totalorder %s37, 1
      %p221 = por %p219, %p220
      %p222 = scmp.ne.s32.totalorder %s213, %s214
      %p223 = scmp.eq.s32.totalorder %s37, 0
      %p224 = por %p222, %p223
      %p225 = scmp.ne.s32.totalorder %s213, %s214
      %p226 = scmp.eq.s32.totalorder %s38, 1
      %p227 = por %p225, %p226
      %p229 = scmp.ne.s32.totalorder %s214, %s228
      %p230 = scmp.eq.s32.totalorder %s38, 0
      %p231 = por %p229, %p230
      %s233 = sadd.s32 %s232, 1
      %p236 = scmp.eq.s32.totalorder %s32, 1
      %p237 = scmp.ne.s32.totalorder %s232, %s234
      %p238 = scmp.eq.s32.totalorder %s32, 0
      %p239 = por %p237, %p238
      %p240 = scmp.ne.s32.totalorder %s232, %s234
      %p241 = scmp.eq.s32.totalorder %s37, 1
      %p242 = por %p240, %p241
      %p243 = scmp.ne.s32.totalorder %s234, %s235
      %p244 = scmp.eq.s32.totalorder %s37, 0
      %p245 = por %p243, %p244
      %p246 = scmp.ne.s32.totalorder %s234, %s235
      %p247 = scmp.eq.s32.totalorder %s38, 1
      %p248 = por %p246, %p247
      %p250 = scmp.ne.s32.totalorder %s235, %s249
      %p251 = scmp.eq.s32.totalorder %s38, 0
      %p252 = por %p250, %p251
      %s254 = sadd.s32 %s253, 1
      %p257 = scmp.eq.s32.totalorder %s32, 1
      %p258 = scmp.ne.s32.totalorder %s253, %s255
      %p259 = scmp.eq.s32.totalorder %s32, 0
      %p260 = por %p258, %p259
      %p261 = scmp.ne.s32.totalorder %s253, %s255
      %p262 = scmp.eq.s32.totalorder %s37, 1
      %p263 = por %p261, %p262
      %p264 = scmp.ne.s32.totalorder %s255, %s256
      %p265 = scmp.eq.s32.totalorder %s37, 0
      %p266 = por %p264, %p265
      %p267 = scmp.ne.s32.totalorder %s255, %s256
      %p268 = scmp.eq.s32.totalorder %s38, 1
      %p269 = por %p267, %p268
      %p271 = scmp.ne.s32.totalorder %s256, %s270
      %p272 = scmp.eq.s32.totalorder %s38, 0
      %p273 = por %p271, %p272
      %s275 = sadd.s32 %s274, 1
      %p278 = scmp.eq.s32.totalorder %s32, 1
      %p279 = scmp.ne.s32.totalorder %s274, %s276
      %p280 = scmp.eq.s32.totalorder %s32, 0
      %p281 = por %p279, %p280
      %p282 = scmp.ne.s32.totalorder %s274, %s276
      %p283 = scmp.eq.s32.totalorder %s37, 1
      %p284 = por %p282, %p283
      %p285 = scmp.ne.s32.totalorder %s276, %s277
      %p286 = scmp.eq.s32.totalorder %s37, 0
      %p287 = por %p285, %p286
      %p288 = scmp.ne.s32.totalorder %s276, %s277
      %p289 = scmp.eq.s32.totalorder %s38, 1
      %p290 = por %p288, %p289
      %p292 = scmp.ne.s32.totalorder %s277, %s291
      %p293 = scmp.eq.s32.totalorder %s38, 0
      %p294 = por %p292, %p293
      %s296 = sadd.s32 %s295, 1
      %p299 = scmp.eq.s32.totalorder %s32, 1
      %p300 = scmp.ne.s32.totalorder %s295, %s297
      %p301 = scmp.eq.s32.totalorder %s32, 0
      %p302 = por %p300, %p301
      %p303 = scmp.ne.s32.totalorder %s295, %s297
      %p304 = scmp.eq.s32.totalorder %s37, 1
      %p305 = por %p303, %p304
      %p306 = scmp.ne.s32.totalorder %s297, %s298
      %p307 = scmp.eq.s32.totalorder %s37, 0
      %p308 = por %p306, %p307
      %p309 = scmp.ne.s32.totalorder %s297, %s298
      %p310 = scmp.eq.s32.totalorder %s38, 1
      %p311 = por %p309, %p310
      %p313 = scmp.ne.s32.totalorder %s298, %s312
      %p314 = scmp.eq.s32.totalorder %s38, 0
      %p315 = por %p313, %p314
      %s317 = sadd.s32 %s316, 1
      %p320 = scmp.eq.s32.totalorder %s32, 1
      %p321 = scmp.ne.s32.totalorder %s316, %s318
      %p322 = scmp.eq.s32.totalorder %s32, 0
      %p323 = por %p321, %p322
      %p324 = scmp.ne.s32.totalorder %s316, %s318
      %p325 = scmp.eq.s32.totalorder %s37, 1
      %p326 = por %p324, %p325
      %p327 = scmp.ne.s32.totalorder %s318, %s319
      %p328 = scmp.eq.s32.totalorder %s37, 0
      %p329 = por %p327, %p328
      %p330 = scmp.ne.s32.totalorder %s318, %s319
      %p331 = scmp.eq.s32.totalorder %s38, 1
      %p332 = por %p330, %p331
      %p334 = scmp.ne.s32.totalorder %s319, %s333
      %p335 = scmp.eq.s32.totalorder %s38, 0
      %p336 = por %p334, %p335
      %s338 = sadd.s32 %s337, 1
      %p341 = scmp.eq.s32.totalorder %s32, 1
      %p342 = scmp.ne.s32.totalorder %s337, %s339
      %p343 = scmp.eq.s32.totalorder %s32, 0
      %p344 = por %p342, %p343
      %p345 = scmp.ne.s32.totalorder %s337, %s339
      %p346 = scmp.eq.s32.totalorder %s37, 1
      %p347 = por %p345, %p346
      %p348 = scmp.ne.s32.totalorder %s339, %s340
      %p349 = scmp.eq.s32.totalorder %s37, 0
      %p350 = por %p348, %p349
      %p351 = scmp.ne.s32.totalorder %s339, %s340
      %p352 = scmp.eq.s32.totalorder %s38, 1
      %p353 = por %p351, %p352
      %p355 = scmp.ne.s32.totalorder %s340, %s354
      %p356 = scmp.eq.s32.totalorder %s38, 0
      %p357 = por %p355, %p356
      %s359 = sadd.s32 %s358, 1
      %p362 = scmp.eq.s32.totalorder %s32, 1
      %p363 = scmp.ne.s32.totalorder %s358, %s360
      %p364 = scmp.eq.s32.totalorder %s32, 0
      %p365 = por %p363, %p364
      %p366 = scmp.ne.s32.totalorder %s358, %s360
      %p367 = scmp.eq.s32.totalorder %s37, 1
      %p368 = por %p366, %p367
      %p369 = scmp.ne.s32.totalorder %s360, %s361
      %p370 = scmp.eq.s32.totalorder %s37, 0
      %p371 = por %p369, %p370
      %p372 = scmp.ne.s32.totalorder %s360, %s361
      %p373 = scmp.eq.s32.totalorder %s38, 1
      %p374 = por %p372, %p373
      %p376 = scmp.ne.s32.totalorder %s361, %s375
      %p377 = scmp.eq.s32.totalorder %s38, 0
      %p378 = por %p376, %p377
      %s380 = sadd.s32 %s379, 1
      %p383 = scmp.eq.s32.totalorder %s32, 1
      %p384 = scmp.ne.s32.totalorder %s379, %s381
      %p385 = scmp.eq.s32.totalorder %s32, 0
      %p386 = por %p384, %p385
      %p387 = scmp.ne.s32.totalorder %s379, %s381
      %p388 = scmp.eq.s32.totalorder %s37, 1
      %p389 = por %p387, %p388
      %p390 = scmp.ne.s32.totalorder %s381, %s382
      %p391 = scmp.eq.s32.totalorder %s37, 0
      %p392 = por %p390, %p391
      %p393 = scmp.ne.s32.totalorder %s381, %s382
      %p394 = scmp.eq.s32.totalorder %s38, 1
      %p395 = por %p393, %p394
      %p397 = scmp.ne.s32.totalorder %s382, %s396
      %p398 = scmp.eq.s32.totalorder %s38, 0
      %p399 = por %p397, %p398
      %s401 = sadd.s32 %s400, 1
      %p404 = scmp.eq.s32.totalorder %s32, 1
      %p405 = scmp.ne.s32.totalorder %s400, %s402
      %p406 = scmp.eq.s32.totalorder %s32, 0
      %p407 = por %p405, %p406
      %p408 = scmp.ne.s32.totalorder %s400, %s402
      %p409 = scmp.eq.s32.totalorder %s37, 1
      %p410 = por %p408, %p409
      %p411 = scmp.ne.s32.totalorder %s402, %s403
      %p412 = scmp.eq.s32.totalorder %s37, 0
      %p413 = por %p411, %p412
      %p414 = scmp.ne.s32.totalorder %s402, %s403
      %p415 = scmp.eq.s32.totalorder %s38, 1
      %p416 = por %p414, %p415
      %p418 = scmp.ne.s32.totalorder %s403, %s417
      %p419 = scmp.eq.s32.totalorder %s38, 0
      %p420 = por %p418, %p419
      %s421 = ssub.s32 %s39, %s51
      %s422 = ssub.s32 %s40, %s47
      %s423 = sor.u32 %s421, %s422
      %p424 = scmp.eq.s32.totalorder %s423, 0
      %s426 = sadd.s32 %s425, 1
      %s427 = scalar_select %p424, %s425, %s426
      %p430 = pneg %p424
      %p431 = scmp.eq.s32.totalorder %s32, 1
      %p432 = por %p430, %p431
      %p433 = scmp.ne.s32.totalorder %s425, %s428
      %p434 = scmp.eq.s32.totalorder %s32, 0
      %p435 = por %p433, %p434
      %p436 = scmp.ne.s32.totalorder %s425, %s428
      %p437 = scmp.eq.s32.totalorder %s37, 1
      %p438 = por %p436, %p437
      %p439 = scmp.ne.s32.totalorder %s428, %s429
      %p440 = scmp.eq.s32.totalorder %s37, 0
      %p441 = por %p439, %p440
      %p442 = scmp.ne.s32.totalorder %s428, %s429
      %p443 = scmp.eq.s32.totalorder %s38, 1
      %p444 = por %p442, %p443
      %p446 = scmp.ne.s32.totalorder %s429, %s445
      %p447 = scmp.eq.s32.totalorder %s38, 0
      %p448 = por %p446, %p447
      %p449 = scmp.le.s32.totalorder 1, %s32
      %p450 = scmp.lt.s32.totalorder %s32, 3
      %p451 = pnand %p449, %p450
      %p452 = pneg %p451
      // Predicated region
      $region9: #{tpu_custom_call.1} parent=5 // pred_check
        _
      $region10: #{tpu_custom_call.1} parent=5 // pred_check_branch
        %454 = sbr.rel (%p451) target = $region12
      $region11: #{tpu_custom_call.1} parent=5 // pred_region
        %s455 = ssub.s32 %s32, 1
        // Predicated region
        $region13: #{tpu_custom_call.1} parent=11 // pred_check
          %p456 = pneg %p119
        $region14: #{tpu_custom_call.1} parent=11 // pred_check_branch
          %458 = sbr.rel (%p456) target = $region16
        $region15: #{tpu_custom_call.1} parent=11 // pred_region
          _
        $region16: #{tpu_custom_call.1} parent=11 // pred_fallthru
          _
        // Predicated region
        $region17: #{tpu_custom_call.1} parent=11 // pred_check
          %p459 = pneg %p140
        $region18: #{tpu_custom_call.1} parent=11 // pred_check_branch
          %461 = sbr.rel (%p459) target = $region20
        $region19: #{tpu_custom_call.1} parent=11 // pred_region
          %s463 = ssub.s32 16, 16
          %464 = vsyncadd [#allocation8], %s463
          %s466 = sshll.u32 [#allocation7], 4
          %s467 = int_to_ptr.vmem [resolvable:$true] %s466
          %469 = dma.hbm_to_vmem [thread:$0]  %s3, 16, %s467, [#allocation8]
        $region20: #{tpu_custom_call.1} parent=11 // pred_fallthru
          _
        // Predicated region
        $region21: #{tpu_custom_call.1} parent=11 // pred_check
          %p470 = pneg %p161
        $region22: #{tpu_custom_call.1} parent=11 // pred_check_branch
          %472 = sbr.rel (%p470) target = $region24
        $region23: #{tpu_custom_call.1} parent=11 // pred_region
          _
        $region24: #{tpu_custom_call.1} parent=11 // pred_fallthru
          _
        // Predicated region
        $region25: #{tpu_custom_call.1} parent=11 // pred_check
          %p473 = pneg %p182
        $region26: #{tpu_custom_call.1} parent=11 // pred_check_branch
          %475 = sbr.rel (%p473) target = $region28
        $region27: #{tpu_custom_call.1} parent=11 // pred_region
          %s477 = ssub.s32 16, 16
          %478 = vsyncadd [#allocation8], %s477
          %s480 = sshll.u32 [#allocation9], 4
          %s481 = int_to_ptr.vmem [resolvable:$true] %s480
          %483 = dma.hbm_to_vmem [thread:$0]  %s5, 16, %s481, [#allocation8]
        $region28: #{tpu_custom_call.1} parent=11 // pred_fallthru
          _
        // Predicated region
        $region29: #{tpu_custom_call.1} parent=11 // pred_check
          %p484 = pneg %p203
        $region30: #{tpu_custom_call.1} parent=11 // pred_check_branch
          %486 = sbr.rel (%p484) target = $region32
        $region31: #{tpu_custom_call.1} parent=11 // pred_region
          %s488 = ssub.s32 256, 256
          %489 = vsyncadd [#allocation11], %s488
          %s490 = sshll.u32 [#allocation10], 4
          %s491 = int_to_ptr.vmem [resolvable:$true] %s490
          %496 = dma.hbm_to_vmem [thread:$0]  %s6, 256, %s491, [#allocation11], 64, 64, 4
        $region32: #{tpu_custom_call.1} parent=11 // pred_fallthru
          _
        // Predicated region
        $region33: #{tpu_custom_call.1} parent=11 // pred_check
          %p497 = pneg %p224
        $region34: #{tpu_custom_call.1} parent=11 // pred_check_branch
          %499 = sbr.rel (%p497) target = $region36
        $region35: #{tpu_custom_call.1} parent=11 // pred_region
          %s501 = ssub.s32 16, 16
          %502 = vsyncadd [#allocation11], %s501
          %s504 = sshll.u32 [#allocation12], 4
          %s505 = int_to_ptr.vmem [resolvable:$true] %s504
          %507 = dma.hbm_to_vmem [thread:$0]  %s7, 16, %s505, [#allocation11]
        $region36: #{tpu_custom_call.1} parent=11 // pred_fallthru
          _
        // Predicated region
        $region37: #{tpu_custom_call.1} parent=11 // pred_check
          %p508 = pneg %p245
        $region38: #{tpu_custom_call.1} parent=11 // pred_check_branch
          %510 = sbr.rel (%p508) target = $region40
        $region39: #{tpu_custom_call.1} parent=11 // pred_region
          %s512 = ssub.s32 256, 256
          %513 = vsyncadd [#allocation14], %s512
          %s514 = sshll.u32 [#allocation13], 4
          %s515 = int_to_ptr.vmem [resolvable:$true] %s514
          %520 = dma.hbm_to_vmem [thread:$0]  %s8, 256, %s515, [#allocation14], 64, 64, 4
        $region40: #{tpu_custom_call.1} parent=11 // pred_fallthru
          _
        // Predicated region
        $region41: #{tpu_custom_call.1} parent=11 // pred_check
          %p521 = pneg %p266
        $region42: #{tpu_custom_call.1} parent=11 // pred_check_branch
          %523 = sbr.rel (%p521) target = $region44
        $region43: #{tpu_custom_call.1} parent=11 // pred_region
          %s525 = ssub.s32 16, 16
          %526 = vsyncadd [#allocation14], %s525
          %s528 = sshll.u32 [#allocation15], 4
          %s529 = int_to_ptr.vmem [resolvable:$true] %s528
          %531 = dma.hbm_to_vmem [thread:$0]  %s9, 16, %s529, [#allocation14]
        $region44: #{tpu_custom_call.1} parent=11 // pred_fallthru
          _
        // Predicated region
        $region45: #{tpu_custom_call.1} parent=11 // pred_check
          %p532 = pneg %p287
        $region46: #{tpu_custom_call.1} parent=11 // pred_check_branch
          %534 = sbr.rel (%p532) target = $region48
        $region47: #{tpu_custom_call.1} parent=11 // pred_region
          _
        $region48: #{tpu_custom_call.1} parent=11 // pred_fallthru
          _
        // Predicated region
        $region49: #{tpu_custom_call.1} parent=11 // pred_check
          %p535 = pneg %p308
        $region50: #{tpu_custom_call.1} parent=11 // pred_check_branch
          %537 = sbr.rel (%p535) target = $region52
        $region51: #{tpu_custom_call.1} parent=11 // pred_region
          _
        $region52: #{tpu_custom_call.1} parent=11 // pred_fallthru
          _
        // Predicated region
        $region53: #{tpu_custom_call.1} parent=11 // pred_check
          %p538 = pneg %p329
        $region54: #{tpu_custom_call.1} parent=11 // pred_check_branch
          %540 = sbr.rel (%p538) target = $region56
        $region55: #{tpu_custom_call.1} parent=11 // pred_region
          _
        $region56: #{tpu_custom_call.1} parent=11 // pred_fallthru
          _
        // Predicated region
        $region57: #{tpu_custom_call.1} parent=11 // pred_check
          %p541 = pneg %p350
        $region58: #{tpu_custom_call.1} parent=11 // pred_check_branch
          %543 = sbr.rel (%p541) target = $region60
        $region59: #{tpu_custom_call.1} parent=11 // pred_region
          _
        $region60: #{tpu_custom_call.1} parent=11 // pred_fallthru
          _
        // Predicated region
        $region61: #{tpu_custom_call.1} parent=11 // pred_check
          %p544 = pneg %p371
        $region62: #{tpu_custom_call.1} parent=11 // pred_check_branch
          %546 = sbr.rel (%p544) target = $region64
        $region63: #{tpu_custom_call.1} parent=11 // pred_region
          _
        $region64: #{tpu_custom_call.1} parent=11 // pred_fallthru
          _
        // Predicated region
        $region65: #{tpu_custom_call.1} parent=11 // pred_check
          %p547 = pneg %p392
        $region66: #{tpu_custom_call.1} parent=11 // pred_check_branch
          %549 = sbr.rel (%p547) target = $region68
        $region67: #{tpu_custom_call.1} parent=11 // pred_region
          _
        $region68: #{tpu_custom_call.1} parent=11 // pred_fallthru
          _
        // Predicated region
        $region69: #{tpu_custom_call.1} parent=11 // pred_check
          %p550 = pneg %p413
        $region70: #{tpu_custom_call.1} parent=11 // pred_check_branch
          %552 = sbr.rel (%p550) target = $region72
        $region71: #{tpu_custom_call.1} parent=11 // pred_region
          _
        $region72: #{tpu_custom_call.1} parent=11 // pred_fallthru
          _
      $region12: #{tpu_custom_call.1} parent=5 // pred_fallthru
        _
      %p553 = scmp.lt.s32.totalorder %s32, 2
      // Predicated region
      $region73: #{tpu_custom_call.1} parent=5 // pred_check
        %p554 = pneg %p553
      $region74: #{tpu_custom_call.1} parent=5 // pred_check_branch
        %556 = sbr.rel (%p554) target = $region76
      $region75: #{tpu_custom_call.1} parent=5 // pred_region
        // Predicated region
        $region77: #{tpu_custom_call.1} parent=75 // pred_check
          %p557 = pneg %p66
        $region78: #{tpu_custom_call.1} parent=75 // pred_check_branch
          %559 = sbr.rel (%p557) target = $region80
        $region79: #{tpu_custom_call.1} parent=75 // pred_region
          %p560 = scmp.lt.s32.totalorder %s39, 1
          %s561 = scalar_select %p560, %s39, 1
          %p562 = scmp.lt.s32.totalorder %s40, 0
          %s563 = scalar_select %p562, %s40, 0
          %s564 = sadd.s32 %s563, %s561
          %s565 = smul.addr %s564, 8
          %s566 = scalar_lea.vmem %s0, %s565
        $region80: #{tpu_custom_call.1} parent=75 // pred_fallthru
          _
        // Predicated region
        $region81: #{tpu_custom_call.1} parent=75 // pred_check
          %p567 = pneg %p92
        $region82: #{tpu_custom_call.1} parent=75 // pred_check_branch
          %569 = sbr.rel (%p567) target = $region84
        $region83: #{tpu_custom_call.1} parent=75 // pred_region
          %s570 = sand.u32 %s82, 1
          %s571 = scalar_lea.sflag [#allocation5], %s570
          %s572 = sand.u32 %s82, 1
          %s573 = smul.addr %s572, 4
          %s574 = scalar_lea.vmem [#allocation4], %s573
          %s576 = ssub.s32 64, 64
          %577 = vsyncadd %s571, %s576
          %s578 = smul.addr %s39, 64
          %s579 = scalar_lea.hbm %s1, %s578
          %s581 = sshll.u32 %s574, 4
          %s582 = int_to_ptr.vmem [resolvable:$true] %s581
          %584 = dma.hbm_to_vmem [thread:$0]  %s579, 64, %s582, %s571
        $region84: #{tpu_custom_call.1} parent=75 // pred_fallthru
          _
      $region76: #{tpu_custom_call.1} parent=5 // pred_fallthru
        _
      %p585 = scmp.le.s32.totalorder 1, %s32
      %p586 = scmp.lt.s32.totalorder %s32, 3
      %p587 = pnand %p585, %p586
      %p588 = pneg %p587
      // Predicated region
      $region85: #{tpu_custom_call.1} parent=5 // pred_check
        _
      $region86: #{tpu_custom_call.1} parent=5 // pred_check_branch
        %590 = sbr.rel (%p587) target = $region88
      $region87: #{tpu_custom_call.1} parent=5 // pred_region
        %s591 = ssub.s32 %s32, 1
        %s592 = sand.u32 %s85, 1
        %s593 = scalar_lea.sflag [#allocation5], %s592
        %s594 = sand.u32 %s85, 1
        %s595 = smul.addr %s594, 4
        %s596 = scalar_lea.vmem [#allocation4], %s595
        // Predicated region
        $region89: #{tpu_custom_call.1} parent=87 // pred_check
          %p597 = pneg %p98
        $region90: #{tpu_custom_call.1} parent=87 // pred_check_branch
          %599 = sbr.rel (%p597) target = $region92
        $region91: #{tpu_custom_call.1} parent=87 // pred_region
          %600 = dma.done %s593, 64
        $region92: #{tpu_custom_call.1} parent=87 // pred_fallthru
          _
        // Predicated region
        $region93: #{tpu_custom_call.1} parent=87 // pred_check
          %p601 = pneg %p140
        $region94: #{tpu_custom_call.1} parent=87 // pred_check_branch
          %603 = sbr.rel (%p601) target = $region96
        $region95: #{tpu_custom_call.1} parent=87 // pred_region
          %604 = dma.done [#allocation8], 16
        $region96: #{tpu_custom_call.1} parent=87 // pred_fallthru
          _
        // Predicated region
        $region97: #{tpu_custom_call.1} parent=87 // pred_check
          %p605 = pneg %p182
        $region98: #{tpu_custom_call.1} parent=87 // pred_check_branch
          %607 = sbr.rel (%p605) target = $region100
        $region99: #{tpu_custom_call.1} parent=87 // pred_region
          %608 = dma.done [#allocation8], 16
        $region100: #{tpu_custom_call.1} parent=87 // pred_fallthru
          _
        // Predicated region
        $region101: #{tpu_custom_call.1} parent=87 // pred_check
          %p609 = pneg %p203
        $region102: #{tpu_custom_call.1} parent=87 // pred_check_branch
          %611 = sbr.rel (%p609) target = $region104
        $region103: #{tpu_custom_call.1} parent=87 // pred_region
          %612 = dma.done [#allocation11], 256
        $region104: #{tpu_custom_call.1} parent=87 // pred_fallthru
          _
        // Predicated region
        $region105: #{tpu_custom_call.1} parent=87 // pred_check
          %p613 = pneg %p224
        $region106: #{tpu_custom_call.1} parent=87 // pred_check_branch
          %615 = sbr.rel (%p613) target = $region108
        $region107: #{tpu_custom_call.1} parent=87 // pred_region
          %616 = dma.done [#allocation11], 16
        $region108: #{tpu_custom_call.1} parent=87 // pred_fallthru
          _
        // Predicated region
        $region109: #{tpu_custom_call.1} parent=87 // pred_check
          %p617 = pneg %p245
        $region110: #{tpu_custom_call.1} parent=87 // pred_check_branch
          %619 = sbr.rel (%p617) target = $region112
        $region111: #{tpu_custom_call.1} parent=87 // pred_region
          %620 = dma.done [#allocation14], 256
        $region112: #{tpu_custom_call.1} parent=87 // pred_fallthru
          _
        // Predicated region
        $region113: #{tpu_custom_call.1} parent=87 // pred_check
          %p621 = pneg %p266
        $region114: #{tpu_custom_call.1} parent=87 // pred_check_branch
          %623 = sbr.rel (%p621) target = $region116
        $region115: #{tpu_custom_call.1} parent=87 // pred_region
          %624 = dma.done [#allocation14], 16
        $region116: #{tpu_custom_call.1} parent=87 // pred_fallthru
          _
        %p625 = scmp.lt.s32.totalorder %s41, 1
        %s626 = scalar_select %p625, %s41, 1
        %p627 = scmp.lt.s32.totalorder %s42, 0
        %s628 = scalar_select %p627, %s42, 0
        %s629 = sadd.s32 %s628, %s626
        %s630 = smul.addr %s629, 8
        %s631 = scalar_lea.vmem %s0, %s630
        %p632 = pneg %p72
        %p633 = pneg %p69
        %s634 = sand.u32 %s85, 1
        %s635 = scalar_lea.sflag [#allocation5], %s634
        %s636 = sand.u32 %s85, 1
        %s637 = smul.addr %s636, 4
        %s638 = scalar_lea.vmem [#allocation4], %s637
        %p639 = pneg %p98
        %p640 = pneg %p95
        %p641 = pneg %p119
        %p642 = pneg %p116
        %p643 = pneg %p140
        %p644 = pneg %p137
        %p645 = pneg %p161
        %p646 = pneg %p158
        %p647 = pneg %p182
        %p648 = pneg %p179
        %p649 = pneg %p203
        %p650 = pneg %p200
        %p651 = pneg %p224
        %p652 = pneg %p221
        %p653 = pneg %p245
        %p654 = pneg %p242
        %p655 = pneg %p266
        %p656 = pneg %p263
        %p657 = pneg %p287
        %p658 = pneg %p284
        %p659 = pneg %p308
        %p660 = pneg %p305
        %p661 = pneg %p329
        %p662 = pneg %p326
        %p663 = pneg %p350
        %p664 = pneg %p347
        %p665 = pneg %p371
        %p666 = pneg %p368
        %p667 = pneg %p392
        %p668 = pneg %p389
        %p669 = pneg %p413
        %p670 = pneg %p410
        %p671 = pneg %p441
        %p672 = pneg %p438
        %s673 = sand.u32 %s428, 1
        %s674 = scalar_lea.sflag [#allocation6], %s673
        %s675 = sand.u32 %s428, 1
        %s676 = smul.addr %s675, 8
        %s677 = scalar_lea.vmem [#allocation16], %s676
        %p678 = scmp.lt.s32.totalorder %s41, 1
        %s679 = scalar_select %p678, %s41, 1
        %p680 = scmp.lt.s32.totalorder %s42, 0
        %s681 = scalar_select %p680, %s42, 0
        %s682 = sadd.s32 %s681, %s679
        %s683 = smul.addr %s682, 8
        %s684 = scalar_lea.vmem %s0, %s683
        %p686 = scmp.eq.s32.totalorder %s42, 0
        // Predicated region
        $region117: #{tpu_custom_call.1} parent=87 // pred_check
          %p687 = pneg %p686
        $region118: #{tpu_custom_call.1} parent=87 // pred_check_branch
          %689 = sbr.rel (%p687) target = $region120
        $region119: #{tpu_custom_call.1} parent=87 // pred_region
          %v690 = vld [vmem:[%s596] sm:$0xf]
          %v691 = vld [vmem:[%s4] sm:$0xf]
          %v692 = vld [vmem:[%s4 + $0x4] sm:$0xf]
          %v693 = vld [vmem:[%s4 + $0x8] sm:$0xf]
          %v694 = vld [vmem:[%s4 + $0xc] sm:$0xf]
          %v695 = vld [vmem:[#allocation9] sm:$0x1]
          %v697 = vlaneseq
          %v698 = vshrl.u32 %v697, 7
          %v699 = vsub.s32 0, %v698
          %v700 = vrot.slane %v695, %v699
          %v706 = vunpack.c.l.b16 %v691
          %v707 = vunpack.c.l.b16 %v692
          %v708 = vunpack.c.l.b16 %v693
          %v709 = vunpack.c.l.b16 %v694
          %v710 = vpack.c.b16 %v707, %v706
          %v711 = vpack.c.b16 %v709, %v708
          %vm714 = vcmask 261120
          %v716 = vsel %vm714, %v690, 0
          %718 = vmatprep.subr.bf16.mxu0 0
          %719 = vmatpush1.bf16.msra.mxu0 0
          %720 = vmatprep.subr.bf16.mxu0 0
          %721 = vmatpush1.bf16.msra.mxu0 0
          %722 = vmatprep.subr.bf16.mxu0 0
          %723 = vmatpush1.bf16.msra.mxu0 0
          %724 = vmatprep.subr.bf16.mxu0 0
          %725 = vmatpush1.bf16.msra.mxu0 0
          %726 = vmatprep.subr.bf16.mxu0 0
          %727 = vmatpush1.bf16.msra.mxu0 0
          %728 = vmatprep.subr.bf16.mxu0 0
          %729 = vmatpush1.bf16.msra.mxu0 0
          %730 = vmatprep.subr.bf16.mxu0 0
          %731 = vmatpush1.bf16.msra.mxu0 %v711
          %732 = vmatprep.subr.bf16.mxu0 0
          %733 = vmatpush1.bf16.msra.mxu0 %v710
          %734 = vmatprep.subr.bf16.mxu0 0
          %735 = vmatpush2.bf16.msra.mxu0 0
          %736 = vmatprep.subr.bf16.mxu0 0
          %737 = vmatpush2.bf16.msra.mxu0 0
          %738 = vmatprep.subr.bf16.mxu0 0
          %739 = vmatpush2.bf16.msra.mxu0 0
          %740 = vmatprep.subr.bf16.mxu0 0
          %741 = vmatpush2.bf16.msra.mxu0 0
          %742 = vmatprep.subr.bf16.mxu0 0
          %743 = vmatpush2.bf16.msra.mxu0 0
          %744 = vmatprep.subr.bf16.mxu0 0
          %745 = vmatpush2.bf16.msra.mxu0 0
          %746 = vmatprep.subr.bf16.mxu0 0
          %747 = vmatpush2.bf16.msra.mxu0 0
          %748 = vmatprep.subr.bf16.mxu0 0
          %749 = vmatpush2.bf16.msra.mxu0 0
          %750 = vmatprep.mubr.bf16.mxu0 0
          %751 = vmatmul.mubr.bf16.gmra.mxu0 %v716
          %v752 = vpop.f32.mrf.mxu0
          %v753 = vadd.f32 %v700, %v752
          %v754 = vpop.f32.mrf.mxu0
          %v755 = vpop.f32.mrf.mxu0
          %v756 = vpop.f32.mrf.mxu0
          %757 = vdwg.mxu0
          %v758 = vld [vmem:[#allocation10] sm:$0xf]
          %v759 = vld [vmem:[#allocation10 + $0x4] sm:$0xf]
          %v760 = vld [vmem:[#allocation10 + $0x8] sm:$0xf]
          %v761 = vld [vmem:[#allocation10 + $0xc] sm:$0xf]
          %v762 = vld [vmem:[#allocation12] sm:$0x1]
          %v764 = vlaneseq
          %v765 = vshrl.u32 %v764, 7
          %v766 = vsub.s32 0, %v765
          %v767 = vrot.slane %v762, %v766
          %v773 = vunpack.c.l.b16 %v758
          %v774 = vunpack.c.l.b16 %v759
          %v775 = vunpack.c.l.b16 %v760
          %v776 = vunpack.c.l.b16 %v761
          %v777 = vpack.c.b16 %v774, %v773
          %v778 = vpack.c.b16 %v776, %v775
          %781 = vmatprep.subr.bf16.mxu0 0
          %782 = vmatpush1.bf16.msra.mxu0 0
          %783 = vmatprep.subr.bf16.mxu0 0
          %784 = vmatpush1.bf16.msra.mxu0 0
          %785 = vmatprep.subr.bf16.mxu0 0
          %786 = vmatpush1.bf16.msra.mxu0 0
          %787 = vmatprep.subr.bf16.mxu0 0
          %788 = vmatpush1.bf16.msra.mxu0 0
          %789 = vmatprep.subr.bf16.mxu0 0
          %790 = vmatpush1.bf16.msra.mxu0 0
          %791 = vmatprep.subr.bf16.mxu0 0
          %792 = vmatpush1.bf16.msra.mxu0 0
          %793 = vmatprep.subr.bf16.mxu0 0
          %794 = vmatpush1.bf16.msra.mxu0 %v778
          %795 = vmatprep.subr.bf16.mxu0 0
          %796 = vmatpush1.bf16.msra.mxu0 %v777
          %797 = vmatprep.subr.bf16.mxu0 0
          %798 = vmatpush2.bf16.msra.mxu0 0
          %799 = vmatprep.subr.bf16.mxu0 0
          %800 = vmatpush2.bf16.msra.mxu0 0
          %801 = vmatprep.subr.bf16.mxu0 0
          %802 = vmatpush2.bf16.msra.mxu0 0
          %803 = vmatprep.subr.bf16.mxu0 0
          %804 = vmatpush2.bf16.msra.mxu0 0
          %805 = vmatprep.subr.bf16.mxu0 0
          %806 = vmatpush2.bf16.msra.mxu0 0
          %807 = vmatprep.subr.bf16.mxu0 0
          %808 = vmatpush2.bf16.msra.mxu0 0
          %809 = vmatprep.subr.bf16.mxu0 0
          %810 = vmatpush2.bf16.msra.mxu0 0
          %811 = vmatprep.subr.bf16.mxu0 0
          %812 = vmatpush2.bf16.msra.mxu0 0
          %813 = vmatprep.mubr.bf16.mxu0 0
          %814 = vmatmul.mubr.bf16.gmra.mxu0 %v716
          %v815 = vpop.f32.mrf.mxu0
          %v816 = vadd.f32 %v767, %v815
          %v817 = vpop.f32.mrf.mxu0
          %v818 = vpop.f32.mrf.mxu0
          %v819 = vpop.f32.mrf.mxu0
          %820 = vdwg.mxu0
          %822 = vrot.lane.b32.xlu0 %v753, 120
          %v823 = vpop.permute.xlu0 %822
          %825 = vrot.lane.b32.xlu0 %v753, 112
          %v826 = vpop.permute.xlu0 %825
          %828 = vrot.lane.b32.xlu0 %v753, 104
          %v829 = vpop.permute.xlu0 %828
          %v831 = vcombine.low %v753, %v826
          %v832 = vcombine.high %v753, %v826
          %v834 = vunpack.c.l.s4 1983009808
          %v835 = vunpack.c.0.s8 %v834
          %v836 = vlaneseq
          %v837 = vshrl.u32 %v836, 7
          %v838 = vsub.s32 %v835, %v837
          %v839 = vrot.slane %v831, %v838
          %v841 = vunpack.c.l.s4 1983009808
          %v842 = vunpack.c.0.s8 %v841
          %v843 = vlaneseq
          %v844 = vshrl.u32 %v843, 7
          %v845 = vsub.s32 %v842, %v844
          %v846 = vrot.slane %v832, %v845
          %v847 = vcombine.low %v823, %v829
          %v848 = vcombine.high %v823, %v829
          %v850 = vunpack.c.l.s4 1983009808
          %v851 = vunpack.c.0.s8 %v850
          %v852 = vlaneseq
          %v853 = vshrl.u32 %v852, 7
          %v854 = vsub.s32 %v851, %v853
          %v855 = vrot.slane %v847, %v854
          %v857 = vunpack.c.l.s4 1983009808
          %v858 = vunpack.c.0.s8 %v857
          %v859 = vlaneseq
          %v860 = vshrl.u32 %v859, 7
          %v861 = vsub.s32 %v858, %v860
          %v862 = vrot.slane %v848, %v861
          %v863 = vcombine.low %v839, %v855
          %v864 = vcombine.high %v839, %v855
          %v866 = vunpack.c.l.s4 1934713408
          %v867 = vunpack.c.0.s8 %v866
          %v868 = vlaneseq
          %v869 = vshrl.u32 %v868, 7
          %v870 = vsub.s32 %v867, %v869
          %v871 = vrot.slane %v863, %v870
          %v873 = vunpack.c.l.s4 1934713408
          %v874 = vunpack.c.0.s8 %v873
          %v875 = vlaneseq
          %v876 = vshrl.u32 %v875, 7
          %v877 = vsub.s32 %v874, %v876
          %v878 = vrot.slane %v864, %v877
          %v879 = vcombine.low %v846, %v862
          %v880 = vcombine.high %v846, %v862
          %v882 = vunpack.c.l.s4 1934713408
          %v883 = vunpack.c.0.s8 %v882
          %v884 = vlaneseq
          %v885 = vshrl.u32 %v884, 7
          %v886 = vsub.s32 %v883, %v885
          %v887 = vrot.slane %v879, %v886
          %v889 = vunpack.c.l.s4 1934713408
          %v890 = vunpack.c.0.s8 %v889
          %v891 = vlaneseq
          %v892 = vshrl.u32 %v891, 7
          %v893 = vsub.s32 %v890, %v892
          %v894 = vrot.slane %v880, %v893
          %v895 = vcombine.high %v871, 0.0
          %v896 = vcombine.high %v878, 0.0
          %v897 = vcombine.high %v887, 0.0
          %v898 = vcombine.high %v894, 0.0
          %v899 = vcombine.low %v871, %v878
          %v901 = vunpack.c.l.s4 1983009808
          %v902 = vunpack.c.0.s8 %v901
          %v903 = vlaneseq
          %v904 = vshrl.u32 %v903, 7
          %v905 = vsub.s32 %v902, %v904
          %v906 = vrot.slane %v899, %v905
          %v907 = vcombine.low %v895, %v896
          %v909 = vunpack.c.l.s4 1983009808
          %v910 = vunpack.c.0.s8 %v909
          %v911 = vlaneseq
          %v912 = vshrl.u32 %v911, 7
          %v913 = vsub.s32 %v910, %v912
          %v914 = vrot.slane %v907, %v913
          %v915 = vcombine.low %v887, %v894
          %v917 = vunpack.c.l.s4 1983009808
          %v918 = vunpack.c.0.s8 %v917
          %v919 = vlaneseq
          %v920 = vshrl.u32 %v919, 7
          %v921 = vsub.s32 %v918, %v920
          %v922 = vrot.slane %v915, %v921
          %v923 = vcombine.low %v897, %v898
          %v925 = vunpack.c.l.s4 1983009808
          %v926 = vunpack.c.0.s8 %v925
          %v927 = vlaneseq
          %v928 = vshrl.u32 %v927, 7
          %v929 = vsub.s32 %v926, %v928
          %v930 = vrot.slane %v923, %v929
          %v931 = vcombine.low %v906, %v914
          %v932 = vcombine.high %v906, %v914
          %v934 = vunpack.c.l.s4 1934713408
          %v935 = vunpack.c.0.s8 %v934
          %v936 = vlaneseq
          %v937 = vshrl.u32 %v936, 7
          %v938 = vsub.s32 %v935, %v937
          %v939 = vrot.slane %v931, %v938
          %v941 = vunpack.c.l.s4 1934713408
          %v942 = vunpack.c.0.s8 %v941
          %v943 = vlaneseq
          %v944 = vshrl.u32 %v943, 7
          %v945 = vsub.s32 %v942, %v944
          %v946 = vrot.slane %v932, %v945
          %v947 = vcombine.low %v922, %v930
          %v948 = vcombine.high %v922, %v930
          %v950 = vunpack.c.l.s4 1934713408
          %v951 = vunpack.c.0.s8 %v950
          %v952 = vlaneseq
          %v953 = vshrl.u32 %v952, 7
          %v954 = vsub.s32 %v951, %v953
          %v955 = vrot.slane %v947, %v954
          %v957 = vunpack.c.l.s4 1934713408
          %v958 = vunpack.c.0.s8 %v957
          %v959 = vlaneseq
          %v960 = vshrl.u32 %v959, 7
          %v961 = vsub.s32 %v958, %v960
          %v962 = vrot.slane %v948, %v961
          %v963 = vcombine.low %v939, %v955
          %v964 = vcombine.high %v939, %v955
          %v965 = vcombine.low %v946, %v962
          %v966 = vcombine.high %v946, %v962
          %v967 = vpack.c.bf16 %v963, %v963
          %v968 = vpack.c.bf16 %v964, %v964
          %v969 = vpack.c.bf16 %v965, %v965
          %v970 = vpack.c.bf16 %v966, %v966
          %vm971 = vcmask 60416
          %972 = vst.msk [vmem:[#allocation2] sm:$0xf] %vm971, %v967
          %973 = vst.msk [vmem:[#allocation2 + $0x4] sm:$0xf] %vm971, %v968
          %974 = vst.msk [vmem:[#allocation2 + $0x8] sm:$0xf] %vm971, %v969
          %975 = vst.msk [vmem:[#allocation2 + $0xc] sm:$0xf] %vm971, %v970
          %977 = vrot.lane.b32.xlu0 %v816, 120
          %v978 = vpop.permute.xlu0 %977
          %980 = vrot.lane.b32.xlu0 %v816, 112
          %v981 = vpop.permute.xlu0 %980
          %983 = vrot.lane.b32.xlu0 %v816, 104
          %v984 = vpop.permute.xlu0 %983
          %v986 = vcombine.low %v816, %v981
          %v987 = vcombine.high %v816, %v981
          %v989 = vunpack.c.l.s4 1983009808
          %v990 = vunpack.c.0.s8 %v989
          %v991 = vlaneseq
          %v992 = vshrl.u32 %v991, 7
          %v993 = vsub.s32 %v990, %v992
          %v994 = vrot.slane %v986, %v993
          %v996 = vunpack.c.l.s4 1983009808
          %v997 = vunpack.c.0.s8 %v996
          %v998 = vlaneseq
          %v999 = vshrl.u32 %v998, 7
          %v1000 = vsub.s32 %v997, %v999
          %v1001 = vrot.slane %v987, %v1000
          %v1002 = vcombine.low %v978, %v984
          %v1003 = vcombine.high %v978, %v984
          %v1005 = vunpack.c.l.s4 1983009808
          %v1006 = vunpack.c.0.s8 %v1005
          %v1007 = vlaneseq
          %v1008 = vshrl.u32 %v1007, 7
          %v1009 = vsub.s32 %v1006, %v1008
          %v1010 = vrot.slane %v1002, %v1009
          %v1012 = vunpack.c.l.s4 1983009808
          %v1013 = vunpack.c.0.s8 %v1012
          %v1014 = vlaneseq
          %v1015 = vshrl.u32 %v1014, 7
          %v1016 = vsub.s32 %v1013, %v1015
          %v1017 = vrot.slane %v1003, %v1016
          %v1018 = vcombine.low %v994, %v1010
          %v1019 = vcombine.high %v994, %v1010
          %v1021 = vunpack.c.l.s4 1934713408
          %v1022 = vunpack.c.0.s8 %v1021
          %v1023 = vlaneseq
          %v1024 = vshrl.u32 %v1023, 7
          %v1025 = vsub.s32 %v1022, %v1024
          %v1026 = vrot.slane %v1018, %v1025
          %v1028 = vunpack.c.l.s4 1934713408
          %v1029 = vunpack.c.0.s8 %v1028
          %v1030 = vlaneseq
          %v1031 = vshrl.u32 %v1030, 7
          %v1032 = vsub.s32 %v1029, %v1031
          %v1033 = vrot.slane %v1019, %v1032
          %v1034 = vcombine.low %v1001, %v1017
          %v1035 = vcombine.high %v1001, %v1017
          %v1037 = vunpack.c.l.s4 1934713408
          %v1038 = vunpack.c.0.s8 %v1037
          %v1039 = vlaneseq
          %v1040 = vshrl.u32 %v1039, 7
          %v1041 = vsub.s32 %v1038, %v1040
          %v1042 = vrot.slane %v1034, %v1041
          %v1044 = vunpack.c.l.s4 1934713408
          %v1045 = vunpack.c.0.s8 %v1044
          %v1046 = vlaneseq
          %v1047 = vshrl.u32 %v1046, 7
          %v1048 = vsub.s32 %v1045, %v1047
          %v1049 = vrot.slane %v1035, %v1048
          %v1050 = vcombine.high %v1026, 0.0
          %v1051 = vcombine.high %v1033, 0.0
          %v1052 = vcombine.high %v1042, 0.0
          %v1053 = vcombine.high %v1049, 0.0
          %v1054 = vcombine.low %v1026, %v1033
          %v1056 = vunpack.c.l.s4 1983009808
          %v1057 = vunpack.c.0.s8 %v1056
          %v1058 = vlaneseq
          %v1059 = vshrl.u32 %v1058, 7
          %v1060 = vsub.s32 %v1057, %v1059
          %v1061 = vrot.slane %v1054, %v1060
          %v1062 = vcombine.low %v1050, %v1051
          %v1064 = vunpack.c.l.s4 1983009808
          %v1065 = vunpack.c.0.s8 %v1064
          %v1066 = vlaneseq
          %v1067 = vshrl.u32 %v1066, 7
          %v1068 = vsub.s32 %v1065, %v1067
          %v1069 = vrot.slane %v1062, %v1068
          %v1070 = vcombine.low %v1042, %v1049
          %v1072 = vunpack.c.l.s4 1983009808
          %v1073 = vunpack.c.0.s8 %v1072
          %v1074 = vlaneseq
          %v1075 = vshrl.u32 %v1074, 7
          %v1076 = vsub.s32 %v1073, %v1075
          %v1077 = vrot.slane %v1070, %v1076
          %v1078 = vcombine.low %v1052, %v1053
          %v1080 = vunpack.c.l.s4 1983009808
          %v1081 = vunpack.c.0.s8 %v1080
          %v1082 = vlaneseq
          %v1083 = vshrl.u32 %v1082, 7
          %v1084 = vsub.s32 %v1081, %v1083
          %v1085 = vrot.slane %v1078, %v1084
          %v1086 = vcombine.low %v1061, %v1069
          %v1087 = vcombine.high %v1061, %v1069
          %v1089 = vunpack.c.l.s4 1934713408
          %v1090 = vunpack.c.0.s8 %v1089
          %v1091 = vlaneseq
          %v1092 = vshrl.u32 %v1091, 7
          %v1093 = vsub.s32 %v1090, %v1092
          %v1094 = vrot.slane %v1086, %v1093
          %v1096 = vunpack.c.l.s4 1934713408
          %v1097 = vunpack.c.0.s8 %v1096
          %v1098 = vlaneseq
          %v1099 = vshrl.u32 %v1098, 7
          %v1100 = vsub.s32 %v1097, %v1099
          %v1101 = vrot.slane %v1087, %v1100
          %v1102 = vcombine.low %v1077, %v1085
          %v1103 = vcombine.high %v1077, %v1085
          %v1105 = vunpack.c.l.s4 1934713408
          %v1106 = vunpack.c.0.s8 %v1105
          %v1107 = vlaneseq
          %v1108 = vshrl.u32 %v1107, 7
          %v1109 = vsub.s32 %v1106, %v1108
          %v1110 = vrot.slane %v1102, %v1109
          %v1112 = vunpack.c.l.s4 1934713408
          %v1113 = vunpack.c.0.s8 %v1112
          %v1114 = vlaneseq
          %v1115 = vshrl.u32 %v1114, 7
          %v1116 = vsub.s32 %v1113, %v1115
          %v1117 = vrot.slane %v1103, %v1116
          %v1118 = vcombine.low %v1094, %v1110
          %v1119 = vcombine.high %v1094, %v1110
          %v1120 = vcombine.low %v1101, %v1117
          %v1121 = vcombine.high %v1101, %v1117
          %v1122 = vpack.c.bf16 %v1118, %v1118
          %v1123 = vpack.c.bf16 %v1119, %v1119
          %v1124 = vpack.c.bf16 %v1120, %v1120
          %v1125 = vpack.c.bf16 %v1121, %v1121
          %1126 = vst.msk [vmem:[#allocation3] sm:$0xf] %vm971, %v1122
          %1127 = vst.msk [vmem:[#allocation3 + $0x4] sm:$0xf] %vm971, %v1123
          %1128 = vst.msk [vmem:[#allocation3 + $0x8] sm:$0xf] %vm971, %v1124
          %1129 = vst.msk [vmem:[#allocation3 + $0xc] sm:$0xf] %vm971, %v1125
        $region120: #{tpu_custom_call.1} parent=87 // pred_fallthru
          _
        %v1130 = vld [vmem:[%s684] sm:$0xff]
        %v1131 = vpack.c.bf16 %v1130, %v1130
        %v1132 = vld [vmem:[%s2] sm:$0xf]
        %v1133 = vld [vmem:[%s2 + $0x4] sm:$0xf]
        %v1134 = vld [vmem:[%s2 + $0x8] sm:$0xf]
        %v1135 = vld [vmem:[%s2 + $0xc] sm:$0xf]
        %v1136 = vld [vmem:[#allocation7] sm:$0x1]
        %v1138 = vlaneseq
        %v1139 = vshrl.u32 %v1138, 7
        %v1140 = vsub.s32 0, %v1139
        %v1141 = vrot.slane %v1136, %v1140
        %v1147 = vunpack.c.l.b16 %v1132
        %v1148 = vunpack.c.l.b16 %v1133
        %v1149 = vunpack.c.l.b16 %v1134
        %v1150 = vunpack.c.l.b16 %v1135
        %v1151 = vpack.c.b16 %v1148, %v1147
        %v1152 = vpack.c.b16 %v1150, %v1149
        %vm1155 = vcmask 261120
        %v1157 = vsel %vm1155, %v1131, 0
        %1159 = vmatprep.subr.bf16.mxu0 0
        %1160 = vmatpush1.bf16.msra.mxu0 0
        %1161 = vmatprep.subr.bf16.mxu0 0
        %1162 = vmatpush1.bf16.msra.mxu0 0
        %1163 = vmatprep.subr.bf16.mxu0 0
        %1164 = vmatpush1.bf16.msra.mxu0 0
        %1165 = vmatprep.subr.bf16.mxu0 0
        %1166 = vmatpush1.bf16.msra.mxu0 0
        %1167 = vmatprep.subr.bf16.mxu0 0
        %1168 = vmatpush1.bf16.msra.mxu0 0
        %1169 = vmatprep.subr.bf16.mxu0 0
        %1170 = vmatpush1.bf16.msra.mxu0 0
        %1171 = vmatprep.subr.bf16.mxu0 0
        %1172 = vmatpush1.bf16.msra.mxu0 %v1152
        %1173 = vmatprep.subr.bf16.mxu0 0
        %1174 = vmatpush1.bf16.msra.mxu0 %v1151
        %1175 = vmatprep.subr.bf16.mxu0 0
        %1176 = vmatpush2.bf16.msra.mxu0 0
        %1177 = vmatprep.subr.bf16.mxu0 0
        %1178 = vmatpush2.bf16.msra.mxu0 0
        %1179 = vmatprep.subr.bf16.mxu0 0
        %1180 = vmatpush2.bf16.msra.mxu0 0
        %1181 = vmatprep.subr.bf16.mxu0 0
        %1182 = vmatpush2.bf16.msra.mxu0 0
        %1183 = vmatprep.subr.bf16.mxu0 0
        %1184 = vmatpush2.bf16.msra.mxu0 0
        %1185 = vmatprep.subr.bf16.mxu0 0
        %1186 = vmatpush2.bf16.msra.mxu0 0
        %1187 = vmatprep.subr.bf16.mxu0 0
        %1188 = vmatpush2.bf16.msra.mxu0 0
        %1189 = vmatprep.subr.bf16.mxu0 0
        %1190 = vmatpush2.bf16.msra.mxu0 0
        %1191 = vmatprep.mubr.bf16.mxu0 0
        %1192 = vmatmul.mubr.bf16.gmra.mxu0 %v1157
        %v1193 = vpop.f32.mrf.mxu0
        %v1194 = vadd.f32 %v1141, %v1193
        %v1195 = vpop.f32.mrf.mxu0
        %v1196 = vpop.f32.mrf.mxu0
        %v1197 = vpop.f32.mrf.mxu0
        %1198 = vdwg.mxu0
        %v1199 = vmul.f32 %v1194, 0.35355338
        %1201 = vrot.lane.b32.xlu0 %v1199, 120
        %v1202 = vpop.permute.xlu0 %1201
        %1204 = vrot.lane.b32.xlu0 %v1199, 112
        %v1205 = vpop.permute.xlu0 %1204
        %1207 = vrot.lane.b32.xlu0 %v1199, 104
        %v1208 = vpop.permute.xlu0 %1207
        %v1210 = vcombine.low %v1199, %v1205
        %v1211 = vcombine.high %v1199, %v1205
        %v1213 = vunpack.c.l.s4 1983009808
        %v1214 = vunpack.c.0.s8 %v1213
        %v1215 = vlaneseq
        %v1216 = vshrl.u32 %v1215, 7
        %v1217 = vsub.s32 %v1214, %v1216
        %v1218 = vrot.slane %v1210, %v1217
        %v1220 = vunpack.c.l.s4 1983009808
        %v1221 = vunpack.c.0.s8 %v1220
        %v1222 = vlaneseq
        %v1223 = vshrl.u32 %v1222, 7
        %v1224 = vsub.s32 %v1221, %v1223
        %v1225 = vrot.slane %v1211, %v1224
        %v1226 = vcombine.low %v1202, %v1208
        %v1227 = vcombine.high %v1202, %v1208
        %v1229 = vunpack.c.l.s4 1983009808
        %v1230 = vunpack.c.0.s8 %v1229
        %v1231 = vlaneseq
        %v1232 = vshrl.u32 %v1231, 7
        %v1233 = vsub.s32 %v1230, %v1232
        %v1234 = vrot.slane %v1226, %v1233
        %v1236 = vunpack.c.l.s4 1983009808
        %v1237 = vunpack.c.0.s8 %v1236
        %v1238 = vlaneseq
        %v1239 = vshrl.u32 %v1238, 7
        %v1240 = vsub.s32 %v1237, %v1239
        %v1241 = vrot.slane %v1227, %v1240
        %v1242 = vcombine.low %v1218, %v1234
        %v1243 = vcombine.high %v1218, %v1234
        %v1245 = vunpack.c.l.s4 1934713408
        %v1246 = vunpack.c.0.s8 %v1245
        %v1247 = vlaneseq
        %v1248 = vshrl.u32 %v1247, 7
        %v1249 = vsub.s32 %v1246, %v1248
        %v1250 = vrot.slane %v1242, %v1249
        %v1252 = vunpack.c.l.s4 1934713408
        %v1253 = vunpack.c.0.s8 %v1252
        %v1254 = vlaneseq
        %v1255 = vshrl.u32 %v1254, 7
        %v1256 = vsub.s32 %v1253, %v1255
        %v1257 = vrot.slane %v1243, %v1256
        %v1258 = vcombine.low %v1225, %v1241
        %v1259 = vcombine.high %v1225, %v1241
        %v1261 = vunpack.c.l.s4 1934713408
        %v1262 = vunpack.c.0.s8 %v1261
        %v1263 = vlaneseq
        %v1264 = vshrl.u32 %v1263, 7
        %v1265 = vsub.s32 %v1262, %v1264
        %v1266 = vrot.slane %v1258, %v1265
        %v1268 = vunpack.c.l.s4 1934713408
        %v1269 = vunpack.c.0.s8 %v1268
        %v1270 = vlaneseq
        %v1271 = vshrl.u32 %v1270, 7
        %v1272 = vsub.s32 %v1269, %v1271
        %v1273 = vrot.slane %v1259, %v1272
        %v1274 = vcombine.high %v1250, 0.0
        %v1275 = vcombine.high %v1257, 0.0
        %v1276 = vcombine.high %v1266, 0.0
        %v1277 = vcombine.high %v1273, 0.0
        %v1278 = vcombine.low %v1250, %v1257
        %v1280 = vunpack.c.l.s4 1983009808
        %v1281 = vunpack.c.0.s8 %v1280
        %v1282 = vlaneseq
        %v1283 = vshrl.u32 %v1282, 7
        %v1284 = vsub.s32 %v1281, %v1283
        %v1285 = vrot.slane %v1278, %v1284
        %v1286 = vcombine.low %v1274, %v1275
        %v1288 = vunpack.c.l.s4 1983009808
        %v1289 = vunpack.c.0.s8 %v1288
        %v1290 = vlaneseq
        %v1291 = vshrl.u32 %v1290, 7
        %v1292 = vsub.s32 %v1289, %v1291
        %v1293 = vrot.slane %v1286, %v1292
        %v1294 = vcombine.low %v1266, %v1273
        %v1296 = vunpack.c.l.s4 1983009808
        %v1297 = vunpack.c.0.s8 %v1296
        %v1298 = vlaneseq
        %v1299 = vshrl.u32 %v1298, 7
        %v1300 = vsub.s32 %v1297, %v1299
        %v1301 = vrot.slane %v1294, %v1300
        %v1302 = vcombine.low %v1276, %v1277
        %v1304 = vunpack.c.l.s4 1983009808
        %v1305 = vunpack.c.0.s8 %v1304
        %v1306 = vlaneseq
        %v1307 = vshrl.u32 %v1306, 7
        %v1308 = vsub.s32 %v1305, %v1307
        %v1309 = vrot.slane %v1302, %v1308
        %v1310 = vcombine.low %v1285, %v1293
        %v1311 = vcombine.high %v1285, %v1293
        %v1313 = vunpack.c.l.s4 1934713408
        %v1314 = vunpack.c.0.s8 %v1313
        %v1315 = vlaneseq
        %v1316 = vshrl.u32 %v1315, 7
        %v1317 = vsub.s32 %v1314, %v1316
        %v1318 = vrot.slane %v1310, %v1317
        %v1320 = vunpack.c.l.s4 1934713408
        %v1321 = vunpack.c.0.s8 %v1320
        %v1322 = vlaneseq
        %v1323 = vshrl.u32 %v1322, 7
        %v1324 = vsub.s32 %v1321, %v1323
        %v1325 = vrot.slane %v1311, %v1324
        %v1326 = vcombine.low %v1301, %v1309
        %v1327 = vcombine.high %v1301, %v1309
        %v1329 = vunpack.c.l.s4 1934713408
        %v1330 = vunpack.c.0.s8 %v1329
        %v1331 = vlaneseq
        %v1332 = vshrl.u32 %v1331, 7
        %v1333 = vsub.s32 %v1330, %v1332
        %v1334 = vrot.slane %v1326, %v1333
        %v1336 = vunpack.c.l.s4 1934713408
        %v1337 = vunpack.c.0.s8 %v1336
        %v1338 = vlaneseq
        %v1339 = vshrl.u32 %v1338, 7
        %v1340 = vsub.s32 %v1337, %v1339
        %v1341 = vrot.slane %v1327, %v1340
        %v1342 = vcombine.low %v1318, %v1334
        %v1343 = vcombine.high %v1318, %v1334
        %v1344 = vcombine.low %v1325, %v1341
        %v1345 = vcombine.high %v1325, %v1341
        %v1346 = vpack.c.bf16 %v1342, %v1342
        %v1347 = vpack.c.bf16 %v1343, %v1343
        %v1348 = vpack.c.bf16 %v1344, %v1344
        %v1349 = vpack.c.bf16 %v1345, %v1345
        %v1350 = vld [vmem:[#allocation2] sm:$0xf]
        %v1351 = vld [vmem:[#allocation2 + $0x4] sm:$0xf]
        %v1352 = vld [vmem:[#allocation2 + $0x8] sm:$0xf]
        %v1353 = vld [vmem:[#allocation2 + $0xc] sm:$0xf]
        %v1354 = vld [vmem:[#allocation3] sm:$0xf]
        %v1355 = vld [vmem:[#allocation3 + $0x4] sm:$0xf]
        %v1356 = vld [vmem:[#allocation3 + $0x8] sm:$0xf]
        %v1357 = vld [vmem:[#allocation3 + $0xc] sm:$0xf]
        %vm1358 = vcmask 64512
        %v1360 = vsel %vm1358, %v1346, 0
        %v1363 = vsel %vm1358, %v1350, 0
        %1365 = vmatprep.subr.bf16.mxu0 0
        %1366 = vmatpush1.bf16.xpose.msra.mxu0 0
        %1367 = vmatprep.subr.bf16.mxu0 0
        %1368 = vmatpush1.bf16.xpose.msra.mxu0 0
        %1369 = vmatprep.subr.bf16.mxu0 0
        %1370 = vmatpush1.bf16.xpose.msra.mxu0 0
        %1371 = vmatprep.subr.bf16.mxu0 0
        %1372 = vmatpush1.bf16.xpose.msra.mxu0 0
        %1373 = vmatprep.subr.bf16.mxu0 0
        %1374 = vmatpush1.bf16.xpose.msra.mxu0 0
        %1375 = vmatprep.subr.bf16.mxu0 0
        %1376 = vmatpush1.bf16.xpose.msra.mxu0 0
        %1377 = vmatprep.subr.bf16.mxu0 0
        %1378 = vmatpush1.bf16.xpose.msra.mxu0 0
        %1379 = vmatprep.subr.bf16.mxu0 0
        %1380 = vmatpush1.bf16.xpose.msra.mxu0 %v1363
        %1381 = vmatprep.subr.bf16.mxu0 0
        %1382 = vmatpush2.bf16.xpose.msra.mxu0 0
        %1383 = vmatprep.subr.bf16.mxu0 0
        %1384 = vmatpush2.bf16.xpose.msra.mxu0 0
        %1385 = vmatprep.subr.bf16.mxu0 0
        %1386 = vmatpush2.bf16.xpose.msra.mxu0 0
        %1387 = vmatprep.subr.bf16.mxu0 0
        %1388 = vmatpush2.bf16.xpose.msra.mxu0 0
        %1389 = vmatprep.subr.bf16.mxu0 0
        %1390 = vmatpush2.bf16.xpose.msra.mxu0 0
        %1391 = vmatprep.subr.bf16.mxu0 0
        %1392 = vmatpush2.bf16.xpose.msra.mxu0 0
        %1393 = vmatprep.subr.bf16.mxu0 0
        %1394 = vmatpush2.bf16.xpose.msra.mxu0 0
        %1395 = vmatprep.subr.bf16.mxu0 0
        %1396 = vmatpush2.bf16.xpose.msra.mxu0 0
        %1397 = vmatprep.mubr.bf16.mxu0 0
        %1398 = vmatmul.mubr.bf16.gmra.mxu0 %v1360
        %v1399 = vpop.f32.mrf.mxu0
        %v1400 = vadd.f32 0.0, %v1399
        %v1401 = vpop.f32.mrf.mxu0
        %v1402 = vpop.f32.mrf.mxu0
        %v1403 = vpop.f32.mrf.mxu0
        %1404 = vdwg.mxu0
        %v1406 = vsel %vm1358, %v1347, 0
        %v1409 = vsel %vm1358, %v1351, 0
        %1411 = vmatprep.subr.bf16.mxu0 0
        %1412 = vmatpush1.bf16.xpose.msra.mxu0 0
        %1413 = vmatprep.subr.bf16.mxu0 0
        %1414 = vmatpush1.bf16.xpose.msra.mxu0 0
        %1415 = vmatprep.subr.bf16.mxu0 0
        %1416 = vmatpush1.bf16.xpose.msra.mxu0 0
        %1417 = vmatprep.subr.bf16.mxu0 0
        %1418 = vmatpush1.bf16.xpose.msra.mxu0 0
        %1419 = vmatprep.subr.bf16.mxu0 0
        %1420 = vmatpush1.bf16.xpose.msra.mxu0 0
        %1421 = vmatprep.subr.bf16.mxu0 0
        %1422 = vmatpush1.bf16.xpose.msra.mxu0 0
        %1423 = vmatprep.subr.bf16.mxu0 0
        %1424 = vmatpush1.bf16.xpose.msra.mxu0 0
        %1425 = vmatprep.subr.bf16.mxu0 0
        %1426 = vmatpush1.bf16.xpose.msra.mxu0 %v1409
        %1427 = vmatprep.subr.bf16.mxu0 0
        %1428 = vmatpush2.bf16.xpose.msra.mxu0 0
        %1429 = vmatprep.subr.bf16.mxu0 0
        %1430 = vmatpush2.bf16.xpose.msra.mxu0 0
        %1431 = vmatprep.subr.bf16.mxu0 0
        %1432 = vmatpush2.bf16.xpose.msra.mxu0 0
        %1433 = vmatprep.subr.bf16.mxu0 0
        %1434 = vmatpush2.bf16.xpose.msra.mxu0 0
        %1435 = vmatprep.subr.bf16.mxu0 0
        %1436 = vmatpush2.bf16.xpose.msra.mxu0 0
        %1437 = vmatprep.subr.bf16.mxu0 0
        %1438 = vmatpush2.bf16.xpose.msra.mxu0 0
        %1439 = vmatprep.subr.bf16.mxu0 0
        %1440 = vmatpush2.bf16.xpose.msra.mxu0 0
        %1441 = vmatprep.subr.bf16.mxu0 0
        %1442 = vmatpush2.bf16.xpose.msra.mxu0 0
        %1443 = vmatprep.mubr.bf16.mxu0 0
        %1444 = vmatmul.mubr.bf16.gmra.mxu0 %v1406
        %v1445 = vpop.f32.mrf.mxu0
        %v1446 = vadd.f32 0.0, %v1445
        %v1447 = vpop.f32.mrf.mxu0
        %v1448 = vpop.f32.mrf.mxu0
        %v1449 = vpop.f32.mrf.mxu0
        %1450 = vdwg.mxu0
        %v1452 = vsel %vm1358, %v1348, 0
        %v1455 = vsel %vm1358, %v1352, 0
        %1457 = vmatprep.subr.bf16.mxu0 0
        %1458 = vmatpush1.bf16.xpose.msra.mxu0 0
        %1459 = vmatprep.subr.bf16.mxu0 0
        %1460 = vmatpush1.bf16.xpose.msra.mxu0 0
        %1461 = vmatprep.subr.bf16.mxu0 0
        %1462 = vmatpush1.bf16.xpose.msra.mxu0 0
        %1463 = vmatprep.subr.bf16.mxu0 0
        %1464 = vmatpush1.bf16.xpose.msra.mxu0 0
        %1465 = vmatprep.subr.bf16.mxu0 0
        %1466 = vmatpush1.bf16.xpose.msra.mxu0 0
        %1467 = vmatprep.subr.bf16.mxu0 0
        %1468 = vmatpush1.bf16.xpose.msra.mxu0 0
        %1469 = vmatprep.subr.bf16.mxu0 0
        %1470 = vmatpush1.bf16.xpose.msra.mxu0 0
        %1471 = vmatprep.subr.bf16.mxu0 0
        %1472 = vmatpush1.bf16.xpose.msra.mxu0 %v1455
        %1473 = vmatprep.subr.bf16.mxu0 0
        %1474 = vmatpush2.bf16.xpose.msra.mxu0 0
        %1475 = vmatprep.subr.bf16.mxu0 0
        %1476 = vmatpush2.bf16.xpose.msra.mxu0 0
        %1477 = vmatprep.subr.bf16.mxu0 0
        %1478 = vmatpush2.bf16.xpose.msra.mxu0 0
        %1479 = vmatprep.subr.bf16.mxu0 0
        %1480 = vmatpush2.bf16.xpose.msra.mxu0 0
        %1481 = vmatprep.subr.bf16.mxu0 0
        %1482 = vmatpush2.bf16.xpose.msra.mxu0 0
        %1483 = vmatprep.subr.bf16.mxu0 0
        %1484 = vmatpush2.bf16.xpose.msra.mxu0 0
        %1485 = vmatprep.subr.bf16.mxu0 0
        %1486 = vmatpush2.bf16.xpose.msra.mxu0 0
        %1487 = vmatprep.subr.bf16.mxu0 0
        %1488 = vmatpush2.bf16.xpose.msra.mxu0 0
        %1489 = vmatprep.mubr.bf16.mxu0 0
        %1490 = vmatmul.mubr.bf16.gmra.mxu0 %v1452
        %v1491 = vpop.f32.mrf.mxu0
        %v1492 = vadd.f32 0.0, %v1491
        %v1493 = vpop.f32.mrf.mxu0
        %v1494 = vpop.f32.mrf.mxu0
        %v1495 = vpop.f32.mrf.mxu0
        %1496 = vdwg.mxu0
        %v1498 = vsel %vm1358, %v1349, 0
        %v1501 = vsel %vm1358, %v1353, 0
        %1503 = vmatprep.subr.bf16.mxu0 0
        %1504 = vmatpush1.bf16.xpose.msra.mxu0 0
        %1505 = vmatprep.subr.bf16.mxu0 0
        %1506 = vmatpush1.bf16.xpose.msra.mxu0 0
        %1507 = vmatprep.subr.bf16.mxu0 0
        %1508 = vmatpush1.bf16.xpose.msra.mxu0 0
        %1509 = vmatprep.subr.bf16.mxu0 0
        %1510 = vmatpush1.bf16.xpose.msra.mxu0 0
        %1511 = vmatprep.subr.bf16.mxu0 0
        %1512 = vmatpush1.bf16.xpose.msra.mxu0 0
        %1513 = vmatprep.subr.bf16.mxu0 0
        %1514 = vmatpush1.bf16.xpose.msra.mxu0 0
        %1515 = vmatprep.subr.bf16.mxu0 0
        %1516 = vmatpush1.bf16.xpose.msra.mxu0 0
        %1517 = vmatprep.subr.bf16.mxu0 0
        %1518 = vmatpush1.bf16.xpose.msra.mxu0 %v1501
        %1519 = vmatprep.subr.bf16.mxu0 0
        %1520 = vmatpush2.bf16.xpose.msra.mxu0 0
        %1521 = vmatprep.subr.bf16.mxu0 0
        %1522 = vmatpush2.bf16.xpose.msra.mxu0 0
        %1523 = vmatprep.subr.bf16.mxu0 0
        %1524 = vmatpush2.bf16.xpose.msra.mxu0 0
        %1525 = vmatprep.subr.bf16.mxu0 0
        %1526 = vmatpush2.bf16.xpose.msra.mxu0 0
        %1527 = vmatprep.subr.bf16.mxu0 0
        %1528 = vmatpush2.bf16.xpose.msra.mxu0 0
        %1529 = vmatprep.subr.bf16.mxu0 0
        %1530 = vmatpush2.bf16.xpose.msra.mxu0 0
        %1531 = vmatprep.subr.bf16.mxu0 0
        %1532 = vmatpush2.bf16.xpose.msra.mxu0 0
        %1533 = vmatprep.subr.bf16.mxu0 0
        %1534 = vmatpush2.bf16.xpose.msra.mxu0 0
        %1535 = vmatprep.mubr.bf16.mxu0 0
        %1536 = vmatmul.mubr.bf16.gmra.mxu0 %v1498
        %v1537 = vpop.f32.mrf.mxu0
        %v1538 = vadd.f32 0.0, %v1537
        %v1539 = vpop.f32.mrf.mxu0
        %v1540 = vpop.f32.mrf.mxu0
        %v1541 = vpop.f32.mrf.mxu0
        %1542 = vdwg.mxu0
        %v1543 = vsel %vm1358, %v1400, -inf
        %1544 = vmax.xlane.f32.xlu0 %v1543
        %v1545 = vpop.xlane.xlu0 %1544
        %v1546 = vsel %vm1358, %v1446, -inf
        %1547 = vmax.xlane.f32.xlu0 %v1546
        %v1548 = vpop.xlane.xlu0 %1547
        %v1549 = vsel %vm1358, %v1492, -inf
        %1550 = vmax.xlane.f32.xlu0 %v1549
        %v1551 = vpop.xlane.xlu0 %1550
        %v1552 = vsel %vm1358, %v1538, -inf
        %1553 = vmax.xlane.f32.xlu0 %v1552
        %v1554 = vpop.xlane.xlu0 %1553
        %v1555 = vsub.f32 -inf, %v1545
        %v1556 = vsub.f32 -inf, %v1548
        %v1557 = vsub.f32 -inf, %v1551
        %v1558 = vsub.f32 -inf, %v1554
        %v1559 = vmul.f32 %v1555, 1.442695
        %v1560 = vpow.pop %v1559
        %v1561 = vmul.f32 %v1556, 1.442695
        %v1562 = vpow.pop %v1561
        %v1563 = vmul.f32 %v1557, 1.442695
        %v1564 = vpow.pop %v1563
        %v1565 = vmul.f32 %v1558, 1.442695
        %v1566 = vpow.pop %v1565
        %v1567 = vsub.f32 %v1400, %v1545
        %v1568 = vsub.f32 %v1446, %v1548
        %v1569 = vsub.f32 %v1492, %v1551
        %v1570 = vsub.f32 %v1538, %v1554
        %v1571 = vmul.f32 %v1567, 1.442695
        %v1572 = vpow.pop %v1571
        %v1573 = vmul.f32 %v1568, 1.442695
        %v1574 = vpow.pop %v1573
        %v1575 = vmul.f32 %v1569, 1.442695
        %v1576 = vpow.pop %v1575
        %v1577 = vmul.f32 %v1570, 1.442695
        %v1578 = vpow.pop %v1577
        %v1579 = vmul.f32 %v1560, 0.0
        %v1580 = vmul.f32 %v1562, 0.0
        %v1581 = vmul.f32 %v1564, 0.0
        %v1582 = vmul.f32 %v1566, 0.0
        %v1583 = vsel %vm1358, %v1572, 0.0
        %1584 = vadd.xlane.f32.xlu0 %v1583
        %v1585 = vpop.xlane.xlu0 %1584
        %v1586 = vsel %vm1358, %v1574, 0.0
        %1587 = vadd.xlane.f32.xlu0 %v1586
        %v1588 = vpop.xlane.xlu0 %1587
        %v1589 = vsel %vm1358, %v1576, 0.0
        %1590 = vadd.xlane.f32.xlu0 %v1589
        %v1591 = vpop.xlane.xlu0 %1590
        %v1592 = vsel %vm1358, %v1578, 0.0
        %1593 = vadd.xlane.f32.xlu0 %v1592
        %v1594 = vpop.xlane.xlu0 %1593
        %v1595 = vadd.f32 %v1579, %v1585
        %v1596 = vadd.f32 %v1580, %v1588
        %v1597 = vadd.f32 %v1581, %v1591
        %v1598 = vadd.f32 %v1582, %v1594
        %v1599 = vpack.c.bf16 %v1572, %v1572
        %v1600 = vpack.c.bf16 %v1574, %v1574
        %v1601 = vpack.c.bf16 %v1576, %v1576
        %v1602 = vpack.c.bf16 %v1578, %v1578
        %v1604 = vsel %vm1358, %v1599, 0
        %vm1606 = vcmask 1043456
        %v1608 = vsel %vm1606, %v1354, 0
        %1610 = vmatprep.subr.bf16.mxu0 0
        %1611 = vmatpush1.bf16.msra.mxu0 0
        %1612 = vmatprep.subr.bf16.mxu0 0
        %1613 = vmatpush1.bf16.msra.mxu0 0
        %1614 = vmatprep.subr.bf16.mxu0 0
        %1615 = vmatpush1.bf16.msra.mxu0 0
        %1616 = vmatprep.subr.bf16.mxu0 0
        %1617 = vmatpush1.bf16.msra.mxu0 0
        %1618 = vmatprep.subr.bf16.mxu0 0
        %1619 = vmatpush1.bf16.msra.mxu0 0
        %1620 = vmatprep.subr.bf16.mxu0 0
        %1621 = vmatpush1.bf16.msra.mxu0 0
        %1622 = vmatprep.subr.bf16.mxu0 0
        %1623 = vmatpush1.bf16.msra.mxu0 0
        %1624 = vmatprep.subr.bf16.mxu0 0
        %1625 = vmatpush1.bf16.msra.mxu0 %v1608
        %1626 = vmatprep.subr.bf16.mxu0 0
        %1627 = vmatpush2.bf16.msra.mxu0 0
        %1628 = vmatprep.subr.bf16.mxu0 0
        %1629 = vmatpush2.bf16.msra.mxu0 0
        %1630 = vmatprep.subr.bf16.mxu0 0
        %1631 = vmatpush2.bf16.msra.mxu0 0
        %1632 = vmatprep.subr.bf16.mxu0 0
        %1633 = vmatpush2.bf16.msra.mxu0 0
        %1634 = vmatprep.subr.bf16.mxu0 0
        %1635 = vmatpush2.bf16.msra.mxu0 0
        %1636 = vmatprep.subr.bf16.mxu0 0
        %1637 = vmatpush2.bf16.msra.mxu0 0
        %1638 = vmatprep.subr.bf16.mxu0 0
        %1639 = vmatpush2.bf16.msra.mxu0 0
        %1640 = vmatprep.subr.bf16.mxu0 0
        %1641 = vmatpush2.bf16.msra.mxu0 0
        %1642 = vmatprep.mubr.bf16.mxu0 0
        %1643 = vmatmul.mubr.bf16.gmra.mxu0 %v1604
        %v1644 = vpop.f32.mrf.mxu0
        %v1645 = vadd.f32 0.0, %v1644
        %v1646 = vpop.f32.mrf.mxu0
        %v1647 = vpop.f32.mrf.mxu0
        %v1648 = vpop.f32.mrf.mxu0
        %1649 = vdwg.mxu0
        %v1651 = vsel %vm1358, %v1600, 0
        %v1654 = vsel %vm1606, %v1355, 0
        %1656 = vmatprep.subr.bf16.mxu0 0
        %1657 = vmatpush1.bf16.msra.mxu0 0
        %1658 = vmatprep.subr.bf16.mxu0 0
        %1659 = vmatpush1.bf16.msra.mxu0 0
        %1660 = vmatprep.subr.bf16.mxu0 0
        %1661 = vmatpush1.bf16.msra.mxu0 0
        %1662 = vmatprep.subr.bf16.mxu0 0
        %1663 = vmatpush1.bf16.msra.mxu0 0
        %1664 = vmatprep.subr.bf16.mxu0 0
        %1665 = vmatpush1.bf16.msra.mxu0 0
        %1666 = vmatprep.subr.bf16.mxu0 0
        %1667 = vmatpush1.bf16.msra.mxu0 0
        %1668 = vmatprep.subr.bf16.mxu0 0
        %1669 = vmatpush1.bf16.msra.mxu0 0
        %1670 = vmatprep.subr.bf16.mxu0 0
        %1671 = vmatpush1.bf16.msra.mxu0 %v1654
        %1672 = vmatprep.subr.bf16.mxu0 0
        %1673 = vmatpush2.bf16.msra.mxu0 0
        %1674 = vmatprep.subr.bf16.mxu0 0
        %1675 = vmatpush2.bf16.msra.mxu0 0
        %1676 = vmatprep.subr.bf16.mxu0 0
        %1677 = vmatpush2.bf16.msra.mxu0 0
        %1678 = vmatprep.subr.bf16.mxu0 0
        %1679 = vmatpush2.bf16.msra.mxu0 0
        %1680 = vmatprep.subr.bf16.mxu0 0
        %1681 = vmatpush2.bf16.msra.mxu0 0
        %1682 = vmatprep.subr.bf16.mxu0 0
        %1683 = vmatpush2.bf16.msra.mxu0 0
        %1684 = vmatprep.subr.bf16.mxu0 0
        %1685 = vmatpush2.bf16.msra.mxu0 0
        %1686 = vmatprep.subr.bf16.mxu0 0
        %1687 = vmatpush2.bf16.msra.mxu0 0
        %1688 = vmatprep.mubr.bf16.mxu0 0
        %1689 = vmatmul.mubr.bf16.gmra.mxu0 %v1651
        %v1690 = vpop.f32.mrf.mxu0
        %v1691 = vadd.f32 0.0, %v1690
        %v1692 = vpop.f32.mrf.mxu0
        %v1693 = vpop.f32.mrf.mxu0
        %v1694 = vpop.f32.mrf.mxu0
        %1695 = vdwg.mxu0
        %v1697 = vsel %vm1358, %v1601, 0
        %v1700 = vsel %vm1606, %v1356, 0
        %1702 = vmatprep.subr.bf16.mxu0 0
        %1703 = vmatpush1.bf16.msra.mxu0 0
        %1704 = vmatprep.subr.bf16.mxu0 0
        %1705 = vmatpush1.bf16.msra.mxu0 0
        %1706 = vmatprep.subr.bf16.mxu0 0
        %1707 = vmatpush1.bf16.msra.mxu0 0
        %1708 = vmatprep.subr.bf16.mxu0 0
        %1709 = vmatpush1.bf16.msra.mxu0 0
        %1710 = vmatprep.subr.bf16.mxu0 0
        %1711 = vmatpush1.bf16.msra.mxu0 0
        %1712 = vmatprep.subr.bf16.mxu0 0
        %1713 = vmatpush1.bf16.msra.mxu0 0
        %1714 = vmatprep.subr.bf16.mxu0 0
        %1715 = vmatpush1.bf16.msra.mxu0 0
        %1716 = vmatprep.subr.bf16.mxu0 0
        %1717 = vmatpush1.bf16.msra.mxu0 %v1700
        %1718 = vmatprep.subr.bf16.mxu0 0
        %1719 = vmatpush2.bf16.msra.mxu0 0
        %1720 = vmatprep.subr.bf16.mxu0 0
        %1721 = vmatpush2.bf16.msra.mxu0 0
        %1722 = vmatprep.subr.bf16.mxu0 0
        %1723 = vmatpush2.bf16.msra.mxu0 0
        %1724 = vmatprep.subr.bf16.mxu0 0
        %1725 = vmatpush2.bf16.msra.mxu0 0
        %1726 = vmatprep.subr.bf16.mxu0 0
        %1727 = vmatpush2.bf16.msra.mxu0 0
        %1728 = vmatprep.subr.bf16.mxu0 0
        %1729 = vmatpush2.bf16.msra.mxu0 0
        %1730 = vmatprep.subr.bf16.mxu0 0
        %1731 = vmatpush2.bf16.msra.mxu0 0
        %1732 = vmatprep.subr.bf16.mxu0 0
        %1733 = vmatpush2.bf16.msra.mxu0 0
        %1734 = vmatprep.mubr.bf16.mxu0 0
        %1735 = vmatmul.mubr.bf16.gmra.mxu0 %v1697
        %v1736 = vpop.f32.mrf.mxu0
        %v1737 = vadd.f32 0.0, %v1736
        %v1738 = vpop.f32.mrf.mxu0
        %v1739 = vpop.f32.mrf.mxu0
        %v1740 = vpop.f32.mrf.mxu0
        %1741 = vdwg.mxu0
        %v1743 = vsel %vm1358, %v1602, 0
        %v1746 = vsel %vm1606, %v1357, 0
        %1748 = vmatprep.subr.bf16.mxu0 0
        %1749 = vmatpush1.bf16.msra.mxu0 0
        %1750 = vmatprep.subr.bf16.mxu0 0
        %1751 = vmatpush1.bf16.msra.mxu0 0
        %1752 = vmatprep.subr.bf16.mxu0 0
        %1753 = vmatpush1.bf16.msra.mxu0 0
        %1754 = vmatprep.subr.bf16.mxu0 0
        %1755 = vmatpush1.bf16.msra.mxu0 0
        %1756 = vmatprep.subr.bf16.mxu0 0
        %1757 = vmatpush1.bf16.msra.mxu0 0
        %1758 = vmatprep.subr.bf16.mxu0 0
        %1759 = vmatpush1.bf16.msra.mxu0 0
        %1760 = vmatprep.subr.bf16.mxu0 0
        %1761 = vmatpush1.bf16.msra.mxu0 0
        %1762 = vmatprep.subr.bf16.mxu0 0
        %1763 = vmatpush1.bf16.msra.mxu0 %v1746
        %1764 = vmatprep.subr.bf16.mxu0 0
        %1765 = vmatpush2.bf16.msra.mxu0 0
        %1766 = vmatprep.subr.bf16.mxu0 0
        %1767 = vmatpush2.bf16.msra.mxu0 0
        %1768 = vmatprep.subr.bf16.mxu0 0
        %1769 = vmatpush2.bf16.msra.mxu0 0
        %1770 = vmatprep.subr.bf16.mxu0 0
        %1771 = vmatpush2.bf16.msra.mxu0 0
        %1772 = vmatprep.subr.bf16.mxu0 0
        %1773 = vmatpush2.bf16.msra.mxu0 0
        %1774 = vmatprep.subr.bf16.mxu0 0
        %1775 = vmatpush2.bf16.msra.mxu0 0
        %1776 = vmatprep.subr.bf16.mxu0 0
        %1777 = vmatpush2.bf16.msra.mxu0 0
        %1778 = vmatprep.subr.bf16.mxu0 0
        %1779 = vmatpush2.bf16.msra.mxu0 0
        %1780 = vmatprep.mubr.bf16.mxu0 0
        %1781 = vmatmul.mubr.bf16.gmra.mxu0 %v1743
        %v1782 = vpop.f32.mrf.mxu0
        %v1783 = vadd.f32 0.0, %v1782
        %v1784 = vpop.f32.mrf.mxu0
        %v1785 = vpop.f32.mrf.mxu0
        %v1786 = vpop.f32.mrf.mxu0
        %1787 = vdwg.mxu0
        %v1788 = vadd.f32 %v1579, %v1645
        %v1789 = vadd.f32 %v1580, %v1691
        %v1790 = vadd.f32 %v1581, %v1737
        %v1791 = vadd.f32 %v1582, %v1783
        %v1792 = vrcp.pop %v1595
        %v1793 = vrcp.pop %v1596
        %v1794 = vrcp.pop %v1597
        %v1795 = vrcp.pop %v1598
        %v1796 = vmul.f32 %v1788, %v1792
        %v1797 = vmul.f32 %v1789, %v1793
        %v1798 = vmul.f32 %v1790, %v1794
        %v1799 = vmul.f32 %v1791, %v1795
        %v1800 = vcombine.low %v1796, %v1798
        %v1801 = vcombine.high %v1796, %v1798
        %v1803 = vunpack.c.l.s4 1983009808
        %v1804 = vunpack.c.0.s8 %v1803
        %v1805 = vlaneseq
        %v1806 = vshrl.u32 %v1805, 7
        %v1807 = vsub.s32 %v1804, %v1806
        %v1808 = vrot.slane %v1800, %v1807
        %v1810 = vunpack.c.l.s4 1983009808
        %v1811 = vunpack.c.0.s8 %v1810
        %v1812 = vlaneseq
        %v1813 = vshrl.u32 %v1812, 7
        %v1814 = vsub.s32 %v1811, %v1813
        %v1815 = vrot.slane %v1801, %v1814
        %v1816 = vcombine.low %v1797, %v1799
        %v1817 = vcombine.high %v1797, %v1799
        %v1819 = vunpack.c.l.s4 1983009808
        %v1820 = vunpack.c.0.s8 %v1819
        %v1821 = vlaneseq
        %v1822 = vshrl.u32 %v1821, 7
        %v1823 = vsub.s32 %v1820, %v1822
        %v1824 = vrot.slane %v1816, %v1823
        %v1826 = vunpack.c.l.s4 1983009808
        %v1827 = vunpack.c.0.s8 %v1826
        %v1828 = vlaneseq
        %v1829 = vshrl.u32 %v1828, 7
        %v1830 = vsub.s32 %v1827, %v1829
        %v1831 = vrot.slane %v1817, %v1830
        %v1832 = vcombine.low %v1808, %v1824
        %v1833 = vcombine.high %v1808, %v1824
        %v1835 = vunpack.c.l.s4 1934713408
        %v1836 = vunpack.c.0.s8 %v1835
        %v1837 = vlaneseq
        %v1838 = vshrl.u32 %v1837, 7
        %v1839 = vsub.s32 %v1836, %v1838
        %v1840 = vrot.slane %v1832, %v1839
        %v1842 = vunpack.c.l.s4 1934713408
        %v1843 = vunpack.c.0.s8 %v1842
        %v1844 = vlaneseq
        %v1845 = vshrl.u32 %v1844, 7
        %v1846 = vsub.s32 %v1843, %v1845
        %v1847 = vrot.slane %v1833, %v1846
        %v1848 = vcombine.low %v1815, %v1831
        %v1849 = vcombine.high %v1815, %v1831
        %v1851 = vunpack.c.l.s4 1934713408
        %v1852 = vunpack.c.0.s8 %v1851
        %v1853 = vlaneseq
        %v1854 = vshrl.u32 %v1853, 7
        %v1855 = vsub.s32 %v1852, %v1854
        %v1856 = vrot.slane %v1848, %v1855
        %v1858 = vunpack.c.l.s4 1934713408
        %v1859 = vunpack.c.0.s8 %v1858
        %v1860 = vlaneseq
        %v1861 = vshrl.u32 %v1860, 7
        %v1862 = vsub.s32 %v1859, %v1861
        %v1863 = vrot.slane %v1849, %v1862
        %v1864 = vcombine.high %v1840, 0.0
        %v1865 = vcombine.high %v1847, 0.0
        %v1866 = vcombine.high %v1856, 0.0
        %v1867 = vcombine.high %v1863, 0.0
        %v1868 = vcombine.low %v1840, %v1847
        %v1870 = vunpack.c.l.s4 1983009808
        %v1871 = vunpack.c.0.s8 %v1870
        %v1872 = vlaneseq
        %v1873 = vshrl.u32 %v1872, 7
        %v1874 = vsub.s32 %v1871, %v1873
        %v1875 = vrot.slane %v1868, %v1874
        %v1876 = vcombine.low %v1864, %v1865
        %v1878 = vunpack.c.l.s4 1983009808
        %v1879 = vunpack.c.0.s8 %v1878
        %v1880 = vlaneseq
        %v1881 = vshrl.u32 %v1880, 7
        %v1882 = vsub.s32 %v1879, %v1881
        %v1883 = vrot.slane %v1876, %v1882
        %v1884 = vcombine.low %v1856, %v1863
        %v1886 = vunpack.c.l.s4 1983009808
        %v1887 = vunpack.c.0.s8 %v1886
        %v1888 = vlaneseq
        %v1889 = vshrl.u32 %v1888, 7
        %v1890 = vsub.s32 %v1887, %v1889
        %v1891 = vrot.slane %v1884, %v1890
        %v1892 = vcombine.low %v1866, %v1867
        %v1894 = vunpack.c.l.s4 1983009808
        %v1895 = vunpack.c.0.s8 %v1894
        %v1896 = vlaneseq
        %v1897 = vshrl.u32 %v1896, 7
        %v1898 = vsub.s32 %v1895, %v1897
        %v1899 = vrot.slane %v1892, %v1898
        %v1900 = vcombine.low %v1875, %v1883
        %v1901 = vcombine.high %v1875, %v1883
        %v1903 = vunpack.c.l.s4 1934713408
        %v1904 = vunpack.c.0.s8 %v1903
        %v1905 = vlaneseq
        %v1906 = vshrl.u32 %v1905, 7
        %v1907 = vsub.s32 %v1904, %v1906
        %v1908 = vrot.slane %v1900, %v1907
        %v1910 = vunpack.c.l.s4 1934713408
        %v1911 = vunpack.c.0.s8 %v1910
        %v1912 = vlaneseq
        %v1913 = vshrl.u32 %v1912, 7
        %v1914 = vsub.s32 %v1911, %v1913
        %v1915 = vrot.slane %v1901, %v1914
        %v1916 = vcombine.low %v1891, %v1899
        %v1917 = vcombine.high %v1891, %v1899
        %v1919 = vunpack.c.l.s4 1934713408
        %v1920 = vunpack.c.0.s8 %v1919
        %v1921 = vlaneseq
        %v1922 = vshrl.u32 %v1921, 7
        %v1923 = vsub.s32 %v1920, %v1922
        %v1924 = vrot.slane %v1916, %v1923
        %v1926 = vunpack.c.l.s4 1934713408
        %v1927 = vunpack.c.0.s8 %v1926
        %v1928 = vlaneseq
        %v1929 = vshrl.u32 %v1928, 7
        %v1930 = vsub.s32 %v1927, %v1929
        %v1931 = vrot.slane %v1917, %v1930
        %v1932 = vcombine.low %v1908, %v1924
        %v1933 = vcombine.high %v1908, %v1924
        %v1934 = vcombine.low %v1915, %v1931
        %v1935 = vcombine.high %v1915, %v1931
        %1937 = vrot.lane.b32.xlu0 %v1933, 8
        %v1938 = vpop.permute.xlu0 %1937
        %1941 = vrot.lane.b32.xlu0 %v1934, 16
        %v1942 = vpop.permute.xlu0 %1941
        %1945 = vrot.lane.b32.xlu0 %v1935, 24
        %v1946 = vpop.permute.xlu0 %1945
        %v1948 = vsel %vm1358, %v1932, %v1938
        %vm1949 = vcmask 130048
        %v1950 = vsel %vm1949, %v1948, %v1942
        %vm1951 = vcmask 195584
        %v1952 = vsel %vm1951, %v1950, %v1946
        %v1953 = vpack.c.bf16 %v1952, %v1952
        %v1954 = vld [vmem:[#allocation13] sm:$0xf]
        %v1955 = vld [vmem:[#allocation13 + $0x4] sm:$0xf]
        %v1956 = vld [vmem:[#allocation13 + $0x8] sm:$0xf]
        %v1957 = vld [vmem:[#allocation13 + $0xc] sm:$0xf]
        %v1962 = vunpack.c.l.b16 %v1954
        %v1963 = vunpack.c.l.b16 %v1955
        %v1964 = vunpack.c.l.b16 %v1956
        %v1965 = vunpack.c.l.b16 %v1957
        %v1966 = vpack.c.b16 %v1963, %v1962
        %v1967 = vpack.c.b16 %v1965, %v1964
        %v1971 = vsel %vm1155, %v1953, 0
        %1973 = vmatprep.subr.bf16.mxu0 0
        %1974 = vmatpush1.bf16.msra.mxu0 0
        %1975 = vmatprep.subr.bf16.mxu0 0
        %1976 = vmatpush1.bf16.msra.mxu0 0
        %1977 = vmatprep.subr.bf16.mxu0 0
        %1978 = vmatpush1.bf16.msra.mxu0 0
        %1979 = vmatprep.subr.bf16.mxu0 0
        %1980 = vmatpush1.bf16.msra.mxu0 0
        %1981 = vmatprep.subr.bf16.mxu0 0
        %1982 = vmatpush1.bf16.msra.mxu0 0
        %1983 = vmatprep.subr.bf16.mxu0 0
        %1984 = vmatpush1.bf16.msra.mxu0 0
        %1985 = vmatprep.subr.bf16.mxu0 0
        %1986 = vmatpush1.bf16.msra.mxu0 %v1967
        %1987 = vmatprep.subr.bf16.mxu0 0
        %1988 = vmatpush1.bf16.msra.mxu0 %v1966
        %1989 = vmatprep.subr.bf16.mxu0 0
        %1990 = vmatpush2.bf16.msra.mxu0 0
        %1991 = vmatprep.subr.bf16.mxu0 0
        %1992 = vmatpush2.bf16.msra.mxu0 0
        %1993 = vmatprep.subr.bf16.mxu0 0
        %1994 = vmatpush2.bf16.msra.mxu0 0
        %1995 = vmatprep.subr.bf16.mxu0 0
        %1996 = vmatpush2.bf16.msra.mxu0 0
        %1997 = vmatprep.subr.bf16.mxu0 0
        %1998 = vmatpush2.bf16.msra.mxu0 0
        %1999 = vmatprep.subr.bf16.mxu0 0
        %2000 = vmatpush2.bf16.msra.mxu0 0
        %2001 = vmatprep.subr.bf16.mxu0 0
        %2002 = vmatpush2.bf16.msra.mxu0 0
        %2003 = vmatprep.subr.bf16.mxu0 0
        %2004 = vmatpush2.bf16.msra.mxu0 0
        %2005 = vmatprep.mubr.bf16.mxu0 0
        %2006 = vmatmul.mubr.bf16.gmra.mxu0 %v1971
        %v2007 = vpop.f32.mrf.mxu0
        %v2008 = vadd.f32 %v1130, %v2007
        %v2009 = vpop.f32.mrf.mxu0
        %v2010 = vpop.f32.mrf.mxu0
        %v2011 = vpop.f32.mrf.mxu0
        %2012 = vdwg.mxu0
        %v2013 = vld [vmem:[#allocation15] sm:$0x1]
        %v2014 = vld [vmem:[%s10] sm:$0x1]
        %v2015 = vsel %vm1155, %v2008, 0.0
        %2016 = vadd.xlane.f32.xlu0 %v2015
        %v2017 = vpop.xlane.xlu0 %2016
        %v2018 = vrcp.pop 32.0
        %v2019 = vmul.f32 %v2017, %v2018
        %v2020 = vsub.f32 %v2008, %v2019
        %v2021 = vmul.f32 %v2020, %v2020
        %v2022 = vsel %vm1155, %v2021, 0.0
        %2023 = vadd.xlane.f32.xlu0 %v2022
        %v2024 = vpop.xlane.xlu0 %2023
        %v2025 = vmul.f32 %v2024, %v2018
        %v2026 = vadd.f32 %v2025, 1e-05
        %v2027 = vrsqrt.pop %v2026
        %v2028 = vmul.f32 %v2020, %v2027
        %v2030 = vlaneseq
        %v2031 = vshrl.u32 %v2030, 7
        %v2032 = vsub.s32 0, %v2031
        %v2033 = vrot.slane %v2013, %v2032
        %v2035 = vmul.f32 %v2028, %v2033
        %v2037 = vlaneseq
        %v2038 = vshrl.u32 %v2037, 7
        %v2039 = vsub.s32 0, %v2038
        %v2040 = vrot.slane %v2014, %v2039
        %v2042 = vadd.f32 %v2035, %v2040
        %v2043 = vpack.c.bf16 %v2042, %v2042
        %v2044 = vld [vmem:[%s11] sm:$0xf]
        %v2045 = vld [vmem:[%s11 + $0x4] sm:$0xf]
        %v2046 = vld [vmem:[%s11 + $0x8] sm:$0xf]
        %v2047 = vld [vmem:[%s11 + $0xc] sm:$0xf]
        %v2048 = vld [vmem:[%s12] sm:$0x1]
        %v2050 = vlaneseq
        %v2051 = vshrl.u32 %v2050, 7
        %v2052 = vsub.s32 0, %v2051
        %v2053 = vrot.slane %v2048, %v2052
        %v2059 = vunpack.c.l.b16 %v2044
        %v2060 = vunpack.c.l.b16 %v2045
        %v2061 = vunpack.c.l.b16 %v2046
        %v2062 = vunpack.c.l.b16 %v2047
        %v2063 = vpack.c.b16 %v2060, %v2059
        %v2064 = vpack.c.b16 %v2062, %v2061
        %v2068 = vsel %vm1155, %v2043, 0
        %2070 = vmatprep.subr.bf16.mxu0 0
        %2071 = vmatpush1.bf16.msra.mxu0 0
        %2072 = vmatprep.subr.bf16.mxu0 0
        %2073 = vmatpush1.bf16.msra.mxu0 0
        %2074 = vmatprep.subr.bf16.mxu0 0
        %2075 = vmatpush1.bf16.msra.mxu0 0
        %2076 = vmatprep.subr.bf16.mxu0 0
        %2077 = vmatpush1.bf16.msra.mxu0 0
        %2078 = vmatprep.subr.bf16.mxu0 0
        %2079 = vmatpush1.bf16.msra.mxu0 0
        %2080 = vmatprep.subr.bf16.mxu0 0
        %2081 = vmatpush1.bf16.msra.mxu0 0
        %2082 = vmatprep.subr.bf16.mxu0 0
        %2083 = vmatpush1.bf16.msra.mxu0 %v2064
        %2084 = vmatprep.subr.bf16.mxu0 0
        %2085 = vmatpush1.bf16.msra.mxu0 %v2063
        %2086 = vmatprep.subr.bf16.mxu0 0
        %2087 = vmatpush2.bf16.msra.mxu0 0
        %2088 = vmatprep.subr.bf16.mxu0 0
        %2089 = vmatpush2.bf16.msra.mxu0 0
        %2090 = vmatprep.subr.bf16.mxu0 0
        %2091 = vmatpush2.bf16.msra.mxu0 0
        %2092 = vmatprep.subr.bf16.mxu0 0
        %2093 = vmatpush2.bf16.msra.mxu0 0
        %2094 = vmatprep.subr.bf16.mxu0 0
        %2095 = vmatpush2.bf16.msra.mxu0 0
        %2096 = vmatprep.subr.bf16.mxu0 0
        %2097 = vmatpush2.bf16.msra.mxu0 0
        %2098 = vmatprep.subr.bf16.mxu0 0
        %2099 = vmatpush2.bf16.msra.mxu0 0
        %2100 = vmatprep.subr.bf16.mxu0 0
        %2101 = vmatpush2.bf16.msra.mxu0 0
        %2102 = vmatprep.mubr.bf16.mxu0 0
        %2103 = vmatmul.mubr.bf16.gmra.mxu0 %v2068
        %v2104 = vpop.f32.mrf.mxu0
        %v2105 = vadd.f32 %v2053, %v2104
        %v2106 = vpop.f32.mrf.mxu0
        %v2107 = vpop.f32.mrf.mxu0
        %v2108 = vpop.f32.mrf.mxu0
        %2109 = vdwg.mxu0
        %v2110 = vmax.f32 %v2105, 0.0
        %v2111 = vpack.c.bf16 %v2110, %v2110
        %v2112 = vld [vmem:[%s13] sm:$0xf]
        %v2113 = vld [vmem:[%s13 + $0x4] sm:$0xf]
        %v2114 = vld [vmem:[%s13 + $0x8] sm:$0xf]
        %v2115 = vld [vmem:[%s13 + $0xc] sm:$0xf]
        %v2116 = vld [vmem:[%s13 + $0x10] sm:$0xf]
        %v2117 = vld [vmem:[%s13 + $0x14] sm:$0xf]
        %v2118 = vld [vmem:[%s13 + $0x18] sm:$0xf]
        %v2119 = vld [vmem:[%s13 + $0x1c] sm:$0xf]
        %v2120 = vld [vmem:[%s14] sm:$0x1]
        %v2122 = vlaneseq
        %v2123 = vshrl.u32 %v2122, 7
        %v2124 = vsub.s32 0, %v2123
        %v2125 = vrot.slane %v2120, %v2124
        %v2135 = vunpack.c.l.b16 %v2112
        %v2136 = vunpack.c.l.b16 %v2113
        %v2137 = vunpack.c.l.b16 %v2114
        %v2138 = vunpack.c.l.b16 %v2115
        %v2139 = vunpack.c.l.b16 %v2116
        %v2140 = vunpack.c.l.b16 %v2117
        %v2141 = vunpack.c.l.b16 %v2118
        %v2142 = vunpack.c.l.b16 %v2119
        %v2143 = vpack.c.b16 %v2136, %v2135
        %v2144 = vpack.c.b16 %v2138, %v2137
        %v2145 = vpack.c.b16 %v2140, %v2139
        %v2146 = vpack.c.b16 %v2142, %v2141
        %vm2151 = vcmask 523264
        %v2153 = vsel %vm2151, %v2111, 0
        %2155 = vmatprep.subr.bf16.mxu0 0
        %2156 = vmatpush1.bf16.msra.mxu0 0
        %2157 = vmatprep.subr.bf16.mxu0 0
        %2158 = vmatpush1.bf16.msra.mxu0 0
        %2159 = vmatprep.subr.bf16.mxu0 0
        %2160 = vmatpush1.bf16.msra.mxu0 0
        %2161 = vmatprep.subr.bf16.mxu0 0
        %2162 = vmatpush1.bf16.msra.mxu0 0
        %2163 = vmatprep.subr.bf16.mxu0 0
        %2164 = vmatpush1.bf16.msra.mxu0 %v2146
        %2165 = vmatprep.subr.bf16.mxu0 0
        %2166 = vmatpush1.bf16.msra.mxu0 %v2145
        %2167 = vmatprep.subr.bf16.mxu0 0
        %2168 = vmatpush1.bf16.msra.mxu0 %v2144
        %2169 = vmatprep.subr.bf16.mxu0 0
        %2170 = vmatpush1.bf16.msra.mxu0 %v2143
        %2171 = vmatprep.subr.bf16.mxu0 0
        %2172 = vmatpush2.bf16.msra.mxu0 0
        %2173 = vmatprep.subr.bf16.mxu0 0
        %2174 = vmatpush2.bf16.msra.mxu0 0
        %2175 = vmatprep.subr.bf16.mxu0 0
        %2176 = vmatpush2.bf16.msra.mxu0 0
        %2177 = vmatprep.subr.bf16.mxu0 0
        %2178 = vmatpush2.bf16.msra.mxu0 0
        %2179 = vmatprep.subr.bf16.mxu0 0
        %2180 = vmatpush2.bf16.msra.mxu0 0
        %2181 = vmatprep.subr.bf16.mxu0 0
        %2182 = vmatpush2.bf16.msra.mxu0 0
        %2183 = vmatprep.subr.bf16.mxu0 0
        %2184 = vmatpush2.bf16.msra.mxu0 0
        %2185 = vmatprep.subr.bf16.mxu0 0
        %2186 = vmatpush2.bf16.msra.mxu0 0
        %2187 = vmatprep.mubr.bf16.mxu0 0
        %2188 = vmatmul.mubr.bf16.gmra.mxu0 %v2153
        %v2189 = vpop.f32.mrf.mxu0
        %v2190 = vadd.f32 %v2125, %v2189
        %v2191 = vpop.f32.mrf.mxu0
        %v2192 = vpop.f32.mrf.mxu0
        %v2193 = vpop.f32.mrf.mxu0
        %2194 = vdwg.mxu0
        %v2195 = vadd.f32 %v2190, %v2042
        %v2196 = vld [vmem:[%s15] sm:$0x1]
        %v2197 = vld [vmem:[%s16] sm:$0x1]
        %v2198 = vsel %vm1155, %v2195, 0.0
        %2199 = vadd.xlane.f32.xlu0 %v2198
        %v2200 = vpop.xlane.xlu0 %2199
        %v2201 = vmul.f32 %v2200, %v2018
        %v2202 = vsub.f32 %v2195, %v2201
        %v2203 = vmul.f32 %v2202, %v2202
        %v2204 = vsel %vm1155, %v2203, 0.0
        %2205 = vadd.xlane.f32.xlu0 %v2204
        %v2206 = vpop.xlane.xlu0 %2205
        %v2207 = vmul.f32 %v2206, %v2018
        %v2208 = vadd.f32 %v2207, 1e-05
        %v2209 = vrsqrt.pop %v2208
        %v2210 = vmul.f32 %v2202, %v2209
        %v2212 = vlaneseq
        %v2213 = vshrl.u32 %v2212, 7
        %v2214 = vsub.s32 0, %v2213
        %v2215 = vrot.slane %v2196, %v2214
        %v2217 = vmul.f32 %v2210, %v2215
        %v2219 = vlaneseq
        %v2220 = vshrl.u32 %v2219, 7
        %v2221 = vsub.s32 0, %v2220
        %v2222 = vrot.slane %v2197, %v2221
        %v2224 = vadd.f32 %v2217, %v2222
        %2225 = vst.msk [vmem:[%s677] sm:$0xff] %vm1155, %v2224
        %s2226 = sand.u32 %s428, 1
        %s2227 = scalar_lea.sflag [#allocation6], %s2226
        %s2228 = sand.u32 %s428, 1
        %s2229 = smul.addr %s2228, 8
        %s2230 = scalar_lea.vmem [#allocation16], %s2229
        // Predicated region
        $region121: #{tpu_custom_call.1} parent=87 // pred_check
          %p2231 = pneg %p438
        $region122: #{tpu_custom_call.1} parent=87 // pred_check_branch
          %2233 = sbr.rel (%p2231) target = $region124
        $region123: #{tpu_custom_call.1} parent=87 // pred_region
          %s2235 = ssub.s32 128, 128
          %2236 = vsyncadd %s2227, %s2235
          %s2237 = sadd.s32 %s42, %s41
          %s2238 = smul.addr %s2237, 128
          %s2239 = scalar_lea.hbm %s17, %s2238
          %s2241 = sshll.u32 %s2230, 4
          %s2242 = int_to_ptr.vmem [resolvable:$true] %s2241
          %2244 = dma.vmem_to_hbm [thread:$0]  %s2242, 128, %s2239, %s2227
        $region124: #{tpu_custom_call.1} parent=87 // pred_fallthru
          _
      $region88: #{tpu_custom_call.1} parent=5 // pred_fallthru
        _
      %p2245 = scmp.le.s32.totalorder 2, %s32
      // Predicated region
      $region125: #{tpu_custom_call.1} parent=5 // pred_check
        %p2246 = pneg %p2245
      $region126: #{tpu_custom_call.1} parent=5 // pred_check_branch
        %2248 = sbr.rel (%p2246) target = $region128
      $region127: #{tpu_custom_call.1} parent=5 // pred_region
        %s2249 = ssub.s32 %s32, 2
        // Predicated region
        $region129: #{tpu_custom_call.1} parent=127 // pred_check
          %p2250 = pneg %p444
        $region130: #{tpu_custom_call.1} parent=127 // pred_check_branch
          %2252 = sbr.rel (%p2250) target = $region132
        $region131: #{tpu_custom_call.1} parent=127 // pred_region
          %s2253 = sand.u32 %s429, 1
          %s2254 = scalar_lea.sflag [#allocation6], %s2253
          %s2255 = sand.u32 %s429, 1
          %s2256 = smul.addr %s2255, 8
          %s2257 = scalar_lea.vmem [#allocation16], %s2256
          %2258 = dma.done %s2254, 128
        $region132: #{tpu_custom_call.1} parent=127 // pred_fallthru
          _
      $region128: #{tpu_custom_call.1} parent=5 // pred_fallthru
        _
    $region6: #{tpu_custom_call.1} parent=1 // loop_footer
      %s36 = sadd.s32 1, %s32
    $region7: #{tpu_custom_call.1} parent=1 // loop_footer_branch
      %31 = sbr.rel target = $region3
    $region8: #{tpu_custom_call.1} parent=1 // loop_exit
      _
    %2259 = vsyncpa [#allocation5], 1
    %s2260 = scalar_lea.sflag [#allocation5], 1
    %2261 = vsyncpa %s2260, 1
    %2262 = vsyncpa [#allocation8], 1
    %2263 = vsyncpa [#allocation11], 1
    %2264 = vsyncpa [#allocation14], 1
    %2265 = vsyncpa [#allocation6], 1
    %s2266 = scalar_lea.sflag [#allocation6], 1
    %2267 = vsyncpa %s2266, 1

// kernel: tpu_custom_call.1
$region0: #{tpu_custom_call.1}
  #allocation0 [shape = 'u32[]', space=smem, size = 0x4, offset = 0x4, fixed_abs, tag = 'smem constant byte address 0x4 - core index']
  #allocation1 [shape = 'u32[144,128]{1,0:T(1,128)}', space=vmem, size = 0x12000, scoped, tag = 'internal scratch']
  #allocation2 [shape = 'bf16[4,8,8]{2,1,0:T(8,128)(2,1)}', space=vmem, size = 0x2000, scoped, tag = 'scratch operand']
  #allocation3 [shape = 'bf16[4,8,8]{2,1,0:T(8,128)(2,1)}', space=vmem, size = 0x2000, scoped, tag = 'scratch operand']
  %s0 = inlined_call_operand.vmem [shape: f32[2,8,32], index: 0, kind: input, shape index: {}]
  %s1 = inlined_call_operand.hbm [shape: bf16[2,8,32], index: 1, kind: input, shape index: {}]
  %s2 = inlined_call_operand.vmem [shape: bf16[32,32], index: 2, kind: input, shape index: {}]
  %s3 = inlined_call_operand.hbm [shape: f32[1,32], index: 3, kind: input, shape index: {}]
  %s4 = inlined_call_operand.vmem [shape: bf16[32,32], index: 4, kind: input, shape index: {}]
  %s5 = inlined_call_operand.hbm [shape: f32[1,32], index: 5, kind: input, shape index: {}]
  %s6 = inlined_call_operand.hbm [shape: bf16[32,32], index: 6, kind: input, shape index: {}]
  %s7 = inlined_call_operand.hbm [shape: f32[1,32], index: 7, kind: input, shape index: {}]
  %s8 = inlined_call_operand.hbm [shape: bf16[32,32], index: 8, kind: input, shape index: {}]
  %s9 = inlined_call_operand.hbm [shape: f32[1,32], index: 9, kind: input, shape index: {}]
  %s10 = inlined_call_operand.vmem [shape: f32[1,32], index: 10, kind: input, shape index: {}]
  %s11 = inlined_call_operand.vmem [shape: bf16[32,64], index: 11, kind: input, shape index: {}]
  %s12 = inlined_call_operand.vmem [shape: f32[1,64], index: 12, kind: input, shape index: {}]
  %s13 = inlined_call_operand.vmem [shape: bf16[64,32], index: 13, kind: input, shape index: {}]
  %s14 = inlined_call_operand.vmem [shape: f32[1,32], index: 14, kind: input, shape index: {}]
  %s15 = inlined_call_operand.vmem [shape: f32[1,32], index: 15, kind: input, shape index: {}]
  %s16 = inlined_call_operand.vmem [shape: f32[1,32], index: 16, kind: input, shape index: {}]
  %s17 = inlined_call_operand.hbm [shape: f32[2,8,32], index: 17, kind: output, shape index: {}]
  %s18 = sld [smem:[#allocation0]]
  $region133: #{tpu_custom_call.1} parent=0
    _
  %s20 = ssub.s32 1, %s18
  %s21 = scalar_select 0, %s20, %s18
  $region1: #{tpu_custom_call.1} parent=0
    #allocation4 [shape = 'u8[4096]{0}', space=vmem, size = 0x1000, scoped, tag = 'input window, operand 1']
    #allocation5 [shape = 's32[2]{0}', space=sflag, size = 0x8, scoped, tag = 'scoped memory for tpu_custom_call.1']
    #allocation6 [shape = 's32[2]{0}', space=sflag, size = 0x8, scoped, tag = 'scoped memory for tpu_custom_call.1']
    #allocation7 [shape = 'u8[512]{0}', space=vmem, size = 0x400, scoped, tag = 'input window, operand 3, single buffered']
    #allocation8 [shape = 's32[1]{0}', space=sflag, size = 0x4, scoped, tag = 'scoped memory for tpu_custom_call.1']
    #allocation9 [shape = 'u8[512]{0}', space=vmem, size = 0x400, scoped, tag = 'input window, operand 5, single buffered']
    #allocation10 [shape = 'u8[8192]{0}', space=vmem, size = 0x2000, scoped, tag = 'input window, operand 6, single buffered']
    #allocation11 [shape = 's32[1]{0}', space=sflag, size = 0x4, scoped, tag = 'scoped memory for tpu_custom_call.1']
    #allocation12 [shape = 'u8[512]{0}', space=vmem, size = 0x400, scoped, tag = 'input window, operand 7, single buffered']
    #allocation13 [shape = 'u8[8192]{0}', space=vmem, size = 0x2000, scoped, tag = 'input window, operand 8, single buffered']
    #allocation14 [shape = 's32[1]{0}', space=sflag, size = 0x4, scoped, tag = 'scoped memory for tpu_custom_call.1']
    #allocation15 [shape = 'u8[512]{0}', space=vmem, size = 0x400, scoped, tag = 'input window, operand 9, single buffered']
    #allocation16 [shape = 'u8[8192]{0}', space=vmem, size = 0x2000, scoped, tag = 'output window, operand 0']
    %22 = vsyncpa [#allocation5], 0
    %s23 = scalar_lea.sflag [#allocation5], 1
    %24 = vsyncpa %s23, 0
    %25 = vsyncpa [#allocation8], 0
    %26 = vsyncpa [#allocation11], 0
    %27 = vsyncpa [#allocation14], 0
    %28 = vsyncpa [#allocation6], 0
    %s29 = scalar_lea.sflag [#allocation6], 1
    %30 = vsyncpa %s29, 0
    loop: start=0, step=1, limit=4
    $region2: #{tpu_custom_call.1} parent=1 // loop_pre_header
      _
    $region3: #{tpu_custom_call.1} parent=1 // loop_header
      %s32 = sphi 0, %s36
      %p33 = scmp.ge.s32.totalorder %s32, 4
      %s39 = sphi 0, %s51
      %s40 = sphi 0, %s47
      %s41 = sphi 0, %s39
      %s42 = sphi 0, %s40
      %s43 = sphi 0, %s41
      %s44 = sphi 0, %s42
      %s56 = sphi 0, %s58
      %s59 = sphi 0, %s56
      %s60 = sphi 0, %s59
      %s76 = sphi 0, %s60
      %s82 = sphi 0, %s84
      %s85 = sphi 0, %s82
      %s86 = sphi 0, %s85
      %s102 = sphi 0, %s86
      %s106 = sphi 0, %s106
      %s108 = sphi 0, %s106
      %s109 = sphi 0, %s108
      %s123 = sphi 0, %s109
      %s127 = sphi 0, %s127
      %s129 = sphi 0, %s127
      %s130 = sphi 0, %s129
      %s144 = sphi 0, %s130
      %s148 = sphi 0, %s148
      %s150 = sphi 0, %s148
      %s151 = sphi 0, %s150
      %s165 = sphi 0, %s151
      %s169 = sphi 0, %s169
      %s171 = sphi 0, %s169
      %s172 = sphi 0, %s171
      %s186 = sphi 0, %s172
      %s190 = sphi 0, %s190
      %s192 = sphi 0, %s190
      %s193 = sphi 0, %s192
      %s207 = sphi 0, %s193
      %s211 = sphi 0, %s211
      %s213 = sphi 0, %s211
      %s214 = sphi 0, %s213
      %s228 = sphi 0, %s214
      %s232 = sphi 0, %s232
      %s234 = sphi 0, %s232
      %s235 = sphi 0, %s234
      %s249 = sphi 0, %s235
      %s253 = sphi 0, %s253
      %s255 = sphi 0, %s253
      %s256 = sphi 0, %s255
      %s270 = sphi 0, %s256
      %s274 = sphi 0, %s274
      %s276 = sphi 0, %s274
      %s277 = sphi 0, %s276
      %s291 = sphi 0, %s277
      %s295 = sphi 0, %s295
      %s297 = sphi 0, %s295
      %s298 = sphi 0, %s297
      %s312 = sphi 0, %s298
      %s316 = sphi 0, %s316
      %s318 = sphi 0, %s316
      %s319 = sphi 0, %s318
      %s333 = sphi 0, %s319
      %s337 = sphi 0, %s337
      %s339 = sphi 0, %s337
      %s340 = sphi 0, %s339
      %s354 = sphi 0, %s340
      %s358 = sphi 0, %s358
      %s360 = sphi 0, %s358
      %s361 = sphi 0, %s360
      %s375 = sphi 0, %s361
      %s379 = sphi 0, %s379
      %s381 = sphi 0, %s379
      %s382 = sphi 0, %s381
      %s396 = sphi 0, %s382
      %s400 = sphi 0, %s400
      %s402 = sphi 0, %s400
      %s403 = sphi 0, %s402
      %s417 = sphi 0, %s403
      %s425 = sphi 0, %s427
      %s428 = sphi 0, %s425
      %s429 = sphi 0, %s428
      %s445 = sphi 0, %s429
    $region4: #{tpu_custom_call.1} parent=1 // loop_header_branch
      %35 = sbr.rel (%p33) target = $region8
    $region5: #{tpu_custom_call.1} parent=1 // loop_body
      %s37 = ssub.s32 %s32, 1
      %s38 = ssub.s32 %s32, 2
      %s45 = sadd.s32 1, %s40
      %p46 = scmp.ge.s32.totalorder %s45, 1
      %s47 = scalar_select %p46, 0, %s45
      %s48 = sadd.s32 1, %s39
      %s49 = scalar_select %p46, %s48, %s39
      %p50 = scmp.ge.s32.totalorder %s49, 2
      %s51 = scalar_select %p50, 0, %s49
      %s52 = ssub.s32 %s39, %s51
      %s53 = ssub.s32 %s40, %s47
      %s54 = sor.u32 %s52, %s53
      %p55 = scmp.eq.s32.totalorder %s54, 0
      %s57 = sadd.s32 %s56, 1
      %s58 = scalar_select %p55, %s56, %s57
      %p61 = pneg %p55
      %p62 = scmp.eq.s32.totalorder %s32, 1
      %p63 = por %p61, %p62
      %p64 = scmp.ne.s32.totalorder %s56, %s59
      %p65 = scmp.eq.s32.totalorder %s32, 0
      %p66 = por %p64, %p65
      %p67 = scmp.ne.s32.totalorder %s56, %s59
      %p68 = scmp.eq.s32.totalorder %s37, 1
      %p69 = por %p67, %p68
      %p70 = scmp.ne.s32.totalorder %s59, %s60
      %p71 = scmp.eq.s32.totalorder %s37, 0
      %p72 = por %p70, %p71
      %p73 = scmp.ne.s32.totalorder %s59, %s60
      %p74 = scmp.eq.s32.totalorder %s38, 1
      %p75 = por %p73, %p74
      %p77 = scmp.ne.s32.totalorder %s60, %s76
      %p78 = scmp.eq.s32.totalorder %s38, 0
      %p79 = por %p77, %p78
      %s80 = ssub.s32 %s39, %s51
      %p81 = scmp.eq.s32.totalorder %s80, 0
      %s83 = sadd.s32 %s82, 1
      %s84 = scalar_select %p81, %s82, %s83
      %p87 = pneg %p81
      %p88 = scmp.eq.s32.totalorder %s32, 1
      %p89 = por %p87, %p88
      %p90 = scmp.ne.s32.totalorder %s82, %s85
      %p91 = scmp.eq.s32.totalorder %s32, 0
      %p92 = por %p90, %p91
      %p93 = scmp.ne.s32.totalorder %s82, %s85
      %p94 = scmp.eq.s32.totalorder %s37, 1
      %p95 = por %p93, %p94
      %p96 = scmp.ne.s32.totalorder %s85, %s86
      %p97 = scmp.eq.s32.totalorder %s37, 0
      %p98 = por %p96, %p97
      %p99 = scmp.ne.s32.totalorder %s85, %s86
      %p100 = scmp.eq.s32.totalorder %s38, 1
      %p101 = por %p99, %p100
      %p103 = scmp.ne.s32.totalorder %s86, %s102
      %p104 = scmp.eq.s32.totalorder %s38, 0
      %p105 = por %p103, %p104
      %s107 = sadd.s32 %s106, 1
      %p110 = scmp.eq.s32.totalorder %s32, 1
      %p111 = scmp.ne.s32.totalorder %s106, %s108
      %p112 = scmp.eq.s32.totalorder %s32, 0
      %p113 = por %p111, %p112
      %p114 = scmp.ne.s32.totalorder %s106, %s108
      %p115 = scmp.eq.s32.totalorder %s37, 1
      %p116 = por %p114, %p115
      %p117 = scmp.ne.s32.totalorder %s108, %s109
      %p118 = scmp.eq.s32.totalorder %s37, 0
      %p119 = por %p117, %p118
      %p120 = scmp.ne.s32.totalorder %s108, %s109
      %p121 = scmp.eq.s32.totalorder %s38, 1
      %p122 = por %p120, %p121
      %p124 = scmp.ne.s32.totalorder %s109, %s123
      %p125 = scmp.eq.s32.totalorder %s38, 0
      %p126 = por %p124, %p125
      %s128 = sadd.s32 %s127, 1
      %p131 = scmp.eq.s32.totalorder %s32, 1
      %p132 = scmp.ne.s32.totalorder %s127, %s129
      %p133 = scmp.eq.s32.totalorder %s32, 0
      %p134 = por %p132, %p133
      %p135 = scmp.ne.s32.totalorder %s127, %s129
      %p136 = scmp.eq.s32.totalorder %s37, 1
      %p137 = por %p135, %p136
      %p138 = scmp.ne.s32.totalorder %s129, %s130
      %p139 = scmp.eq.s32.totalorder %s37, 0
      %p140 = por %p138, %p139
      %p141 = scmp.ne.s32.totalorder %s129, %s130
      %p142 = scmp.eq.s32.totalorder %s38, 1
      %p143 = por %p141, %p142
      %p145 = scmp.ne.s32.totalorder %s130, %s144
      %p146 = scmp.eq.s32.totalorder %s38, 0
      %p147 = por %p145, %p146
      %s149 = sadd.s32 %s148, 1
      %p152 = scmp.eq.s32.totalorder %s32, 1
      %p153 = scmp.ne.s32.totalorder %s148, %s150
      %p154 = scmp.eq.s32.totalorder %s32, 0
      %p155 = por %p153, %p154
      %p156 = scmp.ne.s32.totalorder %s148, %s150
      %p157 = scmp.eq.s32.totalorder %s37, 1
      %p158 = por %p156, %p157
      %p159 = scmp.ne.s32.totalorder %s150, %s151
      %p160 = scmp.eq.s32.totalorder %s37, 0
      %p161 = por %p159, %p160
      %p162 = scmp.ne.s32.totalorder %s150, %s151
      %p163 = scmp.eq.s32.totalorder %s38, 1
      %p164 = por %p162, %p163
      %p166 = scmp.ne.s32.totalorder %s151, %s165
      %p167 = scmp.eq.s32.totalorder %s38, 0
      %p168 = por %p166, %p167
      %s170 = sadd.s32 %s169, 1
      %p173 = scmp.eq.s32.totalorder %s32, 1
      %p174 = scmp.ne.s32.totalorder %s169, %s171
      %p175 = scmp.eq.s32.totalorder %s32, 0
      %p176 = por %p174, %p175
      %p177 = scmp.ne.s32.totalorder %s169, %s171
      %p178 = scmp.eq.s32.totalorder %s37, 1
      %p179 = por %p177, %p178
      %p180 = scmp.ne.s32.totalorder %s171, %s172
      %p181 = scmp.eq.s32.totalorder %s37, 0
      %p182 = por %p180, %p181
      %p183 = scmp.ne.s32.totalorder %s171, %s172
      %p184 = scmp.eq.s32.totalorder %s38, 1
      %p185 = por %p183, %p184
      %p187 = scmp.ne.s32.totalorder %s172, %s186
      %p188 = scmp.eq.s32.totalorder %s38, 0
      %p189 = por %p187, %p188
      %s191 = sadd.s32 %s190, 1
      %p194 = scmp.eq.s32.totalorder %s32, 1
      %p195 = scmp.ne.s32.totalorder %s190, %s192
      %p196 = scmp.eq.s32.totalorder %s32, 0
      %p197 = por %p195, %p196
      %p198 = scmp.ne.s32.totalorder %s190, %s192
      %p199 = scmp.eq.s32.totalorder %s37, 1
      %p200 = por %p198, %p199
      %p201 = scmp.ne.s32.totalorder %s192, %s193
      %p202 = scmp.eq.s32.totalorder %s37, 0
      %p203 = por %p201, %p202
      %p204 = scmp.ne.s32.totalorder %s192, %s193
      %p205 = scmp.eq.s32.totalorder %s38, 1
      %p206 = por %p204, %p205
      %p208 = scmp.ne.s32.totalorder %s193, %s207
      %p209 = scmp.eq.s32.totalorder %s38, 0
      %p210 = por %p208, %p209
      %s212 = sadd.s32 %s211, 1
      %p215 = scmp.eq.s32.totalorder %s32, 1
      %p216 = scmp.ne.s32.totalorder %s211, %s213
      %p217 = scmp.eq.s32.totalorder %s32, 0
      %p218 = por %p216, %p217
      %p219 = scmp.ne.s32.totalorder %s211, %s213
      %p220 = scmp.eq.s32.totalorder %s37, 1
      %p221 = por %p219, %p220
      %p222 = scmp.ne.s32.totalorder %s213, %s214
      %p223 = scmp.eq.s32.totalorder %s37, 0
      %p224 = por %p222, %p223
      %p225 = scmp.ne.s32.totalorder %s213, %s214
      %p226 = scmp.eq.s32.totalorder %s38, 1
      %p227 = por %p225, %p226
      %p229 = scmp.ne.s32.totalorder %s214, %s228
      %p230 = scmp.eq.s32.totalorder %s38, 0
      %p231 = por %p229, %p230
      %s233 = sadd.s32 %s232, 1
      %p236 = scmp.eq.s32.totalorder %s32, 1
      %p237 = scmp.ne.s32.totalorder %s232, %s234
      %p238 = scmp.eq.s32.totalorder %s32, 0
      %p239 = por %p237, %p238
      %p240 = scmp.ne.s32.totalorder %s232, %s234
      %p241 = scmp.eq.s32.totalorder %s37, 1
      %p242 = por %p240, %p241
      %p243 = scmp.ne.s32.totalorder %s234, %s235
      %p244 = scmp.eq.s32.totalorder %s37, 0
      %p245 = por %p243, %p244
      %p246 = scmp.ne.s32.totalorder %s234, %s235
      %p247 = scmp.eq.s32.totalorder %s38, 1
      %p248 = por %p246, %p247
      %p250 = scmp.ne.s32.totalorder %s235, %s249
      %p251 = scmp.eq.s32.totalorder %s38, 0
      %p252 = por %p250, %p251
      %s254 = sadd.s32 %s253, 1
      %p257 = scmp.eq.s32.totalorder %s32, 1
      %p258 = scmp.ne.s32.totalorder %s253, %s255
      %p259 = scmp.eq.s32.totalorder %s32, 0
      %p260 = por %p258, %p259
      %p261 = scmp.ne.s32.totalorder %s253, %s255
      %p262 = scmp.eq.s32.totalorder %s37, 1
      %p263 = por %p261, %p262
      %p264 = scmp.ne.s32.totalorder %s255, %s256
      %p265 = scmp.eq.s32.totalorder %s37, 0
      %p266 = por %p264, %p265
      %p267 = scmp.ne.s32.totalorder %s255, %s256
      %p268 = scmp.eq.s32.totalorder %s38, 1
      %p269 = por %p267, %p268
      %p271 = scmp.ne.s32.totalorder %s256, %s270
      %p272 = scmp.eq.s32.totalorder %s38, 0
      %p273 = por %p271, %p272
      %s275 = sadd.s32 %s274, 1
      %p278 = scmp.eq.s32.totalorder %s32, 1
      %p279 = scmp.ne.s32.totalorder %s274, %s276
      %p280 = scmp.eq.s32.totalorder %s32, 0
      %p281 = por %p279, %p280
      %p282 = scmp.ne.s32.totalorder %s274, %s276
      %p283 = scmp.eq.s32.totalorder %s37, 1
      %p284 = por %p282, %p283
      %p285 = scmp.ne.s32.totalorder %s276, %s277
      %p286 = scmp.eq.s32.totalorder %s37, 0
      %p287 = por %p285, %p286
      %p288 = scmp.ne.s32.totalorder %s276, %s277
      %p289 = scmp.eq.s32.totalorder %s38, 1
      %p290 = por %p288, %p289
      %p292 = scmp.ne.s32.totalorder %s277, %s291
      %p293 = scmp.eq.s32.totalorder %s38, 0
      %p294 = por %p292, %p293
      %s296 = sadd.s32 %s295, 1
      %p299 = scmp.eq.s32.totalorder %s32, 1
      %p300 = scmp.ne.s32.totalorder %s295, %s297
      %p301 = scmp.eq.s32.totalorder %s32, 0
      %p302 = por %p300, %p301
      %p303 = scmp.ne.s32.totalorder %s295, %s297
      %p304 = scmp.eq.s32.totalorder %s37, 1
      %p305 = por %p303, %p304
      %p306 = scmp.ne.s32.totalorder %s297, %s298
      %p307 = scmp.eq.s32.totalorder %s37, 0
      %p308 = por %p306, %p307
      %p309 = scmp.ne.s32.totalorder %s297, %s298
      %p310 = scmp.eq.s32.totalorder %s38, 1
      %p311 = por %p309, %p310
      %p313 = scmp.ne.s32.totalorder %s298, %s312
      %p314 = scmp.eq.s32.totalorder %s38, 0
      %p315 = por %p313, %p314
      %s317 = sadd.s32 %s316, 1
      %p320 = scmp.eq.s32.totalorder %s32, 1
      %p321 = scmp.ne.s32.totalorder %s316, %s318
      %p322 = scmp.eq.s32.totalorder %s32, 0
      %p323 = por %p321, %p322
      %p324 = scmp.ne.s32.totalorder %s316, %s318
      %p325 = scmp.eq.s32.totalorder %s37, 1
      %p326 = por %p324, %p325
      %p327 = scmp.ne.s32.totalorder %s318, %s319
      %p328 = scmp.eq.s32.totalorder %s37, 0
      %p329 = por %p327, %p328
      %p330 = scmp.ne.s32.totalorder %s318, %s319
      %p331 = scmp.eq.s32.totalorder %s38, 1
      %p332 = por %p330, %p331
      %p334 = scmp.ne.s32.totalorder %s319, %s333
      %p335 = scmp.eq.s32.totalorder %s38, 0
      %p336 = por %p334, %p335
      %s338 = sadd.s32 %s337, 1
      %p341 = scmp.eq.s32.totalorder %s32, 1
      %p342 = scmp.ne.s32.totalorder %s337, %s339
      %p343 = scmp.eq.s32.totalorder %s32, 0
      %p344 = por %p342, %p343
      %p345 = scmp.ne.s32.totalorder %s337, %s339
      %p346 = scmp.eq.s32.totalorder %s37, 1
      %p347 = por %p345, %p346
      %p348 = scmp.ne.s32.totalorder %s339, %s340
      %p349 = scmp.eq.s32.totalorder %s37, 0
      %p350 = por %p348, %p349
      %p351 = scmp.ne.s32.totalorder %s339, %s340
      %p352 = scmp.eq.s32.totalorder %s38, 1
      %p353 = por %p351, %p352
      %p355 = scmp.ne.s32.totalorder %s340, %s354
      %p356 = scmp.eq.s32.totalorder %s38, 0
      %p357 = por %p355, %p356
      %s359 = sadd.s32 %s358, 1
      %p362 = scmp.eq.s32.totalorder %s32, 1
      %p363 = scmp.ne.s32.totalorder %s358, %s360
      %p364 = scmp.eq.s32.totalorder %s32, 0
      %p365 = por %p363, %p364
      %p366 = scmp.ne.s32.totalorder %s358, %s360
      %p367 = scmp.eq.s32.totalorder %s37, 1
      %p368 = por %p366, %p367
      %p369 = scmp.ne.s32.totalorder %s360, %s361
      %p370 = scmp.eq.s32.totalorder %s37, 0
      %p371 = por %p369, %p370
      %p372 = scmp.ne.s32.totalorder %s360, %s361
      %p373 = scmp.eq.s32.totalorder %s38, 1
      %p374 = por %p372, %p373
      %p376 = scmp.ne.s32.totalorder %s361, %s375
      %p377 = scmp.eq.s32.totalorder %s38, 0
      %p378 = por %p376, %p377
      %s380 = sadd.s32 %s379, 1
      %p383 = scmp.eq.s32.totalorder %s32, 1
      %p384 = scmp.ne.s32.totalorder %s379, %s381
      %p385 = scmp.eq.s32.totalorder %s32, 0
      %p386 = por %p384, %p385
      %p387 = scmp.ne.s32.totalorder %s379, %s381
      %p388 = scmp.eq.s32.totalorder %s37, 1
      %p389 = por %p387, %p388
      %p390 = scmp.ne.s32.totalorder %s381, %s382
      %p391 = scmp.eq.s32.totalorder %s37, 0
      %p392 = por %p390, %p391
      %p393 = scmp.ne.s32.totalorder %s381, %s382
      %p394 = scmp.eq.s32.totalorder %s38, 1
      %p395 = por %p393, %p394
      %p397 = scmp.ne.s32.totalorder %s382, %s396
      %p398 = scmp.eq.s32.totalorder %s38, 0
      %p399 = por %p397, %p398
      %s401 = sadd.s32 %s400, 1
      %p404 = scmp.eq.s32.totalorder %s32, 1
      %p405 = scmp.ne.s32.totalorder %s400, %s402
      %p406 = scmp.eq.s32.totalorder %s32, 0
      %p407 = por %p405, %p406
      %p408 = scmp.ne.s32.totalorder %s400, %s402
      %p409 = scmp.eq.s32.totalorder %s37, 1
      %p410 = por %p408, %p409
      %p411 = scmp.ne.s32.totalorder %s402, %s403
      %p412 = scmp.eq.s32.totalorder %s37, 0
      %p413 = por %p411, %p412
      %p414 = scmp.ne.s32.totalorder %s402, %s403
      %p415 = scmp.eq.s32.totalorder %s38, 1
      %p416 = por %p414, %p415
      %p418 = scmp.ne.s32.totalorder %s403, %s417
      %p419 = scmp.eq.s32.totalorder %s38, 0
      %p420 = por %p418, %p419
      %s421 = ssub.s32 %s39, %s51
      %s422 = ssub.s32 %s40, %s47
      %s423 = sor.u32 %s421, %s422
      %p424 = scmp.eq.s32.totalorder %s423, 0
      %s426 = sadd.s32 %s425, 1
      %s427 = scalar_select %p424, %s425, %s426
      %p430 = pneg %p424
      %p431 = scmp.eq.s32.totalorder %s32, 1
      %p432 = por %p430, %p431
      %p433 = scmp.ne.s32.totalorder %s425, %s428
      %p434 = scmp.eq.s32.totalorder %s32, 0
      %p435 = por %p433, %p434
      %p436 = scmp.ne.s32.totalorder %s425, %s428
      %p437 = scmp.eq.s32.totalorder %s37, 1
      %p438 = por %p436, %p437
      %p439 = scmp.ne.s32.totalorder %s428, %s429
      %p440 = scmp.eq.s32.totalorder %s37, 0
      %p441 = por %p439, %p440
      %p442 = scmp.ne.s32.totalorder %s428, %s429
      %p443 = scmp.eq.s32.totalorder %s38, 1
      %p444 = por %p442, %p443
      %p446 = scmp.ne.s32.totalorder %s429, %s445
      %p447 = scmp.eq.s32.totalorder %s38, 0
      %p448 = por %p446, %p447
      %p449 = scmp.le.s32.totalorder 1, %s32
      %p450 = scmp.lt.s32.totalorder %s32, 3
      %p451 = pnand %p449, %p450
      %p452 = pneg %p451
      // Predicated region
      $region9: #{tpu_custom_call.1} parent=5 // pred_check
        _
      $region10: #{tpu_custom_call.1} parent=5 // pred_check_branch
        %454 = sbr.rel (%p451) target = $region12
      $region11: #{tpu_custom_call.1} parent=5 // pred_region
        %s455 = ssub.s32 %s32, 1
        // Predicated region
        $region13: #{tpu_custom_call.1} parent=11 // pred_check
          %p456 = pneg %p119
        $region14: #{tpu_custom_call.1} parent=11 // pred_check_branch
          %458 = sbr.rel (%p456) target = $region16
        $region15: #{tpu_custom_call.1} parent=11 // pred_region
          _
        $region16: #{tpu_custom_call.1} parent=11 // pred_fallthru
          _
        // Predicated region
        $region17: #{tpu_custom_call.1} parent=11 // pred_check
          %p459 = pneg %p140
        $region18: #{tpu_custom_call.1} parent=11 // pred_check_branch
          %461 = sbr.rel (%p459) target = $region20
        $region19: #{tpu_custom_call.1} parent=11 // pred_region
          %s463 = ssub.s32 16, 16
          %464 = vsyncadd [#allocation8], %s463
          %s466 = sshll.u32 [#allocation7], 4
          %s467 = int_to_ptr.vmem [resolvable:$true] %s466
          %469 = dma.hbm_to_vmem [thread:$0]  %s3, 16, %s467, [#allocation8]
        $region20: #{tpu_custom_call.1} parent=11 // pred_fallthru
          _
        // Predicated region
        $region21: #{tpu_custom_call.1} parent=11 // pred_check
          %p470 = pneg %p161
        $region22: #{tpu_custom_call.1} parent=11 // pred_check_branch
          %472 = sbr.rel (%p470) target = $region24
        $region23: #{tpu_custom_call.1} parent=11 // pred_region
          _
        $region24: #{tpu_custom_call.1} parent=11 // pred_fallthru
          _
        // Predicated region
        $region25: #{tpu_custom_call.1} parent=11 // pred_check
          %p473 = pneg %p182
        $region26: #{tpu_custom_call.1} parent=11 // pred_check_branch
          %475 = sbr.rel (%p473) target = $region28
        $region27: #{tpu_custom_call.1} parent=11 // pred_region
          %s477 = ssub.s32 16, 16
          %478 = vsyncadd [#allocation8], %s477
          %s480 = sshll.u32 [#allocation9], 4
          %s481 = int_to_ptr.vmem [resolvable:$true] %s480
          %483 = dma.hbm_to_vmem [thread:$0]  %s5, 16, %s481, [#allocation8]
        $region28: #{tpu_custom_call.1} parent=11 // pred_fallthru
          _
        // Predicated region
        $region29: #{tpu_custom_call.1} parent=11 // pred_check
          %p484 = pneg %p203
        $region30: #{tpu_custom_call.1} parent=11 // pred_check_branch
          %486 = sbr.rel (%p484) target = $region32
        $region31: #{tpu_custom_call.1} parent=11 // pred_region
          %s488 = ssub.s32 256, 256
          %489 = vsyncadd [#allocation11], %s488
          %s490 = sshll.u32 [#allocation10], 4
          %s491 = int_to_ptr.vmem [resolvable:$true] %s490
          %496 = dma.hbm_to_vmem [thread:$0]  %s6, 256, %s491, [#allocation11], 64, 64, 4
        $region32: #{tpu_custom_call.1} parent=11 // pred_fallthru
          _
        // Predicated region
        $region33: #{tpu_custom_call.1} parent=11 // pred_check
          %p497 = pneg %p224
        $region34: #{tpu_custom_call.1} parent=11 // pred_check_branch
          %499 = sbr.rel (%p497) target = $region36
        $region35: #{tpu_custom_call.1} parent=11 // pred_region
          %s501 = ssub.s32 16, 16
          %502 = vsyncadd [#allocation11], %s501
          %s504 = sshll.u32 [#allocation12], 4
          %s505 = int_to_ptr.vmem [resolvable:$true] %s504
          %507 = dma.hbm_to_vmem [thread:$0]  %s7, 16, %s505, [#allocation11]
        $region36: #{tpu_custom_call.1} parent=11 // pred_fallthru
          _
        // Predicated region
        $region37: #{tpu_custom_call.1} parent=11 // pred_check
          %p508 = pneg %p245
        $region38: #{tpu_custom_call.1} parent=11 // pred_check_branch
          %510 = sbr.rel (%p508) target = $region40
        $region39: #{tpu_custom_call.1} parent=11 // pred_region
          %s512 = ssub.s32 256, 256
          %513 = vsyncadd [#allocation14], %s512
          %s514 = sshll.u32 [#allocation13], 4
          %s515 = int_to_ptr.vmem [resolvable:$true] %s514
          %520 = dma.hbm_to_vmem [thread:$0]  %s8, 256, %s515, [#allocation14], 64, 64, 4
        $region40: #{tpu_custom_call.1} parent=11 // pred_fallthru
          _
        // Predicated region
        $region41: #{tpu_custom_call.1} parent=11 // pred_check
          %p521 = pneg %p266
        $region42: #{tpu_custom_call.1} parent=11 // pred_check_branch
          %523 = sbr.rel (%p521) target = $region44
        $region43: #{tpu_custom_call.1} parent=11 // pred_region
          %s525 = ssub.s32 16, 16
          %526 = vsyncadd [#allocation14], %s525
          %s528 = sshll.u32 [#allocation15], 4
          %s529 = int_to_ptr.vmem [resolvable:$true] %s528
          %531 = dma.hbm_to_vmem [thread:$0]  %s9, 16, %s529, [#allocation14]
        $region44: #{tpu_custom_call.1} parent=11 // pred_fallthru
          _
        // Predicated region
        $region45: #{tpu_custom_call.1} parent=11 // pred_check
          %p532 = pneg %p287
        $region46: #{tpu_custom_call.1} parent=11 // pred_check_branch
          %534 = sbr.rel (%p532) target = $region48
        $region47: #{tpu_custom_call.1} parent=11 // pred_region
          _
        $region48: #{tpu_custom_call.1} parent=11 // pred_fallthru
          _
        // Predicated region
        $region49: #{tpu_custom_call.1} parent=11 // pred_check
          %p535 = pneg %p308
        $region50: #{tpu_custom_call.1} parent=11 // pred_check_branch
          %537 = sbr.rel (%p535) target = $region52
        $region51: #{tpu_custom_call.1} parent=11 // pred_region
          _
        $region52: #{tpu_custom_call.1} parent=11 // pred_fallthru
          _
        // Predicated region
        $region53: #{tpu_custom_call.1} parent=11 // pred_check
          %p538 = pneg %p329
        $region54: #{tpu_custom_call.1} parent=11 // pred_check_branch
          %540 = sbr.rel (%p538) target = $region56
        $region55: #{tpu_custom_call.1} parent=11 // pred_region
          _
        $region56: #{tpu_custom_call.1} parent=11 // pred_fallthru
          _
        // Predicated region
        $region57: #{tpu_custom_call.1} parent=11 // pred_check
          %p541 = pneg %p350
        $region58: #{tpu_custom_call.1} parent=11 // pred_check_branch
          %543 = sbr.rel (%p541) target = $region60
        $region59: #{tpu_custom_call.1} parent=11 // pred_region
          _
        $region60: #{tpu_custom_call.1} parent=11 // pred_fallthru
          _
        // Predicated region
        $region61: #{tpu_custom_call.1} parent=11 // pred_check
          %p544 = pneg %p371
        $region62: #{tpu_custom_call.1} parent=11 // pred_check_branch
          %546 = sbr.rel (%p544) target = $region64
        $region63: #{tpu_custom_call.1} parent=11 // pred_region
          _
        $region64: #{tpu_custom_call.1} parent=11 // pred_fallthru
          _
        // Predicated region
        $region65: #{tpu_custom_call.1} parent=11 // pred_check
          %p547 = pneg %p392
        $region66: #{tpu_custom_call.1} parent=11 // pred_check_branch
          %549 = sbr.rel (%p547) target = $region68
        $region67: #{tpu_custom_call.1} parent=11 // pred_region
          _
        $region68: #{tpu_custom_call.1} parent=11 // pred_fallthru
          _
        // Predicated region
        $region69: #{tpu_custom_call.1} parent=11 // pred_check
          %p550 = pneg %p413
        $region70: #{tpu_custom_call.1} parent=11 // pred_check_branch
          %552 = sbr.rel (%p550) target = $region72
        $region71: #{tpu_custom_call.1} parent=11 // pred_region
          _
        $region72: #{tpu_custom_call.1} parent=11 // pred_fallthru
          _
      $region12: #{tpu_custom_call.1} parent=5 // pred_fallthru
        _
      %p553 = scmp.lt.s32.totalorder %s32, 2
      // Predicated region
      $region73: #{tpu_custom_call.1} parent=5 // pred_check
        %p554 = pneg %p553
      $region74: #{tpu_custom_call.1} parent=5 // pred_check_branch
        %556 = sbr.rel (%p554) target = $region76
      $region75: #{tpu_custom_call.1} parent=5 // pred_region
        // Predicated region
        $region77: #{tpu_custom_call.1} parent=75 // pred_check
          %p557 = pneg %p66
        $region78: #{tpu_custom_call.1} parent=75 // pred_check_branch
          %559 = sbr.rel (%p557) target = $region80
        $region79: #{tpu_custom_call.1} parent=75 // pred_region
          %p560 = scmp.lt.s32.totalorder %s39, 1
          %s561 = scalar_select %p560, %s39, 1
          %p562 = scmp.lt.s32.totalorder %s40, 0
          %s563 = scalar_select %p562, %s40, 0
          %s564 = sadd.s32 %s563, %s561
          %s565 = smul.addr %s564, 8
          %s566 = scalar_lea.vmem %s0, %s565
        $region80: #{tpu_custom_call.1} parent=75 // pred_fallthru
          _
        // Predicated region
        $region81: #{tpu_custom_call.1} parent=75 // pred_check
          %p567 = pneg %p92
        $region82: #{tpu_custom_call.1} parent=75 // pred_check_branch
          %569 = sbr.rel (%p567) target = $region84
        $region83: #{tpu_custom_call.1} parent=75 // pred_region
          %s570 = sand.u32 %s82, 1
          %s571 = scalar_lea.sflag [#allocation5], %s570
          %s572 = sand.u32 %s82, 1
          %s573 = smul.addr %s572, 4
          %s574 = scalar_lea.vmem [#allocation4], %s573
          %s576 = ssub.s32 64, 64
          %577 = vsyncadd %s571, %s576
          %s578 = smul.addr %s39, 64
          %s579 = scalar_lea.hbm %s1, %s578
          %s581 = sshll.u32 %s574, 4
          %s582 = int_to_ptr.vmem [resolvable:$true] %s581
          %584 = dma.hbm_to_vmem [thread:$0]  %s579, 64, %s582, %s571
        $region84: #{tpu_custom_call.1} parent=75 // pred_fallthru
          _
      $region76: #{tpu_custom_call.1} parent=5 // pred_fallthru
        _
      %p585 = scmp.le.s32.totalorder 1, %s32
      %p586 = scmp.lt.s32.totalorder %s32, 3
      %p587 = pnand %p585, %p586
      %p588 = pneg %p587
      // Predicated region
      $region85: #{tpu_custom_call.1} parent=5 // pred_check
        _
      $region86: #{tpu_custom_call.1} parent=5 // pred_check_branch
        %590 = sbr.rel (%p587) target = $region88
      $region87: #{tpu_custom_call.1} parent=5 // pred_region
        %s591 = ssub.s32 %s32, 1
        %s592 = sand.u32 %s85, 1
        %s593 = scalar_lea.sflag [#allocation5], %s592
        %s594 = sand.u32 %s85, 1
        %s595 = smul.addr %s594, 4
        %s596 = scalar_lea.vmem [#allocation4], %s595
        // Predicated region
        $region89: #{tpu_custom_call.1} parent=87 // pred_check
          %p597 = pneg %p98
        $region90: #{tpu_custom_call.1} parent=87 // pred_check_branch
          %599 = sbr.rel (%p597) target = $region92
        $region91: #{tpu_custom_call.1} parent=87 // pred_region
          %600 = dma.done %s593, 64
        $region92: #{tpu_custom_call.1} parent=87 // pred_fallthru
          _
        // Predicated region
        $region93: #{tpu_custom_call.1} parent=87 // pred_check
          %p601 = pneg %p140
        $region94: #{tpu_custom_call.1} parent=87 // pred_check_branch
          %603 = sbr.rel (%p601) target = $region96
        $region95: #{tpu_custom_call.1} parent=87 // pred_region
          %604 = dma.done [#allocation8], 16
        $region96: #{tpu_custom_call.1} parent=87 // pred_fallthru
          _
        // Predicated region
        $region97: #{tpu_custom_call.1} parent=87 // pred_check
          %p605 = pneg %p182
        $region98: #{tpu_custom_call.1} parent=87 // pred_check_branch
          %607 = sbr.rel (%p605) target = $region100
        $region99: #{tpu_custom_call.1} parent=87 // pred_region
          %608 = dma.done [#allocation8], 16
        $region100: #{tpu_custom_call.1} parent=87 // pred_fallthru
          _
        // Predicated region
        $region101: #{tpu_custom_call.1} parent=87 // pred_check
          %p609 = pneg %p203
        $region102: #{tpu_custom_call.1} parent=87 // pred_check_branch
          %611 = sbr.rel (%p609) target = $region104
        $region103: #{tpu_custom_call.1} parent=87 // pred_region
          %612 = dma.done [#allocation11], 256
        $region104: #{tpu_custom_call.1} parent=87 // pred_fallthru
          _
        // Predicated region
        $region105: #{tpu_custom_call.1} parent=87 // pred_check
          %p613 = pneg %p224
        $region106: #{tpu_custom_call.1} parent=87 // pred_check_branch
          %615 = sbr.rel (%p613) target = $region108
        $region107: #{tpu_custom_call.1} parent=87 // pred_region
          %616 = dma.done [#allocation11], 16
        $region108: #{tpu_custom_call.1} parent=87 // pred_fallthru
          _
        // Predicated region
        $region109: #{tpu_custom_call.1} parent=87 // pred_check
          %p617 = pneg %p245
        $region110: #{tpu_custom_call.1} parent=87 // pred_check_branch
          %619 = sbr.rel (%p617) target = $region112
        $region111: #{tpu_custom_call.1} parent=87 // pred_region
          %620 = dma.done [#allocation14], 256
        $region112: #{tpu_custom_call.1} parent=87 // pred_fallthru
          _
        // Predicated region
        $region113: #{tpu_custom_call.1} parent=87 // pred_check
          %p621 = pneg %p266
        $region114: #{tpu_custom_call.1} parent=87 // pred_check_branch
          %623 = sbr.rel (%p621) target = $region116
        $region115: #{tpu_custom_call.1} parent=87 // pred_region
          %624 = dma.done [#allocation14], 16
        $region116: #{tpu_custom_call.1} parent=87 // pred_fallthru
          _
        %p625 = scmp.lt.s32.totalorder %s41, 1
        %s626 = scalar_select %p625, %s41, 1
        %p627 = scmp.lt.s32.totalorder %s42, 0
        %s628 = scalar_select %p627, %s42, 0
        %s629 = sadd.s32 %s628, %s626
        %s630 = smul.addr %s629, 8
        %s631 = scalar_lea.vmem %s0, %s630
        %p632 = pneg %p72
        %p633 = pneg %p69
        %s634 = sand.u32 %s85, 1
        %s635 = scalar_lea.sflag [#allocation5], %s634
        %s636 = sand.u32 %s85, 1
        %s637 = smul.addr %s636, 4
        %s638 = scalar_lea.vmem [#allocation4], %s637
        %p639 = pneg %p98
        %p640 = pneg %p95
        %p641 = pneg %p119
        %p642 = pneg %p116
        %p643 = pneg %p140
        %p644 = pneg %p137
        %p645 = pneg %p161
        %p646 = pneg %p158
        %p647 = pneg %p182
        %p648 = pneg %p179
        %p649 = pneg %p203
        %p650 = pneg %p200
        %p651 = pneg %p224
        %p652 = pneg %p221
        %p653 = pneg %p245
        %p654 = pneg %p242
        %p655 = pneg %p266
        %p656 = pneg %p263
        %p657 = pneg %p287
        %p658 = pneg %p284
        %p659 = pneg %p308
        %p660 = pneg %p305
        %p661 = pneg %p329
        %p662 = pneg %p326
        %p663 = pneg %p350
        %p664 = pneg %p347
        %p665 = pneg %p371
        %p666 = pneg %p368
        %p667 = pneg %p392
        %p668 = pneg %p389
        %p669 = pneg %p413
        %p670 = pneg %p410
        %p671 = pneg %p441
        %p672 = pneg %p438
        %s673 = sand.u32 %s428, 1
        %s674 = scalar_lea.sflag [#allocation6], %s673
        %s675 = sand.u32 %s428, 1
        %s676 = smul.addr %s675, 8
        %s677 = scalar_lea.vmem [#allocation16], %s676
        %p678 = scmp.lt.s32.totalorder %s41, 1
        %s679 = scalar_select %p678, %s41, 1
        %p680 = scmp.lt.s32.totalorder %s42, 0
        %s681 = scalar_select %p680, %s42, 0
        %s682 = sadd.s32 %s681, %s679
        %s683 = smul.addr %s682, 8
        %s684 = scalar_lea.vmem %s0, %s683
        %p686 = scmp.eq.s32.totalorder %s42, 0
        // Predicated region
        $region117: #{tpu_custom_call.1} parent=87 // pred_check
          %p687 = pneg %p686
        $region118: #{tpu_custom_call.1} parent=87 // pred_check_branch
          %689 = sbr.rel (%p687) target = $region120
        $region119: #{tpu_custom_call.1} parent=87 // pred_region
          %v690 = vld [vmem:[%s596] sm:$0xf]
          %v691 = vld [vmem:[%s4] sm:$0xf]
          %v692 = vld [vmem:[%s4 + $0x4] sm:$0xf]
          %v693 = vld [vmem:[%s4 + $0x8] sm:$0xf]
          %v694 = vld [vmem:[%s4 + $0xc] sm:$0xf]
          %v695 = vld [vmem:[#allocation9] sm:$0x1]
          %v697 = vlaneseq
          %v698 = vshrl.u32 %v697, 7
          %v699 = vsub.s32 0, %v698
          %v700 = vrot.slane %v695, %v699
          %v706 = vunpack.c.l.b16 %v691
          %v707 = vunpack.c.l.b16 %v692
          %v708 = vunpack.c.l.b16 %v693
          %v709 = vunpack.c.l.b16 %v694
          %v710 = vpack.c.b16 %v707, %v706
          %v711 = vpack.c.b16 %v709, %v708
          %vm714 = vcmask 261120
          %v716 = vsel %vm714, %v690, 0
          %718 = vmatprep.subr.bf16.mxu0 0
          %719 = vmatpush1.bf16.msra.mxu0 0
          %720 = vmatprep.subr.bf16.mxu0 0
          %721 = vmatpush1.bf16.msra.mxu0 0
          %722 = vmatprep.subr.bf16.mxu0 0
          %723 = vmatpush1.bf16.msra.mxu0 0
          %724 = vmatprep.subr.bf16.mxu0 0
          %725 = vmatpush1.bf16.msra.mxu0 0
          %726 = vmatprep.subr.bf16.mxu0 0
          %727 = vmatpush1.bf16.msra.mxu0 0
          %728 = vmatprep.subr.bf16.mxu0 0
          %729 = vmatpush1.bf16.msra.mxu0 0
          %730 = vmatprep.subr.bf16.mxu0 0
          %731 = vmatpush1.bf16.msra.mxu0 %v711
          %732 = vmatprep.subr.bf16.mxu0 0
          %733 = vmatpush1.bf16.msra.mxu0 %v710
          %734 = vmatprep.subr.bf16.mxu0 0
          %735 = vmatpush2.bf16.msra.mxu0 0
          %736 = vmatprep.subr.bf16.mxu0 0
          %737 = vmatpush2.bf16.msra.mxu0 0
          %738 = vmatprep.subr.bf16.mxu0 0
          %739 = vmatpush2.bf16.msra.mxu0 0
          %740 = vmatprep.subr.bf16.mxu0 0
          %741 = vmatpush2.bf16.msra.mxu0 0
          %742 = vmatprep.subr.bf16.mxu0 0
          %743 = vmatpush2.bf16.msra.mxu0 0
          %744 = vmatprep.subr.bf16.mxu0 0
          %745 = vmatpush2.bf16.msra.mxu0 0
          %746 = vmatprep.subr.bf16.mxu0 0
          %747 = vmatpush2.bf16.msra.mxu0 0
          %748 = vmatprep.subr.bf16.mxu0 0
          %749 = vmatpush2.bf16.msra.mxu0 0
          %750 = vmatprep.mubr.bf16.mxu0 0
          %751 = vmatmul.mubr.bf16.gmra.mxu0 %v716
          %v752 = vpop.f32.mrf.mxu0
          %v753 = vadd.f32 %v700, %v752
          %v754 = vpop.f32.mrf.mxu0
          %v755 = vpop.f32.mrf.mxu0
          %v756 = vpop.f32.mrf.mxu0
          %757 = vdwg.mxu0
          %v758 = vld [vmem:[#allocation10] sm:$0xf]
          %v759 = vld [vmem:[#allocation10 + $0x4] sm:$0xf]
          %v760 = vld [vmem:[#allocation10 + $0x8] sm:$0xf]
          %v761 = vld [vmem:[#allocation10 + $0xc] sm:$0xf]
          %v762 = vld [vmem:[#allocation12] sm:$0x1]
          %v764 = vlaneseq
          %v765 = vshrl.u32 %v764, 7
          %v766 = vsub.s32 0, %v765
          %v767 = vrot.slane %v762, %v766
          %v773 = vunpack.c.l.b16 %v758
          %v774 = vunpack.c.l.b16 %v759
          %v775 = vunpack.c.l.b16 %v760
          %v776 = vunpack.c.l.b16 %v761
          %v777 = vpack.c.b16 %v774, %v773
          %v778 = vpack.c.b16 %v776, %v775
          %781 = vmatprep.subr.bf16.mxu0 0
          %782 = vmatpush1.bf16.msra.mxu0 0
          %783 = vmatprep.subr.bf16.mxu0 0
          %784 = vmatpush1.bf16.msra.mxu0 0
          %785 = vmatprep.subr.bf16.mxu0 0
          %786 = vmatpush1.bf16.msra.mxu0 0
          %787 = vmatprep.subr.bf16.mxu0 0
          %788 = vmatpush1.bf16.msra.mxu0 0
          %789 = vmatprep.subr.bf16.mxu0 0
          %790 = vmatpush1.bf16.msra.mxu0 0
          %791 = vmatprep.subr.bf16.mxu0 0
          %792 = vmatpush1.bf16.msra.mxu0 0
          %793 = vmatprep.subr.bf16.mxu0 0
          %794 = vmatpush1.bf16.msra.mxu0 %v778
          %795 = vmatprep.subr.bf16.mxu0 0
          %796 = vmatpush1.bf16.msra.mxu0 %v777
          %797 = vmatprep.subr.bf16.mxu0 0
          %798 = vmatpush2.bf16.msra.mxu0 0
          %799 = vmatprep.subr.bf16.mxu0 0
          %800 = vmatpush2.bf16.msra.mxu0 0
          %801 = vmatprep.subr.bf16.mxu0 0
          %802 = vmatpush2.bf16.msra.mxu0 0
          %803 = vmatprep.subr.bf16.mxu0 0
          %804 = vmatpush2.bf16.msra.mxu0 0
          %805 = vmatprep.subr.bf16.mxu0 0
          %806 = vmatpush2.bf16.msra.mxu0 0
          %807 = vmatprep.subr.bf16.mxu0 0
          %808 = vmatpush2.bf16.msra.mxu0 0
          %809 = vmatprep.subr.bf16.mxu0 0
          %810 = vmatpush2.bf16.msra.mxu0 0
          %811 = vmatprep.subr.bf16.mxu0 0
          %812 = vmatpush2.bf16.msra.mxu0 0
          %813 = vmatprep.mubr.bf16.mxu0 0
          %814 = vmatmul.mubr.bf16.gmra.mxu0 %v716
          %v815 = vpop.f32.mrf.mxu0
          %v816 = vadd.f32 %v767, %v815
          %v817 = vpop.f32.mrf.mxu0
          %v818 = vpop.f32.mrf.mxu0
          %v819 = vpop.f32.mrf.mxu0
          %820 = vdwg.mxu0
          %822 = vrot.lane.b32.xlu0 %v753, 120
          %v823 = vpop.permute.xlu0 %822
          %825 = vrot.lane.b32.xlu0 %v753, 112
          %v826 = vpop.permute.xlu0 %825
          %828 = vrot.lane.b32.xlu0 %v753, 104
          %v829 = vpop.permute.xlu0 %828
          %v831 = vcombine.low %v753, %v826
          %v832 = vcombine.high %v753, %v826
          %v834 = vunpack.c.l.s4 1983009808
          %v835 = vunpack.c.0.s8 %v834
          %v836 = vlaneseq
          %v837 = vshrl.u32 %v836, 7
          %v838 = vsub.s32 %v835, %v837
          %v839 = vrot.slane %v831, %v838
          %v841 = vunpack.c.l.s4 1983009808
          %v842 = vunpack.c.0.s8 %v841
          %v843 = vlaneseq
          %v844 = vshrl.u32 %v843, 7
          %v845 = vsub.s32 %v842, %v844
          %v846 = vrot.slane %v832, %v845
          %v847 = vcombine.low %v823, %v829
          %v848 = vcombine.high %v823, %v829
          %v850 = vunpack.c.l.s4 1983009808
          %v851 = vunpack.c.0.s8 %v850
          %v852 = vlaneseq
          %v853 = vshrl.u32 %v852, 7
          %v854 = vsub.s32 %v851, %v853
          %v855 = vrot.slane %v847, %v854
          %v857 = vunpack.c.l.s4 1983009808
          %v858 = vunpack.c.0.s8 %v857
          %v859 = vlaneseq
          %v860 = vshrl.u32 %v859, 7
          %v861 = vsub.s32 %v858, %v860
          %v862 = vrot.slane %v848, %v861
          %v863 = vcombine.low %v839, %v855
          %v864 = vcombine.high %v839, %v855
          %v866 = vunpack.c.l.s4 1934713408
          %v867 = vunpack.c.0.s8 %v866
          %v868 = vlaneseq
          %v869 = vshrl.u32 %v868, 7
          %v870 = vsub.s32 %v867, %v869
          %v871 = vrot.slane %v863, %v870
          %v873 = vunpack.c.l.s4 1934713408
          %v874 = vunpack.c.0.s8 %v873
          %v875 = vlaneseq
          %v876 = vshrl.u32 %v875, 7
          %v877 = vsub.s32 %v874, %v876
          %v878 = vrot.slane %v864, %v877
          %v879 = vcombine.low %v846, %v862
          %v880 = vcombine.high %v846, %v862
          %v882 = vunpack.c.l.s4 1934713408
          %v883 = vunpack.c.0.s8 %v882
          %v884 = vlaneseq
          %v885 = vshrl.u32 %v884, 7
          %v886 = vsub.s32 %v883, %v885
          %v887 = vrot.slane %v879, %v886
          %v889 = vunpack.c.l.s4 1934713408
          %v890 = vunpack.c.0.s8 %v889
          %v891 = vlaneseq
          %v892 = vshrl.u32 %v891, 7
          %v893 = vsub.s32 %v890, %v892
          %v894 = vrot.slane %v880, %v893
          %v895 = vcombine.high %v871, 0.0
          %v896 = vcombine.high %v878, 0.0
          %v897 = vcombine.high %v887, 0.0
          %v898 = vcombine.high %v894, 0.0
          %v899 = vcombine.low %v871, %v878
          %v901 = vunpack.c.l.s4 1983009808
          %v902 = vunpack.c.0.s8 %v901
          %v903 = vlaneseq
          %v904 = vshrl.u32 %v903, 7
          %v905 = vsub.s32 %v902, %v904
          %v906 = vrot.slane %v899, %v905
          %v907 = vcombine.low %v895, %v896
          %v909 = vunpack.c.l.s4 1983009808
          %v910 = vunpack.c.0.s8 %v909
          %v911 = vlaneseq
          %v912 = vshrl.u32 %v911, 7
          %v913 = vsub.s32 %v910, %v912
          %v914 = vrot.slane %v907, %v913
          %v915 = vcombine.low %v887, %v894
          %v917 = vunpack.c.l.s4 1983009808
          %v918 = vunpack.c.0.s8 %v917
          %v919 = vlaneseq
          %v920 = vshrl.u32 %v919, 7
          %v921 = vsub.s32 %v918, %v920
          %v922 = vrot.slane %v915, %v921
          %v923 = vcombine.low %v897, %v898
          %v925 = vunpack.c.l.s4 1983009808
          %v926 = vunpack.c.0.s8 %v925
          %v927 = vlaneseq
          %v928 = vshrl.u32 %v927, 7
          %v929 = vsub.s32 %v926, %v928
          %v930 = vrot.slane %v923, %v929
          %v931 = vcombine.low %v906, %v914
          %v932 = vcombine.high %v906, %v914
          %v934 = vunpack.c.l.s4 1934713408
          %v935 = vunpack.c.0.s8 %v934
          %v936 = vlaneseq
          %v937 = vshrl.u32 %v936, 7
          %v938 = vsub.s32 %v935, %v937
          %v939 = vrot.slane %v931, %v938
          %v941 = vunpack.c.l.s4 1934713408
          %v942 = vunpack.c.0.s8 %v941
          %v943 = vlaneseq
          %v944 = vshrl.u32 %v943, 7
          %v945 = vsub.s32 %v942, %v944
          %v946 = vrot.slane %v932, %v945
          %v947 = vcombine.low %v922, %v930
          %v948 = vcombine.high %v922, %v930
          %v950 = vunpack.c.l.s4 1934713408
          %v951 = vunpack.c.0.s8 %v950
          %v952 = vlaneseq
          %v953 = vshrl.u32 %v952, 7
          %v954 = vsub.s32 %v951, %v953
          %v955 = vrot.slane %v947, %v954
          %v957 = vunpack.c.l.s4 1934713408
          %v958 = vunpack.c.0.s8 %v957
          %v959 = vlaneseq
          %v960 = vshrl.u32 %v959, 7
          %v961 = vsub.s32 %v958, %v960
          %v962 = vrot.slane %v948, %v961
          %v963 = vcombine.low %v939, %v955
          %v964 = vcombine.high %v939, %v955
          %v965 = vcombine.low %v946, %v962
          %v966 = vcombine.high %v946, %v962
          %v967 = vpack.c.bf16 %v963, %v963
          %v968 = vpack.c.bf16 %v964, %v964
          %v969 = vpack.c.bf16 %v965, %v965
          %v970 = vpack.c.bf16 %v966, %v966
          %vm971 = vcmask 60416
          %972 = vst.msk [vmem:[#allocation2] sm:$0xf] %vm971, %v967
          %973 = vst.msk [vmem:[#allocation2 + $0x4] sm:$0xf] %vm971, %v968
          %974 = vst.msk [vmem:[#allocation2 + $0x8] sm:$0xf] %vm971, %v969
          %975 = vst.msk [vmem:[#allocation2 + $0xc] sm:$0xf] %vm971, %v970
          %977 = vrot.lane.b32.xlu0 %v816, 120
          %v978 = vpop.permute.xlu0 %977
          %980 = vrot.lane.b32.xlu0 %v816, 112
          %v981 = vpop.permute.xlu0 %980
          %983 = vrot.lane.b32.xlu0 %v816, 104
          %v984 = vpop.permute.xlu0 %983
          %v986 = vcombine.low %v816, %v981
          %v987 = vcombine.high %v816, %v981
          %v989 = vunpack.c.l.s4 1983009808
          %v990 = vunpack.c.0.s8 %v989
          %v991 = vlaneseq
          %v992 = vshrl.u32 %v991, 7
          %v993 = vsub.s32 %v990, %v992
          %v994 = vrot.slane %v986, %v993
          %v996 = vunpack.c.l.s4 1983009808
          %v997 = vunpack.c.0.s8 %v996
          %v998 = vlaneseq
          %v999 = vshrl.u32 %v998, 7
          %v1000 = vsub.s32 %v997, %v999
          %v1001 = vrot.slane %v987, %v1000
          %v1002 = vcombine.low %v978, %v984
          %v1003 = vcombine.high %v978, %v984
          %v1005 = vunpack.c.l.s4 1983009808
          %v1006 = vunpack.c.0.s8 %v1005
          %v1007 = vlaneseq
          %v1008 = vshrl.u32 %v1007, 7
          %v1009 = vsub.s32 %v1006, %v1008
          %v1010 = vrot.slane %v1002, %v1009
          %v1012 = vunpack.c.l.s4 1983009808
          %v1013 = vunpack.c.0.s8 %v1012
          %v1014 = vlaneseq
          %v1015 = vshrl.u32 %v1014, 7
          %v1016 = vsub.s32 %v1013, %v1015
          %v1017 = vrot.slane %v1003, %v1016
          %v1018 = vcombine.low %v994, %v1010
          %v1019 = vcombine.high %v994, %v1010
          %v1021 = vunpack.c.l.s4 1934713408
          %v1022 = vunpack.c.0.s8 %v1021
          %v1023 = vlaneseq
          %v1024 = vshrl.u32 %v1023, 7
          %v1025 = vsub.s32 %v1022, %v1024
          %v1026 = vrot.slane %v1018, %v1025
          %v1028 = vunpack.c.l.s4 1934713408
          %v1029 = vunpack.c.0.s8 %v1028
          %v1030 = vlaneseq
          %v1031 = vshrl.u32 %v1030, 7
          %v1032 = vsub.s32 %v1029, %v1031
          %v1033 = vrot.slane %v1019, %v1032
          %v1034 = vcombine.low %v1001, %v1017
          %v1035 = vcombine.high %v1001, %v1017
          %v1037 = vunpack.c.l.s4 1934713408
          %v1038 = vunpack.c.0.s8 %v1037
          %v1039 = vlaneseq
          %v1040 = vshrl.u32 %v1039, 7
          %v1041 = vsub.s32 %v1038, %v1040
          %v1042 = vrot.slane %v1034, %v1041
          %v1044 = vunpack.c.l.s4 1934713408
          %v1045 = vunpack.c.0.s8 %v1044
          %v1046 = vlaneseq
          %v1047 = vshrl.u32 %v1046, 7
          %v1048 = vsub.s32 %v1045, %v1047
          %v1049 = vrot.slane %v1035, %v1048
          %v1050 = vcombine.high %v1026, 0.0
          %v1051 = vcombine.high %v1033, 0.0
          %v1052 = vcombine.high %v1042, 0.0
          %v1053 = vcombine.high %v1049, 0.0
          %v1054 = vcombine.low %v1026, %v1033
          %v1056 = vunpack.c.l.s4 1983009808
          %v1057 = vunpack.c.0.s8 %v1056
          %v1058 = vlaneseq
          %v1059 = vshrl.u32 %v1058, 7
          %v1060 = vsub.s32 %v1057, %v1059
          %v1061 = vrot.slane %v1054, %v1060
          %v1062 = vcombine.low %v1050, %v1051
          %v1064 = vunpack.c.l.s4 1983009808
          %v1065 = vunpack.c.0.s8 %v1064
          %v1066 = vlaneseq
          %v1067 = vshrl.u32 %v1066, 7
          %v1068 = vsub.s32 %v1065, %v1067
          %v1069 = vrot.slane %v1062, %v1068
          %v1070 = vcombine.low %v1042, %v1049
          %v1072 = vunpack.c.l.s4 1983009808
          %v1073 = vunpack.c.0.s8 %v1072
          %v1074 = vlaneseq
          %v1075 = vshrl.u32 %v1074, 7
          %v1076 = vsub.s32 %v1073, %v1075
          %v1077 = vrot.slane %v1070, %v1076
          %v1078 = vcombine.low %v1052, %v1053
          %v1080 = vunpack.c.l.s4 1983009808
          %v1081 = vunpack.c.0.s8 %v1080
          %v1082 = vlaneseq
          %v1083 = vshrl.u32 %v1082, 7
          %v1084 = vsub.s32 %v1081, %v1083
          %v1085 = vrot.slane %v1078, %v1084
          %v1086 = vcombine.low %v1061, %v1069
          %v1087 = vcombine.high %v1061, %v1069
          %v1089 = vunpack.c.l.s4 1934713408
          %v1090 = vunpack.c.0.s8 %v1089
          %v1091 = vlaneseq
          %v1092 = vshrl.u32 %v1091, 7
          %v1093 = vsub.s32 %v1090, %v1092
          %v1094 = vrot.slane %v1086, %v1093
          %v1096 = vunpack.c.l.s4 1934713408
          %v1097 = vunpack.c.0.s8 %v1096
          %v1098 = vlaneseq
          %v1099 = vshrl.u32 %v1098, 7
          %v1100 = vsub.s32 %v1097, %v1099
          %v1101 = vrot.slane %v1087, %v1100
          %v1102 = vcombine.low %v1077, %v1085
          %v1103 = vcombine.high %v1077, %v1085
          %v1105 = vunpack.c.l.s4 1934713408
          %v1106 = vunpack.c.0.s8 %v1105
          %v1107 = vlaneseq
          %v1108 = vshrl.u32 %v1107, 7
          %v1109 = vsub.s32 %v1106, %v1108
          %v1110 = vrot.slane %v1102, %v1109
          %v1112 = vunpack.c.l.s4 1934713408
          %v1113 = vunpack.c.0.s8 %v1112
          %v1114 = vlaneseq
          %v1115 = vshrl.u32 %v1114, 7
          %v1116 = vsub.s32 %v1113, %v1115
          %v1117 = vrot.slane %v1103, %v1116
          %v1118 = vcombine.low %v1094, %v1110
          %v1119 = vcombine.high %v1094, %v1110
          %v1120 = vcombine.low %v1101, %v1117
          %v1121 = vcombine.high %v1101, %v1117
          %v1122 = vpack.c.bf16 %v1118, %v1118
          %v1123 = vpack.c.bf16 %v1119, %v1119
          %v1124 = vpack.c.bf16 %v1120, %v1120
          %v1125 = vpack.c.bf16 %v1121, %v1121
          %1126 = vst.msk [vmem:[#allocation3] sm:$0xf] %vm971, %v1122
          %1127 = vst.msk [vmem:[#allocation3 + $0x4] sm:$0xf] %vm971, %v1123
          %1128 = vst.msk [vmem:[#allocation3 + $0x8] sm:$0xf] %vm971, %v1124
          %1129 = vst.msk [vmem:[#allocation3 + $0xc] sm:$0xf] %vm971, %v1125
        $region120: #{tpu_custom_call.1} parent=87 // pred_fallthru
          _
        %v1130 = vld [vmem:[%s684] sm:$0xff]
        %v1131 = vpack.c.bf16 %v1130, %v1130
        %v1132 = vld [vmem:[%s2] sm:$0xf]
        %v1133 = vld [vmem:[%s2 + $0x4] sm:$0xf]
        %v1134 = vld [vmem:[%s2 + $0x8] sm:$0xf]
        %v1135 = vld [vmem:[%s2 + $0xc] sm:$0xf]
        %v1136 = vld [vmem:[#allocation7] sm:$0x1]
        %v1138 = vlaneseq
        %v1139 = vshrl.u32 %v1138, 7
        %v1140 = vsub.s32 0, %v1139
        %v1141 = vrot.slane %v1136, %v1140
        %v1147 = vunpack.c.l.b16 %v1132
        %v1148 = vunpack.c.l.b16 %v1133
        %v1149 = vunpack.c.l.b16 %v1134
        %v1150 = vunpack.c.l.b16 %v1135
        %v1151 = vpack.c.b16 %v1148, %v1147
        %v1152 = vpack.c.b16 %v1150, %v1149
        %vm1155 = vcmask 261120
        %v1157 = vsel %vm1155, %v1131, 0
        %1159 = vmatprep.subr.bf16.mxu0 0
        %1160 = vmatpush1.bf16.msra.mxu0 0
        %1161 = vmatprep.subr.bf16.mxu0 0
        %1162 = vmatpush1.bf16.msra.mxu0 0
        %1163 = vmatprep.subr.bf16.mxu0 0
        %1164 = vmatpush1.bf16.msra.mxu0 0
        %1165 = vmatprep.subr.bf16.mxu0 0
        %1166 = vmatpush1.bf16.msra.mxu0 0
        %1167 = vmatprep.subr.bf16.mxu0 0
        %1168 = vmatpush1.bf16.msra.mxu0 0
        %1169 = vmatprep.subr.bf16.mxu0 0
        %1170 = vmatpush1.bf16.msra.mxu0 0
        %1171 = vmatprep.subr.bf16.mxu0 0
        %1172 = vmatpush1.bf16.msra.mxu0 %v1152
        %1173 = vmatprep.subr.bf16.mxu0 0
        %1174 = vmatpush1.bf16.msra.mxu0 %v1151
        %1175 = vmatprep.subr.bf16.mxu0 0
        %1176 = vmatpush2.bf16.msra.mxu0 0
        %1177 = vmatprep.subr.bf16.mxu0 0
        %1178 = vmatpush2.bf16.msra.mxu0 0
        %1179 = vmatprep.subr.bf16.mxu0 0
        %1180 = vmatpush2.bf16.msra.mxu0 0
        %1181 = vmatprep.subr.bf16.mxu0 0
        %1182 = vmatpush2.bf16.msra.mxu0 0
        %1183 = vmatprep.subr.bf16.mxu0 0
        %1184 = vmatpush2.bf16.msra.mxu0 0
        %1185 = vmatprep.subr.bf16.mxu0 0
        %1186 = vmatpush2.bf16.msra.mxu0 0
        %1187 = vmatprep.subr.bf16.mxu0 0
        %1188 = vmatpush2.bf16.msra.mxu0 0
        %1189 = vmatprep.subr.bf16.mxu0 0
        %1190 = vmatpush2.bf16.msra.mxu0 0
        %1191 = vmatprep.mubr.bf16.mxu0 0
        %1192 = vmatmul.mubr.bf16.gmra.mxu0 %v1157
        %v1193 = vpop.f32.mrf.mxu0
        %v1194 = vadd.f32 %v1141, %v1193
        %v1195 = vpop.f32.mrf.mxu0
        %v1196 = vpop.f32.mrf.mxu0
        %v1197 = vpop.f32.mrf.mxu0
        %1198 = vdwg.mxu0
        %v1199 = vmul.f32 %v1194, 0.35355338
        %1201 = vrot.lane.b32.xlu0 %v1199, 120
        %v1202 = vpop.permute.xlu0 %1201
        %1204 = vrot.lane.b32.xlu0 %v1199, 112
        %v1205 = vpop.permute.xlu0 %1204
        %1207 = vrot.lane.b32.xlu0 %v1199, 104
        %v1208 = vpop.permute.xlu0 %1207
        %v1210 = vcombine.low %v1199, %v1205
        %v1211 = vcombine.high %v1199, %v1205
        %v1213 = vunpack.c.l.s4 1983009808
        %v1214 = vunpack.c.0.s8 %v1213
        %v1215 = vlaneseq
        %v1216 = vshrl.u32 %v1215, 7
        %v1217 = vsub.s32 %v1214, %v1216
        %v1218 = vrot.slane %v1210, %v1217
        %v1220 = vunpack.c.l.s4 1983009808
        %v1221 = vunpack.c.0.s8 %v1220
        %v1222 = vlaneseq
        %v1223 = vshrl.u32 %v1222, 7
        %v1224 = vsub.s32 %v1221, %v1223
        %v1225 = vrot.slane %v1211, %v1224
        %v1226 = vcombine.low %v1202, %v1208
        %v1227 = vcombine.high %v1202, %v1208
        %v1229 = vunpack.c.l.s4 1983009808
        %v1230 = vunpack.c.0.s8 %v1229
        %v1231 = vlaneseq
        %v1232 = vshrl.u32 %v1231, 7
        %v1233 = vsub.s32 %v1230, %v1232
        %v1234 = vrot.slane %v1226, %v1233
        %v1236 = vunpack.c.l.s4 1983009808
        %v1237 = vunpack.c.0.s8 %v1236
        %v1238 = vlaneseq
        %v1239 = vshrl.u32 %v1238, 7
        %v1240 = vsub.s32 %v1237, %v1239
        %v1241 = vrot.slane %v1227, %v1240
        %v1242 = vcombine.low %v1218, %v1234
        %v1243 = vcombine.high %v1218, %v1234
        %v1245 = vunpack.c.l.s4 1934713408
        %v1246 = vunpack.c.0.s8 %v1245
        %v1247 = vlaneseq
        %v1248 = vshrl.u32 %v1247, 7
        %v1249 = vsub.s32 %v1246, %v1248
        %v1250 = vrot.slane %v1242, %v1249
        %v1252 = vunpack.c.l.s4 1934713408
        %v1253 = vunpack.c.0.s8 %v1252
        %v1254 = vlaneseq
        %v1255 = vshrl.u32 %v1254, 7
        %v1256 = vsub.s32 %v1253, %v1255
        %v1257 = vrot.slane %v1243, %v1256
        %v1258 = vcombine.low %v1225, %v1241
        %v1259 = vcombine.high %v1225, %v1241
        %v1261 = vunpack.c.l.s4 1934713408
        %v1262 = vunpack.c.0.s8 %v1261
        %v1263 = vlaneseq
        %v1264 = vshrl.u32 %v1263, 7
        %v1265 = vsub.s32 %v1262, %v1264
        %v1266 = vrot.slane %v1258, %v1265
        %v1268 = vunpack.c.l.s4 1934713408
        %v1269 = vunpack.c.0.s8 %v1268
        %v1270 = vlaneseq
        %v1271 = vshrl.u32 %v1270, 7
        %v1272 = vsub.s32 %v1269, %v1271
        %v1273 = vrot.slane %v1259, %v1272
        %v1274 = vcombine.high %v1250, 0.0
        %v1275 = vcombine.high %v1257, 0.0
        %v1276 = vcombine.high %v1266, 0.0
        %v1277 = vcombine.high %v1273, 0.0
        %v1278 = vcombine.low %v1250, %v1257
        %v1280 = vunpack.c.l.s4 1983009808
        %v1281 = vunpack.c.0.s8 %v1280
        %v1282 = vlaneseq
        %v1283 = vshrl.u32 %v1282, 7
        %v1284 = vsub.s32 %v1281, %v1283
        %v1285 = vrot.slane %v1278, %v1284
        %v1286 = vcombine.low %v1274, %v1275
        %v1288 = vunpack.c.l.s4 1983009808
        %v1289 = vunpack.c.0.s8 %v1288
        %v1290 = vlaneseq
        %v1291 = vshrl.u32 %v1290, 7
        %v1292 = vsub.s32 %v1289, %v1291
        %v1293 = vrot.slane %v1286, %v1292
        %v1294 = vcombine.low %v1266, %v1273
        %v1296 = vunpack.c.l.s4 1983009808
        %v1297 = vunpack.c.0.s8 %v1296
        %v1298 = vlaneseq
        %v1299 = vshrl.u32 %v1298, 7
        %v1300 = vsub.s32 %v1297, %v1299
        %v1301 = vrot.slane %v1294, %v1300
        %v1302 = vcombine.low %v1276, %v1277
        %v1304 = vunpack.c.l.s4 1983009808
        %v1305 = vunpack.c.0.s8 %v1304
        %v1306 = vlaneseq
        %v1307 = vshrl.u32 %v1306, 7
        %v1308 = vsub.s32 %v1305, %v1307
        %v1309 = vrot.slane %v1302, %v1308
        %v1310 = vcombine.low %v1285, %v1293
        %v1311 = vcombine.high %v1285, %v1293
        %v1313 = vunpack.c.l.s4 1934713408
        %v1314 = vunpack.c.0.s8 %v1313
        %v1315 = vlaneseq
        %v1316 = vshrl.u32 %v1315, 7
        %v1317 = vsub.s32 %v1314, %v1316
        %v1318 = vrot.slane %v1310, %v1317
        %v1320 = vunpack.c.l.s4 1934713408
        %v1321 = vunpack.c.0.s8 %v1320
        %v1322 = vlaneseq
        %v1323 = vshrl.u32 %v1322, 7
        %v1324 = vsub.s32 %v1321, %v1323
        %v1325 = vrot.slane %v1311, %v1324
        %v1326 = vcombine.low %v1301, %v1309
        %v1327 = vcombine.high %v1301, %v1309
        %v1329 = vunpack.c.l.s4 1934713408
        %v1330 = vunpack.c.0.s8 %v1329
        %v1331 = vlaneseq
        %v1332 = vshrl.u32 %v1331, 7
        %v1333 = vsub.s32 %v1330, %v1332
        %v1334 = vrot.slane %v1326, %v1333
        %v1336 = vunpack.c.l.s4 1934713408
        %v1337 = vunpack.c.0.s8 %v1336
        %v1338 = vlaneseq
        %v1339 = vshrl.u32 %v1338, 7
        %v1340 = vsub.s32 %v1337, %v1339
        %v1341 = vrot.slane %v1327, %v1340
        %v1342 = vcombine.low %v1318, %v1334
        %v1343 = vcombine.high %v1318, %v1334
        %v1344 = vcombine.low %v1325, %v1341
        %v1345 = vcombine.high %v1325, %v1341
        %v1346 = vpack.c.bf16 %v1342, %v1342
        %v1347 = vpack.c.bf16 %v1343, %v1343
        %v1348 = vpack.c.bf16 %v1344, %v1344
        %v1349 = vpack.c.bf16 %v1345, %v1345
        %v1350 = vld [vmem:[#allocation2] sm:$0xf]
        %v1351 = vld [vmem:[#allocation2 + $0x4] sm:$0xf]
        %v1352 = vld [vmem:[#allocation2 + $0x8] sm:$0xf]
        %v1353 = vld [vmem:[#allocation2 + $0xc] sm:$0xf]
        %v1354 = vld [vmem:[#allocation3] sm:$0xf]
        %v1355 = vld [vmem:[#allocation3 + $0x4] sm:$0xf]
        %v1356 = vld [vmem:[#allocation3 + $0x8] sm:$0xf]
        %v1357 = vld [vmem:[#allocation3 + $0xc] sm:$0xf]
        %vm1358 = vcmask 64512
        %v1360 = vsel %vm1358, %v1346, 0
        %v1363 = vsel %vm1358, %v1350, 0
        %1365 = vmatprep.subr.bf16.mxu0 0
        %1366 = vmatpush1.bf16.xpose.msra.mxu0 0
        %1367 = vmatprep.subr.bf16.mxu0 0
        %1368 = vmatpush1.bf16.xpose.msra.mxu0 0
        %1369 = vmatprep.subr.bf16.mxu0 0
        %1370 = vmatpush1.bf16.xpose.msra.mxu0 0
        %1371 = vmatprep.subr.bf16.mxu0 0
        %1372 = vmatpush1.bf16.xpose.msra.mxu0 0
        %1373 = vmatprep.subr.bf16.mxu0 0
        %1374 = vmatpush1.bf16.xpose.msra.mxu0 0
        %1375 = vmatprep.subr.bf16.mxu0 0
        %1376 = vmatpush1.bf16.xpose.msra.mxu0 0
        %1377 = vmatprep.subr.bf16.mxu0 0
        %1378 = vmatpush1.bf16.xpose.msra.mxu0 0
        %1379 = vmatprep.subr.bf16.mxu0 0
        %1380 = vmatpush1.bf16.xpose.msra.mxu0 %v1363
        %1381 = vmatprep.subr.bf16.mxu0 0
        %1382 = vmatpush2.bf16.xpose.msra.mxu0 0
        %1383 = vmatprep.subr.bf16.mxu0 0
        %1384 = vmatpush2.bf16.xpose.msra.mxu0 0
        %1385 = vmatprep.subr.bf16.mxu0 0
        %1386 = vmatpush2.bf16.xpose.msra.mxu0 0
        %1387 = vmatprep.subr.bf16.mxu0 0
        %1388 = vmatpush2.bf16.xpose.msra.mxu0 0
        %1389 = vmatprep.subr.bf16.mxu0 0
        %1390 = vmatpush2.bf16.xpose.msra.mxu0 0
        %1391 = vmatprep.subr.bf16.mxu0 0
        %1392 = vmatpush2.bf16.xpose.msra.mxu0 0
        %1393 = vmatprep.subr.bf16.mxu0 0
        %1394 = vmatpush2.bf16.xpose.msra.mxu0 0
        %1395 = vmatprep.subr.bf16.mxu0 0
        %1396 = vmatpush2.bf16.xpose.msra.mxu0 0
        %1397 = vmatprep.mubr.bf16.mxu0 0
        %1398 = vmatmul.mubr.bf16.gmra.mxu0 %v1360
        %v1399 = vpop.f32.mrf.mxu0
        %v1400 = vadd.f32 0.0, %v1399
        %v1401 = vpop.f32.mrf.mxu0
        %v1402 = vpop.f32.mrf.mxu0
        %v1403 = vpop.f32.mrf.mxu0
        %1404 = vdwg.mxu0
        %v1406 = vsel %vm1358, %v1347, 0
        %v1409 = vsel %vm1358, %v1351, 0
        %1411 = vmatprep.subr.bf16.mxu0 0
        %1412 = vmatpush1.bf16.xpose.msra.mxu0 0
        %1413 = vmatprep.subr.bf16.mxu0 0
        %1414 = vmatpush1.bf16.xpose.msra.mxu0 0
        %1415 = vmatprep.subr.bf16.mxu0 0
        %1416 = vmatpush1.bf16.xpose.msra.mxu0 0
        %1417 = vmatprep.subr.bf16.mxu0 0
        %1418 = vmatpush1.bf16.xpose.msra.mxu0 0
        %1419 = vmatprep.subr.bf16.mxu0 0
        %1420 = vmatpush1.bf16.xpose.msra.mxu0 0
        %1421 = vmatprep.subr.bf16.mxu0 0
        %1422 = vmatpush1.bf16.xpose.msra.mxu0 0
        %1423 = vmatprep.subr.bf16.mxu0 0
        %1424 = vmatpush1.bf16.xpose.msra.mxu0 0
        %1425 = vmatprep.subr.bf16.mxu0 0
        %1426 = vmatpush1.bf16.xpose.msra.mxu0 %v1409
        %1427 = vmatprep.subr.bf16.mxu0 0
        %1428 = vmatpush2.bf16.xpose.msra.mxu0 0
        %1429 = vmatprep.subr.bf16.mxu0 0
        %1430 = vmatpush2.bf16.xpose.msra.mxu0 0
        %1431 = vmatprep.subr.bf16.mxu0 0
        %1432 = vmatpush2.bf16.xpose.msra.mxu0 0
        %1433 = vmatprep.subr.bf16.mxu0 0
        %1434 = vmatpush2.bf16.xpose.msra.mxu0 0
        %1435 = vmatprep.subr.bf16.mxu0 0
        %1436 = vmatpush2.bf16.xpose.msra.mxu0 0
        %1437 = vmatprep.subr.bf16.mxu0 0
        %1438 = vmatpush2.bf16.xpose.msra.mxu0 0
        %1439 = vmatprep.subr.bf16.mxu0 0
        %1440 = vmatpush2.bf16.xpose.msra.mxu0 0
        %1441 = vmatprep.subr.bf16.mxu0 0
        %1442 = vmatpush2.bf16.xpose.msra.mxu0 0
        %1443 = vmatprep.mubr.bf16.mxu0 0
        %1444 = vmatmul.mubr.bf16.gmra.mxu0 %v1406
        %v1445 = vpop.f32.mrf.mxu0
        %v1446 = vadd.f32 0.0, %v1445
        %v1447 = vpop.f32.mrf.mxu0
        %v1448 = vpop.f32.mrf.mxu0
        %v1449 = vpop.f32.mrf.mxu0
        %1450 = vdwg.mxu0
        %v1452 = vsel %vm1358, %v1348, 0
        %v1455 = vsel %vm1358, %v1352, 0
        %1457 = vmatprep.subr.bf16.mxu0 0
        %1458 = vmatpush1.bf16.xpose.msra.mxu0 0
        %1459 = vmatprep.subr.bf16.mxu0 0
        %1460 = vmatpush1.bf16.xpose.msra.mxu0 0
        %1461 = vmatprep.subr.bf16.mxu0 0
        %1462 = vmatpush1.bf16.xpose.msra.mxu0 0
        %1463 = vmatprep.subr.bf16.mxu0 0
        %1464 = vmatpush1.bf16.xpose.msra.mxu0 0
        %1465 = vmatprep.subr.bf16.mxu0 0
        %1466 = vmatpush1.bf16.xpose.msra.mxu0 0
        %1467 = vmatprep.subr.bf16.mxu0 0
        %1468 = vmatpush1.bf16.xpose.msra.mxu0 0
        %1469 = vmatprep.subr.bf16.mxu0 0
        %1470 = vmatpush1.bf16.xpose.msra.mxu0 0
        %1471 = vmatprep.subr.bf16.mxu0 0
        %1472 = vmatpush1.bf16.xpose.msra.mxu0 %v1455
        %1473 = vmatprep.subr.bf16.mxu0 0
        %1474 = vmatpush2.bf16.xpose.msra.mxu0 0
        %1475 = vmatprep.subr.bf16.mxu0 0
        %1476 = vmatpush2.bf16.xpose.msra.mxu0 0
        %1477 = vmatprep.subr.bf16.mxu0 0
        %1478 = vmatpush2.bf16.xpose.msra.mxu0 0
        %1479 = vmatprep.subr.bf16.mxu0 0
        %1480 = vmatpush2.bf16.xpose.msra.mxu0 0
        %1481 = vmatprep.subr.bf16.mxu0 0
        %1482 = vmatpush2.bf16.xpose.msra.mxu0 0
        %1483 = vmatprep.subr.bf16.mxu0 0
        %1484 = vmatpush2.bf16.xpose.msra.mxu0 0
        %1485 = vmatprep.subr.bf16.mxu0 0
        %1486 = vmatpush2.bf16.xpose.msra.mxu0 0
        %1487 = vmatprep.subr.bf16.mxu0 0
        %1488 = vmatpush2.bf16.xpose.msra.mxu0 0
        %1489 = vmatprep.mubr.bf16.mxu0 0
        %1490 = vmatmul.mubr.bf16.gmra.mxu0 %v1452
        %v1491 = vpop.f32.mrf.mxu0
        %v1492 = vadd.f32 0.0, %v1491
        %v1493 = vpop.f32.mrf.mxu0
        %v1494 = vpop.f32.mrf.mxu0
        %v1495 = vpop.f32.mrf.mxu0
        %1496 = vdwg.mxu0
        %v1498 = vsel %vm1358, %v1349, 0
        %v1501 = vsel %vm1358, %v1353, 0
        %1503 = vmatprep.subr.bf16.mxu0 0
        %1504 = vmatpush1.bf16.xpose.msra.mxu0 0
        %1505 = vmatprep.subr.bf16.mxu0 0
        %1506 = vmatpush1.bf16.xpose.msra.mxu0 0
        %1507 = vmatprep.subr.bf16.mxu0 0
        %1508 = vmatpush1.bf16.xpose.msra.mxu0 0
        %1509 = vmatprep.subr.bf16.mxu0 0
        %1510 = vmatpush1.bf16.xpose.msra.mxu0 0
        %1511 = vmatprep.subr.bf16.mxu0 0
        %1512 = vmatpush1.bf16.xpose.msra.mxu0 0
        %1513 = vmatprep.subr.bf16.mxu0 0
        %1514 = vmatpush1.bf16.xpose.msra.mxu0 0
        %1515 = vmatprep.subr.bf16.mxu0 0
        %1516 = vmatpush1.bf16.xpose.msra.mxu0 0
        %1517 = vmatprep.subr.bf16.mxu0 0
        %1518 = vmatpush1.bf16.xpose.msra.mxu0 %v1501
        %1519 = vmatprep.subr.bf16.mxu0 0
        %1520 = vmatpush2.bf16.xpose.msra.mxu0 0
        %1521 = vmatprep.subr.bf16.mxu0 0
        %1522 = vmatpush2.bf16.xpose.msra.mxu0 0
        %1523 = vmatprep.subr.bf16.mxu0 0
        %1524 = vmatpush2.bf16.xpose.msra.mxu0 0
        %1525 = vmatprep.subr.bf16.mxu0 0
        %1526 = vmatpush2.bf16.xpose.msra.mxu0 0
        %1527 = vmatprep.subr.bf16.mxu0 0
        %1528 = vmatpush2.bf16.xpose.msra.mxu0 0
        %1529 = vmatprep.subr.bf16.mxu0 0
        %1530 = vmatpush2.bf16.xpose.msra.mxu0 0
        %1531 = vmatprep.subr.bf16.mxu0 0
        %1532 = vmatpush2.bf16.xpose.msra.mxu0 0
        %1533 = vmatprep.subr.bf16.mxu0 0
        %1534 = vmatpush2.bf16.xpose.msra.mxu0 0
        %1535 = vmatprep.mubr.bf16.mxu0 0
        %1536 = vmatmul.mubr.bf16.gmra.mxu0 %v1498
        %v1537 = vpop.f32.mrf.mxu0
        %v1538 = vadd.f32 0.0, %v1537
        %v1539 = vpop.f32.mrf.mxu0
        %v1540 = vpop.f32.mrf.mxu0
        %v1541 = vpop.f32.mrf.mxu0
        %1542 = vdwg.mxu0
        %v1543 = vsel %vm1358, %v1400, -inf
        %1544 = vmax.xlane.f32.xlu0 %v1543
        %v1545 = vpop.xlane.xlu0 %1544
        %v1546 = vsel %vm1358, %v1446, -inf
        %1547 = vmax.xlane.f32.xlu0 %v1546
        %v1548 = vpop.xlane.xlu0 %1547
        %v1549 = vsel %vm1358, %v1492, -inf
        %1550 = vmax.xlane.f32.xlu0 %v1549
        %v1551 = vpop.xlane.xlu0 %1550
        %v1552 = vsel %vm1358, %v1538, -inf
        %1553 = vmax.xlane.f32.xlu0 %v1552
        %v1554 = vpop.xlane.xlu0 %1553
        %v1555 = vsub.f32 -inf, %v1545
        %v1556 = vsub.f32 -inf, %v1548
        %v1557 = vsub.f32 -inf, %v1551
        %v1558 = vsub.f32 -inf, %v1554
        %v1559 = vmul.f32 %v1555, 1.442695
        %v1560 = vpow.pop %v1559
        %v1561 = vmul.f32 %v1556, 1.442695
        %v1562 = vpow.pop %v1561
        %v1563 = vmul.f32 %v1557, 1.442695
        %v1564 = vpow.pop %v1563
        %v1565 = vmul.f32 %v1558, 1.442695
        %v1566 = vpow.pop %v1565
        %v1567 = vsub.f32 %v1400, %v1545
        %v1568 = vsub.f32 %v1446, %v1548
        %v1569 = vsub.f32 %v1492, %v1551
        %v1570 = vsub.f32 %v1538, %v1554
        %v1571 = vmul.f32 %v1567, 1.442695
        %v1572 = vpow.pop %v1571
        %v1573 = vmul.f32 %v1568, 1.442695
        %v1574 = vpow.pop %v1573
        %v1575 = vmul.f32 %v1569, 1.442695
        %v1576 = vpow.pop %v1575
        %v1577 = vmul.f32 %v1570, 1.442695
        %v1578 = vpow.pop %v1577
        %v1579 = vmul.f32 %v1560, 0.0
        %v1580 = vmul.f32 %v1562, 0.0
        %v1581 = vmul.f32 %v1564, 0.0
        %v1582 = vmul.f32 %v1566, 0.0
        %v1583 = vsel %vm1358, %v1572, 0.0
        %1584 = vadd.xlane.f32.xlu0 %v1583
        %v1585 = vpop.xlane.xlu0 %1584
        %v1586 = vsel %vm1358, %v1574, 0.0
        %1587 = vadd.xlane.f32.xlu0 %v1586
        %v1588 = vpop.xlane.xlu0 %1587
        %v1589 = vsel %vm1358, %v1576, 0.0
        %1590 = vadd.xlane.f32.xlu0 %v1589
        %v1591 = vpop.xlane.xlu0 %1590
        %v1592 = vsel %vm1358, %v1578, 0.0
        %1593 = vadd.xlane.f32.xlu0 %v1592
        %v1594 = vpop.xlane.xlu0 %1593
        %v1595 = vadd.f32 %v1579, %v1585
        %v1596 = vadd.f32 %v1580, %v1588
        %v1597 = vadd.f32 %v1581, %v1591
        %v1598 = vadd.f32 %v1582, %v1594
        %v1599 = vpack.c.bf16 %v1572, %v1572
        %v1600 = vpack.c.bf16 %v1574, %v1574
        %v1601 = vpack.c.bf16 %v1576, %v1576
        %v1602 = vpack.c.bf16 %v1578, %v1578
        %v1604 = vsel %vm1358, %v1599, 0
        %vm1606 = vcmask 1043456
        %v1608 = vsel %vm1606, %v1354, 0
        %1610 = vmatprep.subr.bf16.mxu0 0
        %1611 = vmatpush1.bf16.msra.mxu0 0
        %1612 = vmatprep.subr.bf16.mxu0 0
        %1613 = vmatpush1.bf16.msra.mxu0 0
        %1614 = vmatprep.subr.bf16.mxu0 0
        %1615 = vmatpush1.bf16.msra.mxu0 0
        %1616 = vmatprep.subr.bf16.mxu0 0
        %1617 = vmatpush1.bf16.msra.mxu0 0
        %1618 = vmatprep.subr.bf16.mxu0 0
        %1619 = vmatpush1.bf16.msra.mxu0 0
        %1620 = vmatprep.subr.bf16.mxu0 0
        %1621 = vmatpush1.bf16.msra.mxu0 0
        %1622 = vmatprep.subr.bf16.mxu0 0
        %1623 = vmatpush1.bf16.msra.mxu0 0
        %1624 = vmatprep.subr.bf16.mxu0 0
        %1625 = vmatpush1.bf16.msra.mxu0 %v1608
        %1626 = vmatprep.subr.bf16.mxu0 0
        %1627 = vmatpush2.bf16.msra.mxu0 0
        %1628 = vmatprep.subr.bf16.mxu0 0
        %1629 = vmatpush2.bf16.msra.mxu0 0
        %1630 = vmatprep.subr.bf16.mxu0 0
        %1631 = vmatpush2.bf16.msra.mxu0 0
        %1632 = vmatprep.subr.bf16.mxu0 0
        %1633 = vmatpush2.bf16.msra.mxu0 0
        %1634 = vmatprep.subr.bf16.mxu0 0
        %1635 = vmatpush2.bf16.msra.mxu0 0
        %1636 = vmatprep.subr.bf16.mxu0 0
        %1637 = vmatpush2.bf16.msra.mxu0 0
        %1638 = vmatprep.subr.bf16.mxu0 0
        %1639 = vmatpush2.bf16.msra.mxu0 0
        %1640 = vmatprep.subr.bf16.mxu0 0
        %1641 = vmatpush2.bf16.msra.mxu0 0
        %1642 = vmatprep.mubr.bf16.mxu0 0
        %1643 = vmatmul.mubr.bf16.gmra.mxu0 %v1604
        %v1644 = vpop.f32.mrf.mxu0
        %v1645 = vadd.f32 0.0, %v1644
        %v1646 = vpop.f32.mrf.mxu0
        %v1647 = vpop.f32.mrf.mxu0
        %v1648 = vpop.f32.mrf.mxu0
        %1649 = vdwg.mxu0
        %v1651 = vsel %vm1358, %v1600, 0
        %v1654 = vsel %vm1606, %v1355, 0
        %1656 = vmatprep.subr.bf16.mxu0 0
        %1657 = vmatpush1.bf16.msra.mxu0 0
        %1658 = vmatprep.subr.bf16.mxu0 0
        %1659 = vmatpush1.bf16.msra.mxu0 0
        %1660 = vmatprep.subr.bf16.mxu0 0
        %1661 = vmatpush1.bf16.msra.mxu0 0
        %1662 = vmatprep.subr.bf16.mxu0 0
        %1663 = vmatpush1.bf16.msra.mxu0 0
        %1664 = vmatprep.subr.bf16.mxu0 0
        %1665 = vmatpush1.bf16.msra.mxu0 0
        %1666 = vmatprep.subr.bf16.mxu0 0
        %1667 = vmatpush1.bf16.msra.mxu0 0
        %1668 = vmatprep.subr.bf16.mxu0 0
        %1669 = vmatpush1.bf16.msra.mxu0 0
        %1670 = vmatprep.subr.bf16.mxu0 0
        %1671 = vmatpush1.bf16.msra.mxu0 %v1654
        %1672 = vmatprep.subr.bf16.mxu0 0
        %1673 = vmatpush2.bf16.msra.mxu0 0
        %1674 = vmatprep.subr.bf16.mxu0 0
        %1675 = vmatpush2.bf16.msra.mxu0 0
        %1676 = vmatprep.subr.bf16.mxu0 0
        %1677 = vmatpush2.bf16.msra.mxu0 0
        %1678 = vmatprep.subr.bf16.mxu0 0
        %1679 = vmatpush2.bf16.msra.mxu0 0
        %1680 = vmatprep.subr.bf16.mxu0 0
        %1681 = vmatpush2.bf16.msra.mxu0 0
        %1682 = vmatprep.subr.bf16.mxu0 0
        %1683 = vmatpush2.bf16.msra.mxu0 0
        %1684 = vmatprep.subr.bf16.mxu0 0
        %1685 = vmatpush2.bf16.msra.mxu0 0
        %1686 = vmatprep.subr.bf16.mxu0 0
        %1687 = vmatpush2.bf16.msra.mxu0 0
        %1688 = vmatprep.mubr.bf16.mxu0 0
        %1689 = vmatmul.mubr.bf16.gmra.mxu0 %v1651
        %v1690 = vpop.f32.mrf.mxu0
        %v1691 = vadd.f32 0.0, %v1690
        %v1692 = vpop.f32.mrf.mxu0
        %v1693 = vpop.f32.mrf.mxu0
        %v1694 = vpop.f32.mrf.mxu0
        %1695 = vdwg.mxu0
        %v1697 = vsel %vm1358, %v1601, 0
        %v1700 = vsel %vm1606, %v1356, 0
        %1702 = vmatprep.subr.bf16.mxu0 0
        %1703 = vmatpush1.bf16.msra.mxu0 0
        %1704 = vmatprep.subr.bf16.mxu0 0
        %1705 = vmatpush1.bf16.msra.mxu0 0
        %1706 = vmatprep.subr.bf16.mxu0 0
        %1707 = vmatpush1.bf16.msra.mxu0 0
        %1708 = vmatprep.subr.bf16.mxu0 0
        %1709 = vmatpush1.bf16.msra.mxu0 0
        %1710 = vmatprep.subr.bf16.mxu0 0
        %1711 = vmatpush1.bf16.msra.mxu0 0
        %1712 = vmatprep.subr.bf16.mxu0 0
        %1713 = vmatpush1.bf16.msra.mxu0 0
        %1714 = vmatprep.subr.bf16.mxu0 0
        %1715 = vmatpush1.bf16.msra.mxu0 0
        %1716 = vmatprep.subr.bf16.mxu0 0
        %1717 = vmatpush1.bf16.msra.mxu0 %v1700
        %1718 = vmatprep.subr.bf16.mxu0 0
        %1719 = vmatpush2.bf16.msra.mxu0 0
        %1720 = vmatprep.subr.bf16.mxu0 0
        %1721 = vmatpush2.bf16.msra.mxu0 0
        %1722 = vmatprep.subr.bf16.mxu0 0
        %1723 = vmatpush2.bf16.msra.mxu0 0
        %1724 = vmatprep.subr.bf16.mxu0 0
        %1725 = vmatpush2.bf16.msra.mxu0 0
        %1726 = vmatprep.subr.bf16.mxu0 0
        %1727 = vmatpush2.bf16.msra.mxu0 0
        %1728 = vmatprep.subr.bf16.mxu0 0
        %1729 = vmatpush2.bf16.msra.mxu0 0
        %1730 = vmatprep.subr.bf16.mxu0 0
        %1731 = vmatpush2.bf16.msra.mxu0 0
        %1732 = vmatprep.subr.bf16.mxu0 0
        %1733 = vmatpush2.bf16.msra.mxu0 0
        %1734 = vmatprep.mubr.bf16.mxu0 0
        %1735 = vmatmul.mubr.bf16.gmra.mxu0 %v1697
        %v1736 = vpop.f32.mrf.mxu0
        %v1737 = vadd.f32 0.0, %v1736
        %v1738 = vpop.f32.mrf.mxu0
        %v1739 = vpop.f32.mrf.mxu0
        %v1740 = vpop.f32.mrf.mxu0
        %1741 = vdwg.mxu0
        %v1743 = vsel %vm1358, %v1602, 0
        %v1746 = vsel %vm1606, %v1357, 0
        %1748 = vmatprep.subr.bf16.mxu0 0
        %1749 = vmatpush1.bf16.msra.mxu0 0
        %1750 = vmatprep.subr.bf16.mxu0 0
        %1751 = vmatpush1.bf16.msra.mxu0 0
        %1752 = vmatprep.subr.bf16.mxu0 0
        %1753 = vmatpush1.bf16.msra.mxu0 0
        %1754 = vmatprep.subr.bf16.mxu0 0
        %1755 = vmatpush1.bf16.msra.mxu0 0
        %1756 = vmatprep.subr.bf16.mxu0 0
        %1757 = vmatpush1.bf16.msra.mxu0 0
        %1758 = vmatprep.subr.bf16.mxu0 0
        %1759 = vmatpush1.bf16.msra.mxu0 0
        %1760 = vmatprep.subr.bf16.mxu0 0
        %1761 = vmatpush1.bf16.msra.mxu0 0
        %1762 = vmatprep.subr.bf16.mxu0 0
        %1763 = vmatpush1.bf16.msra.mxu0 %v1746
        %1764 = vmatprep.subr.bf16.mxu0 0
        %1765 = vmatpush2.bf16.msra.mxu0 0
        %1766 = vmatprep.subr.bf16.mxu0 0
        %1767 = vmatpush2.bf16.msra.mxu0 0
        %1768 = vmatprep.subr.bf16.mxu0 0
        %1769 = vmatpush2.bf16.msra.mxu0 0
        %1770 = vmatprep.subr.bf16.mxu0 0
        %1771 = vmatpush2.bf16.msra.mxu0 0
        %1772 = vmatprep.subr.bf16.mxu0 0
        %1773 = vmatpush2.bf16.msra.mxu0 0
        %1774 = vmatprep.subr.bf16.mxu0 0
        %1775 = vmatpush2.bf16.msra.mxu0 0
        %1776 = vmatprep.subr.bf16.mxu0 0
        %1777 = vmatpush2.bf16.msra.mxu0 0
        %1778 = vmatprep.subr.bf16.mxu0 0
        %1779 = vmatpush2.bf16.msra.mxu0 0
        %1780 = vmatprep.mubr.bf16.mxu0 0
        %1781 = vmatmul.mubr.bf16.gmra.mxu0 %v1743
        %v1782 = vpop.f32.mrf.mxu0
        %v1783 = vadd.f32 0.0, %v1782
        %v1784 = vpop.f32.mrf.mxu0
        %v1785 = vpop.f32.mrf.mxu0
        %v1786 = vpop.f32.mrf.mxu0
        %1787 = vdwg.mxu0
        %v1788 = vadd.f32 %v1579, %v1645
        %v1789 = vadd.f32 %v1580, %v1691
        %v1790 = vadd.f32 %v1581, %v1737
        %v1791 = vadd.f32 %v1582, %v1783
        %v1792 = vrcp.pop %v1595
        %v1793 = vrcp.pop %v1596
        %v1794 = vrcp.pop %v1597
        %v1795 = vrcp.pop %v1598
        %v1796 = vmul.f32 %v1788, %v1792
        %v1797 = vmul.f32 %v1789, %v1793
        %v1798 = vmul.f32 %v1790, %v1794
        %v1799 = vmul.f32 %v1791, %v1795
        %v1800 = vcombine.low %v1796, %v1798
        %v1801 = vcombine.high %v1796, %v1798
        %v1803 = vunpack.c.l.s4 1983009808
        %v1804 = vunpack.c.0.s8 %v1803
        %v1805 = vlaneseq
        %v1806 = vshrl.u32 %v1805, 7
        %v1807 = vsub.s32 %v1804, %v1806
        %v1808 = vrot.slane %v1800, %v1807
        %v1810 = vunpack.c.l.s4 1983009808
        %v1811 = vunpack.c.0.s8 %v1810
        %v1812 = vlaneseq
        %v1813 = vshrl.u32 %v1812, 7
        %v1814 = vsub.s32 %v1811, %v1813
        %v1815 = vrot.slane %v1801, %v1814
        %v1816 = vcombine.low %v1797, %v1799
        %v1817 = vcombine.high %v1797, %v1799
        %v1819 = vunpack.c.l.s4 1983009808
        %v1820 = vunpack.c.0.s8 %v1819
        %v1821 = vlaneseq
        %v1822 = vshrl.u32 %v1821, 7
        %v1823 = vsub.s32 %v1820, %v1822
        %v1824 = vrot.slane %v1816, %v1823
        %v1826 = vunpack.c.l.s4 1983009808
        %v1827 = vunpack.c.0.s8 %v1826
        %v1828 = vlaneseq
        %v1829 = vshrl.u32 %v1828, 7
        %v1830 = vsub.s32 %v1827, %v1829
        %v1831 = vrot.slane %v1817, %v1830
        %v1832 = vcombine.low %v1808, %v1824
        %v1833 = vcombine.high %v1808, %v1824
        %v1835 = vunpack.c.l.s4 1934713408
        %v1836 = vunpack.c.0.s8 %v1835
        %v1837 = vlaneseq
        %v1838 = vshrl.u32 %v1837, 7
        %v1839 = vsub.s32 %v1836, %v1838
        %v1840 = vrot.slane %v1832, %v1839
        %v1842 = vunpack.c.l.s4 1934713408
        %v1843 = vunpack.c.0.s8 %v1842
        %v1844 = vlaneseq
        %v1845 = vshrl.u32 %v1844, 7
        %v1846 = vsub.s32 %v1843, %v1845
        %v1847 = vrot.slane %v1833, %v1846
        %v1848 = vcombine.low %v1815, %v1831
        %v1849 = vcombine.high %v1815, %v1831
        %v1851 = vunpack.c.l.s4 1934713408
        %v1852 = vunpack.c.0.s8 %v1851
        %v1853 = vlaneseq
        %v1854 = vshrl.u32 %v1853, 7
        %v1855 = vsub.s32 %v1852, %v1854
        %v1856 = vrot.slane %v1848, %v1855
        %v1858 = vunpack.c.l.s4 1934713408
        %v1859 = vunpack.c.0.s8 %v1858
        %v1860 = vlaneseq
        %v1861 = vshrl.u32 %v1860, 7
        %v1862 = vsub.s32 %v1859, %v1861
        %v1863 = vrot.slane %v1849, %v1862
        %v1864 = vcombine.high %v1840, 0.0
        %v1865 = vcombine.high %v1847, 0.0
        %v1866 = vcombine.high %v1856, 0.0
        %v1867 = vcombine.high %v1863, 0.0
        %v1868 = vcombine.low %v1840, %v1847
        %v1870 = vunpack.c.l.s4 1983009808
        %v1871 = vunpack.c.0.s8 %v1870
        %v1872 = vlaneseq
        %v1873 = vshrl.u32 %v1872, 7
        %v1874 = vsub.s32 %v1871, %v1873
        %v1875 = vrot.slane %v1868, %v1874
        %v1876 = vcombine.low %v1864, %v1865
        %v1878 = vunpack.c.l.s4 1983009808
        %v1879 = vunpack.c.0.s8 %v1878
        %v1880 = vlaneseq
        %v1881 = vshrl.u32 %v1880, 7
        %v1882 = vsub.s32 %v1879, %v1881
        %v1883 = vrot.slane %v1876, %v1882
        %v1884 = vcombine.low %v1856, %v1863
        %v1886 = vunpack.c.l.s4 1983009808
        %v1887 = vunpack.c.0.s8 %v1886
        %v1888 = vlaneseq
        %v1889 = vshrl.u32 %v1888, 7
        %v1890 = vsub.s32 %v1887, %v1889
        %v1891 = vrot.slane %v1884, %v1890
        %v1892 = vcombine.low %v1866, %v1867
        %v1894 = vunpack.c.l.s4 1983009808
        %v1895 = vunpack.c.0.s8 %v1894
        %v1896 = vlaneseq
        %v1897 = vshrl.u32 %v1896, 7
        %v1898 = vsub.s32 %v1895, %v1897
        %v1899 = vrot.slane %v1892, %v1898
        %v1900 = vcombine.low %v1875, %v1883
        %v1901 = vcombine.high %v1875, %v1883
        %v1903 = vunpack.c.l.s4 1934713408
        %v1904 = vunpack.c.0.s8 %v1903
        %v1905 = vlaneseq
        %v1906 = vshrl.u32 %v1905, 7
        %v1907 = vsub.s32 %v1904, %v1906
        %v1908 = vrot.slane %v1900, %v1907
        %v1910 = vunpack.c.l.s4 1934713408
        %v1911 = vunpack.c.0.s8 %v1910
        %v1912 = vlaneseq
        %v1913 = vshrl.u32 %v1912, 7
        %v1914 = vsub.s32 %v1911, %v1913
        %v1915 = vrot.slane %v1901, %v1914
        %v1916 = vcombine.low %v1891, %v1899
        %v1917 = vcombine.high %v1891, %v1899
        %v1919 = vunpack.c.l.s4 1934713408
        %v1920 = vunpack.c.0.s8 %v1919
        %v1921 = vlaneseq
        %v1922 = vshrl.u32 %v1921, 7
        %v1923 = vsub.s32 %v1920, %v1922
        %v1924 = vrot.slane %v1916, %v1923
        %v1926 = vunpack.c.l.s4 1934713408
        %v1927 = vunpack.c.0.s8 %v1926
        %v1928 = vlaneseq
        %v1929 = vshrl.u32 %v1928, 7
        %v1930 = vsub.s32 %v1927, %v1929
        %v1931 = vrot.slane %v1917, %v1930
        %v1932 = vcombine.low %v1908, %v1924
        %v1933 = vcombine.high %v1908, %v1924
        %v1934 = vcombine.low %v1915, %v1931
        %v1935 = vcombine.high %v1915, %v1931
        %1937 = vrot.lane.b32.xlu0 %v1933, 8
        %v1938 = vpop.permute.xlu0 %1937
        %1941 = vrot.lane.b32.xlu0 %v1934, 16
        %v1942 = vpop.permute.xlu0 %1941
        %1945 = vrot.lane.b32.xlu0 %v1935, 24
        %v1946 = vpop.permute.xlu0 %1945
        %v1948 = vsel %vm1358, %v1932, %v1938
        %vm1949 = vcmask 130048
        %v1950 = vsel %vm1949, %v1948, %v1942
        %vm1951 = vcmask 195584
        %v1952 = vsel %vm1951, %v1950, %v1946
        %v1953 = vpack.c.bf16 %v1952, %v1952
        %v1954 = vld [vmem:[#allocation13] sm:$0xf]
        %v1955 = vld [vmem:[#allocation13 + $0x4] sm:$0xf]
        %v1956 = vld [vmem:[#allocation13 + $0x8] sm:$0xf]
        %v1957 = vld [vmem:[#allocation13 + $0xc] sm:$0xf]
        %v1962 = vunpack.c.l.b16 %v1954
        %v1963 = vunpack.c.l.b16 %v1955
        %v1964 = vunpack.c.l.b16 %v1956
        %v1965 = vunpack.c.l.b16 %v1957
        %v1966 = vpack.c.b16 %v1963, %v1962
        %v1967 = vpack.c.b16 %v1965, %v1964
        %v1971 = vsel %vm1155, %v1953, 0
        %1973 = vmatprep.subr.bf16.mxu0 0
        %1974 = vmatpush1.bf16.msra.mxu0 0
        %1975 = vmatprep.subr.bf16.mxu0 0
        %1976 = vmatpush1.bf16.msra.mxu0 0
        %1977 = vmatprep.subr.bf16.mxu0 0
        %1978 = vmatpush1.bf16.msra.mxu0 0
        %1979 = vmatprep.subr.bf16.mxu0 0
        %1980 = vmatpush1.bf16.msra.mxu0 0
        %1981 = vmatprep.subr.bf16.mxu0 0
        %1982 = vmatpush1.bf16.msra.mxu0 0
        %1983 = vmatprep.subr.bf16.mxu0 0
        %1984 = vmatpush1.bf16.msra.mxu0 0
        %1985 = vmatprep.subr.bf16.mxu0 0
        %1986 = vmatpush1.bf16.msra.mxu0 %v1967
        %1987 = vmatprep.subr.bf16.mxu0 0
        %1988 = vmatpush1.bf16.msra.mxu0 %v1966
        %1989 = vmatprep.subr.bf16.mxu0 0
        %1990 = vmatpush2.bf16.msra.mxu0 0
        %1991 = vmatprep.subr.bf16.mxu0 0
        %1992 = vmatpush2.bf16.msra.mxu0 0
        %1993 = vmatprep.subr.bf16.mxu0 0
        %1994 = vmatpush2.bf16.msra.mxu0 0
        %1995 = vmatprep.subr.bf16.mxu0 0
        %1996 = vmatpush2.bf16.msra.mxu0 0
        %1997 = vmatprep.subr.bf16.mxu0 0
        %1998 = vmatpush2.bf16.msra.mxu0 0
        %1999 = vmatprep.subr.bf16.mxu0 0
        %2000 = vmatpush2.bf16.msra.mxu0 0
        %2001 = vmatprep.subr.bf16.mxu0 0
        %2002 = vmatpush2.bf16.msra.mxu0 0
        %2003 = vmatprep.subr.bf16.mxu0 0
        %2004 = vmatpush2.bf16.msra.mxu0 0
        %2005 = vmatprep.mubr.bf16.mxu0 0
        %2006 = vmatmul.mubr.bf16.gmra.mxu0 %v1971
        %v2007 = vpop.f32.mrf.mxu0
        %v2008 = vadd.f32 %v1130, %v2007
        %v2009 = vpop.f32.mrf.mxu0
        %v2010 = vpop.f32.mrf.mxu0
        %v2011 = vpop.f32.mrf.mxu0
        %2012 = vdwg.mxu0
        %v2013 = vld [vmem:[#allocation15] sm:$0x1]
        %v2014 = vld [vmem:[%s10] sm:$0x1]
        %v2015 = vsel %vm1155, %v2008, 0.0
        %2016 = vadd.xlane.f32.xlu0 %v2015
        %v2017 = vpop.xlane.xlu0 %2016
        %v2018 = vrcp.pop 32.0
        %v2019 = vmul.f32 %v2017, %v2018
        %v2020 = vsub.f32 %v2008, %v2019
        %v2021 = vmul.f32 %v2020, %v2020
        %v2022 = vsel %vm1155, %v2021, 0.0
        %2023 = vadd.xlane.f32.xlu0 %v2022
        %v2024 = vpop.xlane.xlu0 %2023
        %v2025 = vmul.f32 %v2024, %v2018
        %v2026 = vadd.f32 %v2025, 1e-05
        %v2027 = vrsqrt.pop %v2026
        %v2028 = vmul.f32 %v2020, %v2027
        %v2030 = vlaneseq
        %v2031 = vshrl.u32 %v2030, 7
        %v2032 = vsub.s32 0, %v2031
        %v2033 = vrot.slane %v2013, %v2032
        %v2035 = vmul.f32 %v2028, %v2033
        %v2037 = vlaneseq
        %v2038 = vshrl.u32 %v2037, 7
        %v2039 = vsub.s32 0, %v2038
        %v2040 = vrot.slane %v2014, %v2039
        %v2042 = vadd.f32 %v2035, %v2040
        %v2043 = vpack.c.bf16 %v2042, %v2042
        %v2044 = vld [vmem:[%s11] sm:$0xf]
        %v2045 = vld [vmem:[%s11 + $0x4] sm:$0xf]
        %v2046 = vld [vmem:[%s11 + $0x8] sm:$0xf]
        %v2047 = vld [vmem:[%s11 + $0xc] sm:$0xf]
        %v2048 = vld [vmem:[%s12] sm:$0x1]
        %v2050 = vlaneseq
        %v2051 = vshrl.u32 %v2050, 7
        %v2052 = vsub.s32 0, %v2051
        %v2053 = vrot.slane %v2048, %v2052
        %v2059 = vunpack.c.l.b16 %v2044
        %v2060 = vunpack.c.l.b16 %v2045
        %v2061 = vunpack.c.l.b16 %v2046
        %v2062 = vunpack.c.l.b16 %v2047
        %v2063 = vpack.c.b16 %v2060, %v2059
        %v2064 = vpack.c.b16 %v2062, %v2061
        %v2068 = vsel %vm1155, %v2043, 0
        %2070 = vmatprep.subr.bf16.mxu0 0
        %2071 = vmatpush1.bf16.msra.mxu0 0
        %2072 = vmatprep.subr.bf16.mxu0 0
        %2073 = vmatpush1.bf16.msra.mxu0 0
        %2074 = vmatprep.subr.bf16.mxu0 0
        %2075 = vmatpush1.bf16.msra.mxu0 0
        %2076 = vmatprep.subr.bf16.mxu0 0
        %2077 = vmatpush1.bf16.msra.mxu0 0
        %2078 = vmatprep.subr.bf16.mxu0 0
        %2079 = vmatpush1.bf16.msra.mxu0 0
        %2080 = vmatprep.subr.bf16.mxu0 0
        %2081 = vmatpush1.bf16.msra.mxu0 0
        %2082 = vmatprep.subr.bf16.mxu0 0
        %2083 = vmatpush1.bf16.msra.mxu0 %v2064
        %2084 = vmatprep.subr.bf16.mxu0 0
        %2085 = vmatpush1.bf16.msra.mxu0 %v2063
        %2086 = vmatprep.subr.bf16.mxu0 0
        %2087 = vmatpush2.bf16.msra.mxu0 0
        %2088 = vmatprep.subr.bf16.mxu0 0
        %2089 = vmatpush2.bf16.msra.mxu0 0
        %2090 = vmatprep.subr.bf16.mxu0 0
        %2091 = vmatpush2.bf16.msra.mxu0 0
        %2092 = vmatprep.subr.bf16.mxu0 0
        %2093 = vmatpush2.bf16.msra.mxu0 0
        %2094 = vmatprep.subr.bf16.mxu0 0
        %2095 = vmatpush2.bf16.msra.mxu0 0
        %2096 = vmatprep.subr.bf16.mxu0 0
        %2097 = vmatpush2.bf16.msra.mxu0 0
        %2098 = vmatprep.subr.bf16.mxu0 0
        %2099 = vmatpush2.bf16.msra.mxu0 0
        %2100 = vmatprep.subr.bf16.mxu0 0
        %2101 = vmatpush2.bf16.msra.mxu0 0
        %2102 = vmatprep.mubr.bf16.mxu0 0
        %2103 = vmatmul.mubr.bf16.gmra.mxu0 %v2068
        %v2104 = vpop.f32.mrf.mxu0
        %v2105 = vadd.f32 %v2053, %v2104
        %v2106 = vpop.f32.mrf.mxu0
        %v2107 = vpop.f32.mrf.mxu0
        %v2108 = vpop.f32.mrf.mxu0
        %2109 = vdwg.mxu0
        %v2110 = vmax.f32 %v2105, 0.0
        %v2111 = vpack.c.bf16 %v2110, %v2110
        %v2112 = vld [vmem:[%s13] sm:$0xf]
        %v2113 = vld [vmem:[%s13 + $0x4] sm:$0xf]
        %v2114 = vld [vmem:[%s13 + $0x8] sm:$0xf]
        %v2115 = vld [vmem:[%s13 + $0xc] sm:$0xf]
        %v2116 = vld [vmem:[%s13 + $0x10] sm:$0xf]
        %v2117 = vld [vmem:[%s13 + $0x14] sm:$0xf]
        %v2118 = vld [vmem:[%s13 + $0x18] sm:$0xf]
        %v2119 = vld [vmem:[%s13 + $0x1c] sm:$0xf]
        %v2120 = vld [vmem:[%s14] sm:$0x1]
        %v2122 = vlaneseq
        %v2123 = vshrl.u32 %v2122, 7
        %v2124 = vsub.s32 0, %v2123
        %v2125 = vrot.slane %v2120, %v2124
        %v2135 = vunpack.c.l.b16 %v2112
        %v2136 = vunpack.c.l.b16 %v2113
        %v2137 = vunpack.c.l.b16 %v2114
        %v2138 = vunpack.c.l.b16 %v2115
        %v2139 = vunpack.c.l.b16 %v2116
        %v2140 = vunpack.c.l.b16 %v2117
        %v2141 = vunpack.c.l.b16 %v2118
        %v2142 = vunpack.c.l.b16 %v2119
        %v2143 = vpack.c.b16 %v2136, %v2135
        %v2144 = vpack.c.b16 %v2138, %v2137
        %v2145 = vpack.c.b16 %v2140, %v2139
        %v2146 = vpack.c.b16 %v2142, %v2141
        %vm2151 = vcmask 523264
        %v2153 = vsel %vm2151, %v2111, 0
        %2155 = vmatprep.subr.bf16.mxu0 0
        %2156 = vmatpush1.bf16.msra.mxu0 0
        %2157 = vmatprep.subr.bf16.mxu0 0
        %2158 = vmatpush1.bf16.msra.mxu0 0
        %2159 = vmatprep.subr.bf16.mxu0 0
        %2160 = vmatpush1.bf16.msra.mxu0 0
        %2161 = vmatprep.subr.bf16.mxu0 0
        %2162 = vmatpush1.bf16.msra.mxu0 0
        %2163 = vmatprep.subr.bf16.mxu0 0
        %2164 = vmatpush1.bf16.msra.mxu0 %v2146
        %2165 = vmatprep.subr.bf16.mxu0 0
        %2166 = vmatpush1.bf16.msra.mxu0 %v2145
        %2167 = vmatprep.subr.bf16.mxu0 0
        %2168 = vmatpush1.bf16.msra.mxu0 %v2144
        %2169 = vmatprep.subr.bf16.mxu0 0
        %2170 = vmatpush1.bf16.msra.mxu0 %v2143
        %2171 = vmatprep.subr.bf16.mxu0 0
        %2172 = vmatpush2.bf16.msra.mxu0 0
        %2173 = vmatprep.subr.bf16.mxu0 0
        %2174 = vmatpush2.bf16.msra.mxu0 0
        %2175 = vmatprep.subr.bf16.mxu0 0
        %2176 = vmatpush2.bf16.msra.mxu0 0
        %2177 = vmatprep.subr.bf16.mxu0 0
        %2178 = vmatpush2.bf16.msra.mxu0 0
        %2179 = vmatprep.subr.bf16.mxu0 0
        %2180 = vmatpush2.bf16.msra.mxu0 0
        %2181 = vmatprep.subr.bf16.mxu0 0
        %2182 = vmatpush2.bf16.msra.mxu0 0
        %2183 = vmatprep.subr.bf16.mxu0 0
        %2184 = vmatpush2.bf16.msra.mxu0 0
        %2185 = vmatprep.subr.bf16.mxu0 0
        %2186 = vmatpush2.bf16.msra.mxu0 0
        %2187 = vmatprep.mubr.bf16.mxu0 0
        %2188 = vmatmul.mubr.bf16.gmra.mxu0 %v2153
        %v2189 = vpop.f32.mrf.mxu0
        %v2190 = vadd.f32 %v2125, %v2189
        %v2191 = vpop.f32.mrf.mxu0
        %v2192 = vpop.f32.mrf.mxu0
        %v2193 = vpop.f32.mrf.mxu0
        %2194 = vdwg.mxu0
        %v2195 = vadd.f32 %v2190, %v2042
        %v2196 = vld [vmem:[%s15] sm:$0x1]
        %v2197 = vld [vmem:[%s16] sm:$0x1]
        %v2198 = vsel %vm1155, %v2195, 0.0
        %2199 = vadd.xlane.f32.xlu0 %v2198
        %v2200 = vpop.xlane.xlu0 %2199
        %v2201 = vmul.f32 %v2200, %v2018
        %v2202 = vsub.f32 %v2195, %v2201
        %v2203 = vmul.f32 %v2202, %v2202
        %v2204 = vsel %vm1155, %v2203, 0.0
        %2205 = vadd.xlane.f32.xlu0 %v2204
        %v2206 = vpop.xlane.xlu0 %2205
        %v2207 = vmul.f32 %v2206, %v2018
        %v2208 = vadd.f32 %v2207, 1e-05
        %v2209 = vrsqrt.pop %v2208
        %v2210 = vmul.f32 %v2202, %v2209
        %v2212 = vlaneseq
        %v2213 = vshrl.u32 %v2212, 7
        %v2214 = vsub.s32 0, %v2213
        %v2215 = vrot.slane %v2196, %v2214
        %v2217 = vmul.f32 %v2210, %v2215
        %v2219 = vlaneseq
        %v2220 = vshrl.u32 %v2219, 7
        %v2221 = vsub.s32 0, %v2220
        %v2222 = vrot.slane %v2197, %v2221
        %v2224 = vadd.f32 %v2217, %v2222
        %2225 = vst.msk [vmem:[%s677] sm:$0xff] %vm1155, %v2224
        %s2226 = sand.u32 %s428, 1
        %s2227 = scalar_lea.sflag [#allocation6], %s2226
        %s2228 = sand.u32 %s428, 1
        %s2229 = smul.addr %s2228, 8
        %s2230 = scalar_lea.vmem [#allocation16], %s2229
        // Predicated region
        $region121: #{tpu_custom_call.1} parent=87 // pred_check
          %p2231 = pneg %p438
        $region122: #{tpu_custom_call.1} parent=87 // pred_check_branch
          %2233 = sbr.rel (%p2231) target = $region124
        $region123: #{tpu_custom_call.1} parent=87 // pred_region
          %s2235 = ssub.s32 128, 128
          %2236 = vsyncadd %s2227, %s2235
          %s2237 = sadd.s32 %s42, %s41
          %s2238 = smul.addr %s2237, 128
          %s2239 = scalar_lea.hbm %s17, %s2238
          %s2241 = sshll.u32 %s2230, 4
          %s2242 = int_to_ptr.vmem [resolvable:$true] %s2241
          %2244 = dma.vmem_to_hbm [thread:$0]  %s2242, 128, %s2239, %s2227
        $region124: #{tpu_custom_call.1} parent=87 // pred_fallthru
          _
      $region88: #{tpu_custom_call.1} parent=5 // pred_fallthru
        _
      %p2245 = scmp.le.s32.totalorder 2, %s32
      // Predicated region
      $region125: #{tpu_custom_call.1} parent=5 // pred_check
        %p2246 = pneg %p2245
      $region126: #{tpu_custom_call.1} parent=5 // pred_check_branch
        %2248 = sbr.rel (%p2246) target = $region128
      $region127: #{tpu_custom_call.1} parent=5 // pred_region
        %s2249 = ssub.s32 %s32, 2
        // Predicated region
        $region129: #{tpu_custom_call.1} parent=127 // pred_check
          %p2250 = pneg %p444
        $region130: #{tpu_custom_call.1} parent=127 // pred_check_branch
          %2252 = sbr.rel (%p2250) target = $region132
        $region131: #{tpu_custom_call.1} parent=127 // pred_region
          %s2253 = sand.u32 %s429, 1
          %s2254 = scalar_lea.sflag [#allocation6], %s2253
          %s2255 = sand.u32 %s429, 1
          %s2256 = smul.addr %s2255, 8
          %s2257 = scalar_lea.vmem [#allocation16], %s2256
          %2258 = dma.done %s2254, 128
        $region132: #{tpu_custom_call.1} parent=127 // pred_fallthru
          _
      $region128: #{tpu_custom_call.1} parent=5 // pred_fallthru
        _
    $region6: #{tpu_custom_call.1} parent=1 // loop_footer
      %s36 = sadd.s32 1, %s32
    $region7: #{tpu_custom_call.1} parent=1 // loop_footer_branch
      %31 = sbr.rel target = $region3
    $region8: #{tpu_custom_call.1} parent=1 // loop_exit
      _
    %2259 = vsyncpa [#allocation5], 1
    %s2260 = scalar_lea.sflag [#allocation5], 1
    %2261 = vsyncpa %s2260, 1
    %2262 = vsyncpa [#allocation8], 1
    %2263 = vsyncpa [#allocation11], 1
    %2264 = vsyncpa [#allocation14], 1
    %2265 = vsyncpa [#allocation6], 1
    %s2266 = scalar_lea.sflag [#allocation6], 1
    %2267 = vsyncpa %s2266, 1

</llo_original>
